<compile_context>
chip_gen: v6e
topology: v6e:2x2x1
jax: 0.10.0
libtpu: 0.0.40
codegen_flags: <defaults>
</compile_context>

<pallas_src>
import functools

import jax
import jax.numpy as jnp
from jax import lax
from jax.experimental import pallas as pl
from jax.experimental.pallas import tpu as pltpu

EPS = 1e-5

# Set to jnp.bfloat16 on v6e/v7x for ~2-4x MXU throughput (accumulation stays
# f32); kept f32 here so the tight reference tolerance holds.
MXU_DTYPE = jnp.float32

VMEM_LIMIT_BYTES = 64 * 1024 * 1024


def _round_up(x, m):
    return ((x + m - 1) // m) * m


def _pick_tile_h(H, W, cin_p, budget_bytes=8 * 2**20):
    """Largest useful divisor of H: ~128+ matmul rows per tile, bounded VMEM."""
    best = 1
    for th in range(1, H + 1):
        if H % th:
            continue
        rows = th * W
        patch_bytes = rows * 9 * cin_p * 4  # f32 im2col patch for the tile
        if patch_bytes > budget_bytes:
            break
        best = th
        if rows >= 128:
            break
    return best


# ---------------------------------------------------------------------------
# Phase-1 kernel: 3x3 conv on an H-tile (+ optional fused BN+ReLU of the
# previous stage on the input read) + one-pass per-tile BN partial statistics.
# ---------------------------------------------------------------------------
def _conv_bn_stats_kernel(x_ref, w_ref, scale_ref, shift_ref, z_ref, stats_ref,
                          *, th, apply_act):
    # x_ref    : (Hp, Wp, Cin_p)  spatially padded input for batch n (resident
    #                             across the inner H-tile grid axis)
    # w_ref    : (9*Cin_p, Cout_p) packed HWIO weight (tap-major rows)
    # scale/shift_ref : (1, Cin_p) previous-stage BN affine (used iff apply_act)
    # z_ref    : (TH, W, Cout_p)  pre-BN conv output tile
    # stats_ref: (2, Cout_p)      per-tile [sum, sum_of_squares] over rows
    Hp, Wp, cin_p = x_ref.shape
    W = Wp - 2
    cout_p = w_ref.shape[-1]

    row0 = pl.multiple_of(pl.program_id(1) * th, th)
    xt = x_ref[pl.ds(row0, th + 2), :, :]                 # (th+2, Wp, cin_p)

    if apply_act:
        # Fused BatchNorm+ReLU of the previous stage applied on the fly.  The
        # spatial zero-padding must stay zero AFTER the affine+ReLU, so mask
        # the border positions of the padded image explicitly.
        a = jnp.maximum(xt * scale_ref[...] + shift_ref[...], 0.0)
        rows = lax.broadcasted_iota(jnp.int32, (th + 2, Wp, 1), 0) + row0
        cols = lax.broadcasted_iota(jnp.int32, (th + 2, Wp, 1), 1)
        is_pad = (rows == 0) | (rows == Hp - 1) | (cols == 0) | (cols == Wp - 1)
        xt = jnp.where(is_pad, 0.0, a)

    # im2col of the tile: one fat MXU matmul, K = 9 * Cin_p.
    taps = []
    for dh in range(3):
        for dw in range(3):
            taps.append(xt[dh:dh + th, dw:dw + W, :].reshape(th * W, cin_p))
    patch = jnp.concatenate(taps, axis=-1)                # (th*W, 9*cin_p)

    z = jnp.dot(patch.astype(MXU_DTYPE), w_ref[...].astype(MXU_DTYPE),
                preferred_element_type=jnp.float32)       # (th*W, cout_p)

    z_ref[...] = z.reshape(th, W, cout_p)

    # One-pass partial BN statistics for this tile (reduced globally outside).
    s1 = jnp.sum(z, axis=0, keepdims=True)
    s2 = jnp.sum(z * z, axis=0, keepdims=True)
    stats_ref[...] = jnp.concatenate([s1, s2], axis=0)


def _conv_stage(xp, w9, scale_in, shift_in, apply_act, H, W, th, cout_p):
    N, Hp, Wp, cin_p = xp.shape
    n_t = H // th
    kern = functools.partial(_conv_bn_stats_kernel, th=th, apply_act=apply_act)
    return pl.pallas_call(
        kern,
        grid=(N, n_t),
        in_specs=[
            pl.BlockSpec((None, Hp, Wp, cin_p), lambda n, t: (n, 0, 0, 0)),
            pl.BlockSpec((9 * cin_p, cout_p), lambda n, t: (0, 0)),
            pl.BlockSpec((1, cin_p), lambda n, t: (0, 0)),
            pl.BlockSpec((1, cin_p), lambda n, t: (0, 0)),
        ],
        out_specs=(
            pl.BlockSpec((None, th, W, cout_p), lambda n, t: (n, t, 0, 0)),
            pl.BlockSpec((None, None, 2, cout_p), lambda n, t: (n, t, 0, 0)),
        ),
        out_shape=(
            jax.ShapeDtypeStruct((N, H, W, cout_p), jnp.float32),
            jax.ShapeDtypeStruct((N, n_t, 2, cout_p), jnp.float32),
        ),
        compiler_params=pltpu.CompilerParams(
            dimension_semantics=("parallel", "parallel"),
            vmem_limit_bytes=VMEM_LIMIT_BYTES),
    )(xp, w9, scale_in, shift_in)


# ---------------------------------------------------------------------------
# Phase-2 kernel: final BatchNorm affine + ReLU (lane-dense elementwise).
# ---------------------------------------------------------------------------
def _affine_relu_kernel(z_ref, scale_ref, shift_ref, o_ref):
    o_ref[...] = jnp.maximum(z_ref[...] * scale_ref[...] + shift_ref[...], 0.0)


def _affine_relu(z, scale, shift, th):
    N, H, W, cp = z.shape
    n_t = H // th
    return pl.pallas_call(
        _affine_relu_kernel,
        grid=(N, n_t),
        in_specs=[
            pl.BlockSpec((None, th, W, cp), lambda n, t: (n, t, 0, 0)),
            pl.BlockSpec((1, cp), lambda n, t: (0, 0)),
            pl.BlockSpec((1, cp), lambda n, t: (0, 0)),
        ],
        out_specs=pl.BlockSpec((None, th, W, cp), lambda n, t: (n, t, 0, 0)),
        out_shape=jax.ShapeDtypeStruct((N, H, W, cp), jnp.float32),
        compiler_params=pltpu.CompilerParams(
            dimension_semantics=("parallel", "parallel"),
            vmem_limit_bytes=VMEM_LIMIT_BYTES),
    )(z, scale, shift)


# ---------------------------------------------------------------------------
# Wrapper glue (layout, channel padding, global BN stat reduction).
# ---------------------------------------------------------------------------
def _pad_channels(x, cp):
    c = x.shape[-1]
    if c == cp:
        return x
    return jnp.pad(x, ((0, 0), (0, 0), (0, 0), (0, cp - c)))


def _pad_vec(v, cp):
    return jnp.pad(v, (0, cp - v.shape[0]))


def _pack_weight(w_hwio, cin_p, cout_p):
    kh, kw, cin, cout = w_hwio.shape
    w = jnp.zeros((kh, kw, cin_p, cout_p), jnp.float32)
    w = w.at[:, :, :cin, :cout].set(w_hwio)
    return w.reshape(kh * kw * cin_p, cout_p)   # tap-major rows, matches im2col


def _finalize_bn(stats, gamma_p, beta_p, count):
    # stats: (N, n_tiles, 2, Cp) partial [sum, sum_sq] -> global scale / shift.
    s = jnp.sum(stats, axis=(0, 1))             # (2, Cp)
    mean = s[0] / count
    var = jnp.maximum(s[1] / count - mean * mean, 0.0)   # biased batch variance
    scale = gamma_p * lax.rsqrt(var + EPS)
    shift = beta_p - mean * scale
    return scale.reshape(1, -1), shift.reshape(1, -1)


def double_conv(x_nchw, params):
    """Pallas DoubleConv forward. Input/output are NCHW (PyTorch convention)."""
    N, cin, H, W = x_nchw.shape
    cout = params["w1"].shape[-1]
    cin_p = _round_up(cin, 128)
    cmid_p = _round_up(cout, 128)
    cout_p = cmid_p

    x = jnp.transpose(x_nchw, (0, 2, 3, 1))                  # NCHW -> NHWC
    x = _pad_channels(x, cin_p)
    xp = jnp.pad(x, ((0, 0), (1, 1), (1, 1), (0, 0)))        # conv1 spatial halo

    w1 = _pack_weight(params["w1"], cin_p, cmid_p)
    w2 = _pack_weight(params["w2"], cmid_p, cout_p)
    g1, be1 = _pad_vec(params["g1"], cmid_p), _pad_vec(params["be1"], cmid_p)
    g2, be2 = _pad_vec(params["g2"], cout_p), _pad_vec(params["be2"], cout_p)

    count = N * H * W

    # Stage 1: conv1 + per-tile BN partials (conv bias dropped: BN cancels it).
    th1 = _pick_tile_h(H, W, cin_p)
    ones = jnp.ones((1, cin_p), jnp.float32)
    zeros = jnp.zeros((1, cin_p), jnp.float32)
    z1, st1 = _conv_stage(xp, w1, ones, zeros, False, H, W, th1, cmid_p)
    scale1, shift1 = _finalize_bn(st1, g1, be1, count)

    # Stage 2: BN1+ReLU fused into the conv2 input read; conv2 + BN partials.
    z1p = jnp.pad(z1, ((0, 0), (1, 1), (1, 1), (0, 0)))
    th2 = _pick_tile_h(H, W, cmid_p)
    z2, st2 = _conv_stage(z1p, w2, scale1, shift1, True, H, W, th2, cout_p)
    scale2, shift2 = _finalize_bn(st2, g2, be2, count)

    # Final BN2 + ReLU (lane-dense elementwise kernel).
    y = _affine_relu(z2, scale2, shift2, th2)

    y = y[..., :cout]
    return jnp.transpose(y, (0, 3, 1, 2))                    # NHWC -> NCHW


# ---------------------------------------------------------------------------
# Params + pure-JAX reference (mirrors PyTorch, including the conv bias).
# ---------------------------------------------------------------------------
def make_params(key, cin, cout):
    ks = jax.random.split(key, 4)
    scale1 = 1.0 / jnp.sqrt(cin * 9.0)
    scale2 = 1.0 / jnp.sqrt(cout * 9.0)
    return {
        # stored HWIO for the kernel
        "w1": scale1 * jax.random.normal(ks[0], (3, 3, cin, cout), jnp.float32),
        "b1": scale1 * jax.random.normal(ks[1], (cout,), jnp.float32),
        "g1": jnp.linspace(0.5, 1.5, cout, dtype=jnp.float32),
        "be1": jnp.linspace(-0.1, 0.1, cout, dtype=jnp.float32),
        "w2": scale2 * jax.random.normal(ks[2], (3, 3, cout, cout), jnp.float32),
        "b2": scale2 * jax.random.normal(ks[3], (cout,), jnp.float32),
        "g2": jnp.linspace(1.5, 0.5, cout, dtype=jnp.float32),
        "be2": jnp.linspace(0.1, -0.1, cout, dtype=jnp.float32),
    }


def _ref_double_conv(x_nchw, params):
    """Pure-JAX reference matching PyTorch NCHW semantics (with conv bias)."""
    def step(x, w_hwio, b, g, be):
        w_oihw = jnp.transpose(w_hwio, (3, 2, 0, 1))
        y = lax.conv_general_dilated(
            x, w_oihw, window_strides=(1, 1), padding=((1, 1), (1, 1)),
            dimension_numbers=("NCHW", "OIHW", "NCHW"))
        y = y + b[None, :, None, None]
        mean = jnp.mean(y, axis=(0, 2, 3), keepdims=True)
        var = jnp.mean((y - mean) ** 2, axis=(0, 2, 3), keepdims=True)
        y = (y - mean) / jnp.sqrt(var + EPS)
        y = y * g[None, :, None, None] + be[None, :, None, None]
        return jnp.maximum(y, 0.0)

    y = step(x_nchw, params["w1"], params["b1"], params["g1"], params["be1"])
    return step(y, params["w2"], params["b2"], params["g2"], params["be2"])


if __name__ == "__main__":
    key = jax.random.PRNGKey(0)
    kx, kp = jax.random.split(key)

    N, CIN, COUT, H, W = 2, 4, 8, 16, 16
    x = jax.random.normal(kx, (N, CIN, H, W), jnp.float32)   # NCHW like PyTorch
    params = make_params(kp, CIN, COUT)

    out = jax.jit(double_conv)(x, params)
    out = jax.block_until_ready(out)

    ref = _ref_double_conv(x, params)
    assert out.shape == (N, COUT, H, W)
    err = float(jnp.max(jnp.abs(out - ref)))
    assert err < 1e-3, f"mismatch vs reference: {err}"

    print("KERNEL_OK")
</pallas_src>

<mosaic_0001>
module attributes {stable_mosaic.version = 11 : i64} {
  func.func @_conv_bn_stats_kernel(%arg0: i32, %arg1: i32, %arg2: memref<1x18x18x128xf32, #tpu.memory_space<vmem>>, %arg3: memref<1152x128xf32, #tpu.memory_space<vmem>>, %arg4: memref<1x128xf32, #tpu.memory_space<vmem>>, %arg5: memref<1x128xf32, #tpu.memory_space<vmem>>, %arg6: memref<1x8x16x128xf32, #tpu.memory_space<vmem>>, %arg7: memref<1x1x2x128xf32, #tpu.memory_space<vmem>>) attributes {dimension_semantics = [#tpu.dimension_semantics<parallel>, #tpu.dimension_semantics<parallel>], iteration_bounds = array<i64: 2, 2>, scalar_prefetch = 0 : i64, scratch_operands = 0 : i64, tpu.core_type = #tpu.core_type<tc>, window_params = [{transform_indices = @transform_0, window_bounds = array<i64: 1, 18, 18, 128>}, {pipeline_mode = #tpu.pipeline_mode<synchronous>, transform_indices = @transform_1, window_bounds = array<i64: 1152, 128>}, {pipeline_mode = #tpu.pipeline_mode<synchronous>, transform_indices = @transform_2, window_bounds = array<i64: 1, 128>}, {pipeline_mode = #tpu.pipeline_mode<synchronous>, transform_indices = @transform_3, window_bounds = array<i64: 1, 128>}, {transform_indices = @transform_4, window_bounds = array<i64: 1, 8, 16, 128>}, {transform_indices = @transform_5, window_bounds = array<i64: 1, 1, 2, 128>}]} {
    %c8_i32 = arith.constant 8 : i32
    %0 = arith.muli %arg1, %c8_i32 : i32
    %1 = tpu.assume_multiple %0, 8 : i32
    %c0 = arith.constant 0 : index
    %2 = arith.index_cast %1 : i32 to index
    %c0_0 = arith.constant 0 : index
    %c0_1 = arith.constant 0 : index
    %3 = vector.load %arg2[%c0, %2, %c0_0, %c0_1] : memref<1x18x18x128xf32, #tpu.memory_space<vmem>>, vector<1x10x18x128xf32>
    %4 = vector.shape_cast %3 : vector<1x10x18x128xf32> to vector<10x18x128xf32>
    %5 = vector.extract_strided_slice %4 {offsets = [0, 0, 0], sizes = [8, 16, 128], strides = [1, 1, 1]} : vector<10x18x128xf32> to vector<8x16x128xf32>
    %6 = vector.shape_cast %5 : vector<8x16x128xf32> to vector<128x128xf32>
    %7 = vector.extract_strided_slice %4 {offsets = [0, 1, 0], sizes = [8, 16, 128], strides = [1, 1, 1]} : vector<10x18x128xf32> to vector<8x16x128xf32>
    %8 = vector.shape_cast %7 : vector<8x16x128xf32> to vector<128x128xf32>
    %9 = vector.extract_strided_slice %4 {offsets = [0, 2, 0], sizes = [8, 16, 128], strides = [1, 1, 1]} : vector<10x18x128xf32> to vector<8x16x128xf32>
    %10 = vector.shape_cast %9 : vector<8x16x128xf32> to vector<128x128xf32>
    %11 = vector.extract_strided_slice %4 {offsets = [1, 0, 0], sizes = [8, 16, 128], strides = [1, 1, 1]} : vector<10x18x128xf32> to vector<8x16x128xf32>
    %12 = vector.shape_cast %11 : vector<8x16x128xf32> to vector<128x128xf32>
    %13 = vector.extract_strided_slice %4 {offsets = [1, 1, 0], sizes = [8, 16, 128], strides = [1, 1, 1]} : vector<10x18x128xf32> to vector<8x16x128xf32>
    %14 = vector.shape_cast %13 : vector<8x16x128xf32> to vector<128x128xf32>
    %15 = vector.extract_strided_slice %4 {offsets = [1, 2, 0], sizes = [8, 16, 128], strides = [1, 1, 1]} : vector<10x18x128xf32> to vector<8x16x128xf32>
    %16 = vector.shape_cast %15 : vector<8x16x128xf32> to vector<128x128xf32>
    %17 = vector.extract_strided_slice %4 {offsets = [2, 0, 0], sizes = [8, 16, 128], strides = [1, 1, 1]} : vector<10x18x128xf32> to vector<8x16x128xf32>
    %18 = vector.shape_cast %17 : vector<8x16x128xf32> to vector<128x128xf32>
    %19 = vector.extract_strided_slice %4 {offsets = [2, 1, 0], sizes = [8, 16, 128], strides = [1, 1, 1]} : vector<10x18x128xf32> to vector<8x16x128xf32>
    %20 = vector.shape_cast %19 : vector<8x16x128xf32> to vector<128x128xf32>
    %21 = vector.extract_strided_slice %4 {offsets = [2, 2, 0], sizes = [8, 16, 128], strides = [1, 1, 1]} : vector<10x18x128xf32> to vector<8x16x128xf32>
    %22 = vector.shape_cast %21 : vector<8x16x128xf32> to vector<128x128xf32>
    %23 = tpu.concatenate %6, %8, %10, %12, %14, %16, %18, %20, %22 in 1 : vector<128x128xf32>, vector<128x128xf32>, vector<128x128xf32>, vector<128x128xf32>, vector<128x128xf32>, vector<128x128xf32>, vector<128x128xf32>, vector<128x128xf32>, vector<128x128xf32> -> vector<128x1152xf32>
    %c0_2 = arith.constant 0 : index
    %c0_3 = arith.constant 0 : index
    %24 = vector.load %arg3[%c0_2, %c0_3] : memref<1152x128xf32, #tpu.memory_space<vmem>>, vector<1152x128xf32>
    %cst = arith.constant dense<0.000000e+00> : vector<128x128xf32>
    %25 = tpu.matmul %23, %24, %cst {dimension_numbers = #tpu.dot_dimension_numbers<[1], [0], [0], [1], [0, 0, 1, 1], [], []>} : vector<128x1152xf32>, vector<1152x128xf32>, vector<128x128xf32> -> vector<128x128xf32>
    %26 = vector.shape_cast %25 : vector<128x128xf32> to vector<8x16x128xf32>
    %c0_4 = arith.constant 0 : index
    %c0_5 = arith.constant 0 : index
    %c0_6 = arith.constant 0 : index
    %c0_7 = arith.constant 0 : index
    %27 = vector.load %arg6[%c0_4, %c0_5, %c0_6, %c0_7] : memref<1x8x16x128xf32, #tpu.memory_space<vmem>>, vector<1x8x16x128xf32>
    %28 = vector.shape_cast %27 : vector<1x8x16x128xf32> to vector<8x16x128xf32>
    %29 = vector.shape_cast %26 : vector<8x16x128xf32> to vector<1x8x16x128xf32>
    tpu.vector_store %arg6[%c0_4, %c0_5, %c0_6, %c0_7], %29 {strides = array<i32>} : memref<1x8x16x128xf32, #tpu.memory_space<vmem>>, vector<1x8x16x128xf32>,
    %cst_8 = arith.constant dense<0.000000e+00> : vector<128xf32>
    %30 = vector.multi_reduction <add>, %25, %cst_8 [0] : vector<128x128xf32> to vector<128xf32>
    %31 = vector.shape_cast %30 : vector<128xf32> to vector<1x128xf32>
    %32 = arith.mulf %25, %25 : vector<128x128xf32>
    %cst_9 = arith.constant dense<0.000000e+00> : vector<128xf32>
    %33 = vector.multi_reduction <add>, %32, %cst_9 [0] : vector<128x128xf32> to vector<128xf32>
    %34 = vector.shape_cast %33 : vector<128xf32> to vector<1x128xf32>
    %35 = tpu.concatenate %31, %34 in 0 : vector<1x128xf32>, vector<1x128xf32> -> vector<2x128xf32>
    %c0_10 = arith.constant 0 : index
    %c0_11 = arith.constant 0 : index
    %c0_12 = arith.constant 0 : index
    %c0_13 = arith.constant 0 : index
    %36 = vector.load %arg7[%c0_10, %c0_11, %c0_12, %c0_13] : memref<1x1x2x128xf32, #tpu.memory_space<vmem>>, vector<1x1x2x128xf32>
    %37 = vector.shape_cast %36 : vector<1x1x2x128xf32> to vector<2x128xf32>
    %38 = vector.shape_cast %35 : vector<2x128xf32> to vector<1x1x2x128xf32>
    tpu.vector_store %arg7[%c0_10, %c0_11, %c0_12, %c0_13], %38 {strides = array<i32>} : memref<1x1x2x128xf32, #tpu.memory_space<vmem>>, vector<1x1x2x128xf32>,
    return
  }
  func.func @transform_0(%arg0: i32, %arg1: i32) -> (i32, i32, i32, i32) {
    %c0_i32 = arith.constant 0 : i32
    %c0_i32_0 = arith.constant 0 : i32
    %c0_i32_1 = arith.constant 0 : i32
    %c0_i32_2 = arith.constant 0 : i32
    return %arg0, %c0_i32, %c0_i32_0, %c0_i32_1 : i32, i32, i32, i32
  }
  func.func @transform_1(%arg0: i32, %arg1: i32) -> (i32, i32) {
    %c0_i32 = arith.constant 0 : i32
    %c0_i32_0 = arith.constant 0 : i32
    %c0_i32_1 = arith.constant 0 : i32
    return %c0_i32, %c0_i32_0 : i32, i32
  }
  func.func @transform_2(%arg0: i32, %arg1: i32) -> (i32, i32) {
    %c0_i32 = arith.constant 0 : i32
    %c0_i32_0 = arith.constant 0 : i32
    %c0_i32_1 = arith.constant 0 : i32
    return %c0_i32, %c0_i32_0 : i32, i32
  }
  func.func @transform_3(%arg0: i32, %arg1: i32) -> (i32, i32) {
    %c0_i32 = arith.constant 0 : i32
    %c0_i32_0 = arith.constant 0 : i32
    %c0_i32_1 = arith.constant 0 : i32
    return %c0_i32, %c0_i32_0 : i32, i32
  }
  func.func @transform_4(%arg0: i32, %arg1: i32) -> (i32, i32, i32, i32) {
    %c0_i32 = arith.constant 0 : i32
    %c0_i32_0 = arith.constant 0 : i32
    %c0_i32_1 = arith.constant 0 : i32
    return %arg0, %arg1, %c0_i32, %c0_i32_0 : i32, i32, i32, i32
  }
  func.func @transform_5(%arg0: i32, %arg1: i32) -> (i32, i32, i32, i32) {
    %c0_i32 = arith.constant 0 : i32
    %c0_i32_0 = arith.constant 0 : i32
    %c0_i32_1 = arith.constant 0 : i32
    return %arg0, %arg1, %c0_i32, %c0_i32_0 : i32, i32, i32, i32
  }
}

module attributes {stable_mosaic.version = 11 : i64} {
  func.func @_affine_relu_kernel(%arg0: i32, %arg1: i32, %arg2: memref<1x8x16x128xf32, #tpu.memory_space<vmem>>, %arg3: memref<1x128xf32, #tpu.memory_space<vmem>>, %arg4: memref<1x128xf32, #tpu.memory_space<vmem>>, %arg5: memref<1x8x16x128xf32, #tpu.memory_space<vmem>>) attributes {dimension_semantics = [#tpu.dimension_semantics<parallel>, #tpu.dimension_semantics<parallel>], iteration_bounds = array<i64: 2, 2>, scalar_prefetch = 0 : i64, scratch_operands = 0 : i64, tpu.core_type = #tpu.core_type<tc>, window_params = [{transform_indices = @transform_0, window_bounds = array<i64: 1, 8, 16, 128>}, {pipeline_mode = #tpu.pipeline_mode<synchronous>, transform_indices = @transform_1, window_bounds = array<i64: 1, 128>}, {pipeline_mode = #tpu.pipeline_mode<synchronous>, transform_indices = @transform_2, window_bounds = array<i64: 1, 128>}, {transform_indices = @transform_3, window_bounds = array<i64: 1, 8, 16, 128>}]} {
    %c0 = arith.constant 0 : index
    %c0_0 = arith.constant 0 : index
    %c0_1 = arith.constant 0 : index
    %c0_2 = arith.constant 0 : index
    %0 = vector.load %arg2[%c0, %c0_0, %c0_1, %c0_2] : memref<1x8x16x128xf32, #tpu.memory_space<vmem>>, vector<1x8x16x128xf32>
    %1 = vector.shape_cast %0 : vector<1x8x16x128xf32> to vector<8x16x128xf32>
    %c0_3 = arith.constant 0 : index
    %c0_4 = arith.constant 0 : index
    %2 = vector.load %arg3[%c0_3, %c0_4] : memref<1x128xf32, #tpu.memory_space<vmem>>, vector<1x128xf32>
    %3 = vector.shape_cast %2 : vector<1x128xf32> to vector<1x1x128xf32>
    %4 = vector.broadcast %3 : vector<1x1x128xf32> to vector<8x16x128xf32>
    %5 = arith.mulf %1, %4 : vector<8x16x128xf32>
    %c0_5 = arith.constant 0 : index
    %c0_6 = arith.constant 0 : index
    %6 = vector.load %arg4[%c0_5, %c0_6] : memref<1x128xf32, #tpu.memory_space<vmem>>, vector<1x128xf32>
    %7 = vector.shape_cast %6 : vector<1x128xf32> to vector<1x1x128xf32>
    %8 = vector.broadcast %7 : vector<1x1x128xf32> to vector<8x16x128xf32>
    %9 = arith.addf %5, %8 : vector<8x16x128xf32>
    %cst = arith.constant 0.000000e+00 : f32
    %10 = vector.broadcast %cst : f32 to vector<8x16x128xf32>
    %11 = arith.maximumf %9, %10 : vector<8x16x128xf32>
    %c0_7 = arith.constant 0 : index
    %c0_8 = arith.constant 0 : index
    %c0_9 = arith.constant 0 : index
    %c0_10 = arith.constant 0 : index
    %12 = vector.load %arg5[%c0_7, %c0_8, %c0_9, %c0_10] : memref<1x8x16x128xf32, #tpu.memory_space<vmem>>, vector<1x8x16x128xf32>
    %13 = vector.shape_cast %12 : vector<1x8x16x128xf32> to vector<8x16x128xf32>
    %14 = vector.shape_cast %11 : vector<8x16x128xf32> to vector<1x8x16x128xf32>
    tpu.vector_store %arg5[%c0_7, %c0_8, %c0_9, %c0_10], %14 {strides = array<i32>} : memref<1x8x16x128xf32, #tpu.memory_space<vmem>>, vector<1x8x16x128xf32>,
    return
  }
  func.func @transform_0(%arg0: i32, %arg1: i32) -> (i32, i32, i32, i32) {
    %c0_i32 = arith.constant 0 : i32
    %c0_i32_0 = arith.constant 0 : i32
    %c0_i32_1 = arith.constant 0 : i32
    return %arg0, %arg1, %c0_i32, %c0_i32_0 : i32, i32, i32, i32
  }
  func.func @transform_1(%arg0: i32, %arg1: i32) -> (i32, i32) {
    %c0_i32 = arith.constant 0 : i32
    %c0_i32_0 = arith.constant 0 : i32
    %c0_i32_1 = arith.constant 0 : i32
    return %c0_i32, %c0_i32_0 : i32, i32
  }
  func.func @transform_2(%arg0: i32, %arg1: i32) -> (i32, i32) {
    %c0_i32 = arith.constant 0 : i32
    %c0_i32_0 = arith.constant 0 : i32
    %c0_i32_1 = arith.constant 0 : i32
    return %c0_i32, %c0_i32_0 : i32, i32
  }
  func.func @transform_3(%arg0: i32, %arg1: i32) -> (i32, i32, i32, i32) {
    %c0_i32 = arith.constant 0 : i32
    %c0_i32_0 = arith.constant 0 : i32
    %c0_i32_1 = arith.constant 0 : i32
    return %arg0, %arg1, %c0_i32, %c0_i32_0 : i32, i32, i32, i32
  }
}

module attributes {stable_mosaic.version = 11 : i64} {
  func.func @_conv_bn_stats_kernel(%arg0: i32, %arg1: i32, %arg2: memref<1x18x18x128xf32, #tpu.memory_space<vmem>>, %arg3: memref<1152x128xf32, #tpu.memory_space<vmem>>, %arg4: memref<1x128xf32, #tpu.memory_space<vmem>>, %arg5: memref<1x128xf32, #tpu.memory_space<vmem>>, %arg6: memref<1x8x16x128xf32, #tpu.memory_space<vmem>>, %arg7: memref<1x1x2x128xf32, #tpu.memory_space<vmem>>) attributes {dimension_semantics = [#tpu.dimension_semantics<parallel>, #tpu.dimension_semantics<parallel>], iteration_bounds = array<i64: 2, 2>, scalar_prefetch = 0 : i64, scratch_operands = 0 : i64, tpu.core_type = #tpu.core_type<tc>, window_params = [{transform_indices = @transform_0, window_bounds = array<i64: 1, 18, 18, 128>}, {pipeline_mode = #tpu.pipeline_mode<synchronous>, transform_indices = @transform_1, window_bounds = array<i64: 1152, 128>}, {pipeline_mode = #tpu.pipeline_mode<synchronous>, transform_indices = @transform_2, window_bounds = array<i64: 1, 128>}, {pipeline_mode = #tpu.pipeline_mode<synchronous>, transform_indices = @transform_3, window_bounds = array<i64: 1, 128>}, {transform_indices = @transform_4, window_bounds = array<i64: 1, 8, 16, 128>}, {transform_indices = @transform_5, window_bounds = array<i64: 1, 1, 2, 128>}]} {
    %c8_i32 = arith.constant 8 : i32
    %0 = arith.muli %arg1, %c8_i32 : i32
    %1 = tpu.assume_multiple %0, 8 : i32
    %c0 = arith.constant 0 : index
    %2 = arith.index_cast %1 : i32 to index
    %c0_0 = arith.constant 0 : index
    %c0_1 = arith.constant 0 : index
    %3 = vector.load %arg2[%c0, %2, %c0_0, %c0_1] : memref<1x18x18x128xf32, #tpu.memory_space<vmem>>, vector<1x10x18x128xf32>
    %4 = vector.shape_cast %3 : vector<1x10x18x128xf32> to vector<10x18x128xf32>
    %c0_2 = arith.constant 0 : index
    %c0_3 = arith.constant 0 : index
    %5 = vector.load %arg4[%c0_2, %c0_3] : memref<1x128xf32, #tpu.memory_space<vmem>>, vector<1x128xf32>
    %6 = vector.shape_cast %5 : vector<1x128xf32> to vector<1x1x128xf32>
    %7 = vector.broadcast %6 : vector<1x1x128xf32> to vector<10x18x128xf32>
    %8 = arith.mulf %4, %7 : vector<10x18x128xf32>
    %c0_4 = arith.constant 0 : index
    %c0_5 = arith.constant 0 : index
    %9 = vector.load %arg5[%c0_4, %c0_5] : memref<1x128xf32, #tpu.memory_space<vmem>>, vector<1x128xf32>
    %10 = vector.shape_cast %9 : vector<1x128xf32> to vector<1x1x128xf32>
    %11 = vector.broadcast %10 : vector<1x1x128xf32> to vector<10x18x128xf32>
    %12 = arith.addf %8, %11 : vector<10x18x128xf32>
    %cst = arith.constant 0.000000e+00 : f32
    %13 = vector.broadcast %cst : f32 to vector<10x18x128xf32>
    %14 = arith.maximumf %12, %13 : vector<10x18x128xf32>
    %15 = tpu.iota {dimensions = array<i32: 0>} : vector<10x18x1xi32>
    %16 = vector.broadcast %1 : i32 to vector<10x18x1xi32>
    %17 = arith.addi %15, %16 : vector<10x18x1xi32>
    %18 = tpu.iota {dimensions = array<i32: 1>} : vector<10x18x1xi32>
    %c0_i32 = arith.constant 0 : i32
    %19 = vector.broadcast %c0_i32 : i32 to vector<10x18x1xi32>
    %20 = arith.cmpi eq, %17, %19 : vector<10x18x1xi32>
    %c17_i32 = arith.constant 17 : i32
    %21 = vector.broadcast %c17_i32 : i32 to vector<10x18x1xi32>
    %22 = arith.cmpi eq, %17, %21 : vector<10x18x1xi32>
    %23 = arith.ori %20, %22 : vector<10x18x1xi1>
    %c0_i32_6 = arith.constant 0 : i32
    %24 = vector.broadcast %c0_i32_6 : i32 to vector<10x18x1xi32>
    %25 = arith.cmpi eq, %18, %24 : vector<10x18x1xi32>
    %26 = arith.ori %23, %25 : vector<10x18x1xi1>
    %c17_i32_7 = arith.constant 17 : i32
    %27 = vector.broadcast %c17_i32_7 : i32 to vector<10x18x1xi32>
    %28 = arith.cmpi eq, %18, %27 : vector<10x18x1xi32>
    %29 = arith.ori %26, %28 : vector<10x18x1xi1>
    %cst_8 = arith.constant 0.000000e+00 : f32
    %30 = vector.shape_cast %29 : vector<10x18x1xi1> to vector<10x18x1xi1>
    %31 = vector.broadcast %30 : vector<10x18x1xi1> to vector<10x18x128xi1>
    %32 = vector.broadcast %cst_8 : f32 to vector<10x18x128xf32>
    %33 = arith.select %31, %32, %14 : vector<10x18x128xi1>, vector<10x18x128xf32>
    %34 = vector.extract_strided_slice %33 {offsets = [0, 0, 0], sizes = [8, 16, 128], strides = [1, 1, 1]} : vector<10x18x128xf32> to vector<8x16x128xf32>
    %35 = vector.shape_cast %34 : vector<8x16x128xf32> to vector<128x128xf32>
    %36 = vector.extract_strided_slice %33 {offsets = [0, 1, 0], sizes = [8, 16, 128], strides = [1, 1, 1]} : vector<10x18x128xf32> to vector<8x16x128xf32>
    %37 = vector.shape_cast %36 : vector<8x16x128xf32> to vector<128x128xf32>
    %38 = vector.extract_strided_slice %33 {offsets = [0, 2, 0], sizes = [8, 16, 128], strides = [1, 1, 1]} : vector<10x18x128xf32> to vector<8x16x128xf32>
    %39 = vector.shape_cast %38 : vector<8x16x128xf32> to vector<128x128xf32>
    %40 = vector.extract_strided_slice %33 {offsets = [1, 0, 0], sizes = [8, 16, 128], strides = [1, 1, 1]} : vector<10x18x128xf32> to vector<8x16x128xf32>
    %41 = vector.shape_cast %40 : vector<8x16x128xf32> to vector<128x128xf32>
    %42 = vector.extract_strided_slice %33 {offsets = [1, 1, 0], sizes = [8, 16, 128], strides = [1, 1, 1]} : vector<10x18x128xf32> to vector<8x16x128xf32>
    %43 = vector.shape_cast %42 : vector<8x16x128xf32> to vector<128x128xf32>
    %44 = vector.extract_strided_slice %33 {offsets = [1, 2, 0], sizes = [8, 16, 128], strides = [1, 1, 1]} : vector<10x18x128xf32> to vector<8x16x128xf32>
    %45 = vector.shape_cast %44 : vector<8x16x128xf32> to vector<128x128xf32>
    %46 = vector.extract_strided_slice %33 {offsets = [2, 0, 0], sizes = [8, 16, 128], strides = [1, 1, 1]} : vector<10x18x128xf32> to vector<8x16x128xf32>
    %47 = vector.shape_cast %46 : vector<8x16x128xf32> to vector<128x128xf32>
    %48 = vector.extract_strided_slice %33 {offsets = [2, 1, 0], sizes = [8, 16, 128], strides = [1, 1, 1]} : vector<10x18x128xf32> to vector<8x16x128xf32>
    %49 = vector.shape_cast %48 : vector<8x16x128xf32> to vector<128x128xf32>
    %50 = vector.extract_strided_slice %33 {offsets = [2, 2, 0], sizes = [8, 16, 128], strides = [1, 1, 1]} : vector<10x18x128xf32> to vector<8x16x128xf32>
    %51 = vector.shape_cast %50 : vector<8x16x128xf32> to vector<128x128xf32>
    %52 = tpu.concatenate %35, %37, %39, %41, %43, %45, %47, %49, %51 in 1 : vector<128x128xf32>, vector<128x128xf32>, vector<128x128xf32>, vector<128x128xf32>, vector<128x128xf32>, vector<128x128xf32>, vector<128x128xf32>, vector<128x128xf32>, vector<128x128xf32> -> vector<128x1152xf32>
    %c0_9 = arith.constant 0 : index
    %c0_10 = arith.constant 0 : index
    %53 = vector.load %arg3[%c0_9, %c0_10] : memref<1152x128xf32, #tpu.memory_space<vmem>>, vector<1152x128xf32>
    %cst_11 = arith.constant dense<0.000000e+00> : vector<128x128xf32>
    %54 = tpu.matmul %52, %53, %cst_11 {dimension_numbers = #tpu.dot_dimension_numbers<[1], [0], [0], [1], [0, 0, 1, 1], [], []>} : vector<128x1152xf32>, vector<1152x128xf32>, vector<128x128xf32> -> vector<128x128xf32>
    %55 = vector.shape_cast %54 : vector<128x128xf32> to vector<8x16x128xf32>
    %c0_12 = arith.constant 0 : index
    %c0_13 = arith.constant 0 : index
    %c0_14 = arith.constant 0 : index
    %c0_15 = arith.constant 0 : index
    %56 = vector.load %arg6[%c0_12, %c0_13, %c0_14, %c0_15] : memref<1x8x16x128xf32, #tpu.memory_space<vmem>>, vector<1x8x16x128xf32>
    %57 = vector.shape_cast %56 : vector<1x8x16x128xf32> to vector<8x16x128xf32>
    %58 = vector.shape_cast %55 : vector<8x16x128xf32> to vector<1x8x16x128xf32>
    tpu.vector_store %arg6[%c0_12, %c0_13, %c0_14, %c0_15], %58 {strides = array<i32>} : memref<1x8x16x128xf32, #tpu.memory_space<vmem>>, vector<1x8x16x128xf32>,
    %cst_16 = arith.constant dense<0.000000e+00> : vector<128xf32>
    %59 = vector.multi_reduction <add>, %54, %cst_16 [0] : vector<128x128xf32> to vector<128xf32>
    %60 = vector.shape_cast %59 : vector<128xf32> to vector<1x128xf32>
    %61 = arith.mulf %54, %54 : vector<128x128xf32>
    %cst_17 = arith.constant dense<0.000000e+00> : vector<128xf32>
    %62 = vector.multi_reduction <add>, %61, %cst_17 [0] : vector<128x128xf32> to vector<128xf32>
    %63 = vector.shape_cast %62 : vector<128xf32> to vector<1x128xf32>
    %64 = tpu.concatenate %60, %63 in 0 : vector<1x128xf32>, vector<1x128xf32> -> vector<2x128xf32>
    %c0_18 = arith.constant 0 : index
    %c0_19 = arith.constant 0 : index
    %c0_20 = arith.constant 0 : index
    %c0_21 = arith.constant 0 : index
    %65 = vector.load %arg7[%c0_18, %c0_19, %c0_20, %c0_21] : memref<1x1x2x128xf32, #tpu.memory_space<vmem>>, vector<1x1x2x128xf32>
    %66 = vector.shape_cast %65 : vector<1x1x2x128xf32> to vector<2x128xf32>
    %67 = vector.shape_cast %64 : vector<2x128xf32> to vector<1x1x2x128xf32>
    tpu.vector_store %arg7[%c0_18, %c0_19, %c0_20, %c0_21], %67 {strides = array<i32>} : memref<1x1x2x128xf32, #tpu.memory_space<vmem>>, vector<1x1x2x128xf32>,
    return
  }
  func.func @transform_0(%arg0: i32, %arg1: i32) -> (i32, i32, i32, i32) {
    %c0_i32 = arith.constant 0 : i32
    %c0_i32_0 = arith.constant 0 : i32
    %c0_i32_1 = arith.constant 0 : i32
    %c0_i32_2 = arith.constant 0 : i32
    return %arg0, %c0_i32, %c0_i32_0, %c0_i32_1 : i32, i32, i32, i32
  }
  func.func @transform_1(%arg0: i32, %arg1: i32) -> (i32, i32) {
    %c0_i32 = arith.constant 0 : i32
    %c0_i32_0 = arith.constant 0 : i32
    %c0_i32_1 = arith.constant 0 : i32
    return %c0_i32, %c0_i32_0 : i32, i32
  }
  func.func @transform_2(%arg0: i32, %arg1: i32) -> (i32, i32) {
    %c0_i32 = arith.constant 0 : i32
    %c0_i32_0 = arith.constant 0 : i32
    %c0_i32_1 = arith.constant 0 : i32
    return %c0_i32, %c0_i32_0 : i32, i32
  }
  func.func @transform_3(%arg0: i32, %arg1: i32) -> (i32, i32) {
    %c0_i32 = arith.constant 0 : i32
    %c0_i32_0 = arith.constant 0 : i32
    %c0_i32_1 = arith.constant 0 : i32
    return %c0_i32, %c0_i32_0 : i32, i32
  }
  func.func @transform_4(%arg0: i32, %arg1: i32) -> (i32, i32, i32, i32) {
    %c0_i32 = arith.constant 0 : i32
    %c0_i32_0 = arith.constant 0 : i32
    %c0_i32_1 = arith.constant 0 : i32
    return %arg0, %arg1, %c0_i32, %c0_i32_0 : i32, i32, i32, i32
  }
  func.func @transform_5(%arg0: i32, %arg1: i32) -> (i32, i32, i32, i32) {
    %c0_i32 = arith.constant 0 : i32
    %c0_i32_0 = arith.constant 0 : i32
    %c0_i32_1 = arith.constant 0 : i32
    return %arg0, %arg1, %c0_i32, %c0_i32_0 : i32, i32, i32, i32
  }
}

</mosaic_0001>

<llo_original>
// kernel: double_conv.5
$region0: #{double_conv.5}
  #allocation0 [shape = 'u32[]', space=smem, size = 0x4, offset = 0x4, fixed_abs, tag = 'smem constant byte address 0x4 - core index']
  #allocation1 [shape = 'u32[144,128]{1,0:T(1,128)}', space=vmem, size = 0x12000, scoped, tag = 'internal scratch']
  %s0 = inlined_call_operand.vmem [shape: f32[2,16,16,128], index: 0, kind: input, shape index: {}]
  %s1 = inlined_call_operand.vmem [shape: f32[1,128], index: 1, kind: input, shape index: {}]
  %s2 = inlined_call_operand.vmem [shape: f32[1,128], index: 2, kind: input, shape index: {}]
  %s3 = inlined_call_operand.vmem [shape: f32[2,16,16,128], index: 3, kind: output, shape index: {}]
  %s4 = sld [smem:[#allocation0]]
  $region45: #{double_conv.5} parent=0
    _
  %s6 = ssub.s32 1, %s4
  %s7 = scalar_select 0, %s6, %s4
  loop: start=0, step=1, limit=6
  $region2: #{double_conv.5} parent=0 // loop_pre_header
    _
  $region3: #{double_conv.5} parent=0 // loop_header
    %s9 = sphi 0, %s13
    %p10 = scmp.ge.s32.totalorder %s9, 6
    %s16 = sphi 0, %s28
    %s17 = sphi 0, %s24
    %s18 = sphi 0, %s16
    %s19 = sphi 0, %s17
    %s20 = sphi 0, %s18
    %s21 = sphi 0, %s19
    %s33 = sphi 0, %s35
    %s36 = sphi 0, %s33
    %s37 = sphi 0, %s36
    %s53 = sphi 0, %s37
    %s57 = sphi 0, %s57
    %s59 = sphi 0, %s57
    %s60 = sphi 0, %s59
    %s74 = sphi 0, %s60
    %s78 = sphi 0, %s78
    %s80 = sphi 0, %s78
    %s81 = sphi 0, %s80
    %s95 = sphi 0, %s81
    %s103 = sphi 0, %s105
    %s106 = sphi 0, %s103
    %s107 = sphi 0, %s106
    %s123 = sphi 0, %s107
  $region4: #{double_conv.5} parent=0 // loop_header_branch
    %12 = sbr.rel (%p10) target = $region8
  $region5: #{double_conv.5} parent=0 // loop_body
    %s14 = ssub.s32 %s9, 1
    %s15 = ssub.s32 %s9, 2
    %s22 = sadd.s32 1, %s17
    %p23 = scmp.ge.s32.totalorder %s22, 2
    %s24 = scalar_select %p23, 0, %s22
    %s25 = sadd.s32 1, %s16
    %s26 = scalar_select %p23, %s25, %s16
    %p27 = scmp.ge.s32.totalorder %s26, 2
    %s28 = scalar_select %p27, 0, %s26
    %s29 = ssub.s32 %s16, %s28
    %s30 = ssub.s32 %s17, %s24
    %s31 = sor.u32 %s29, %s30
    %p32 = scmp.eq.s32.totalorder %s31, 0
    %s34 = sadd.s32 %s33, 1
    %s35 = scalar_select %p32, %s33, %s34
    %p38 = pneg %p32
    %p39 = scmp.eq.s32.totalorder %s9, 3
    %p40 = por %p38, %p39
    %p41 = scmp.ne.s32.totalorder %s33, %s36
    %p42 = scmp.eq.s32.totalorder %s9, 0
    %p43 = por %p41, %p42
    %p44 = scmp.ne.s32.totalorder %s33, %s36
    %p45 = scmp.eq.s32.totalorder %s14, 3
    %p46 = por %p44, %p45
    %p47 = scmp.ne.s32.totalorder %s36, %s37
    %p48 = scmp.eq.s32.totalorder %s14, 0
    %p49 = por %p47, %p48
    %p50 = scmp.ne.s32.totalorder %s36, %s37
    %p51 = scmp.eq.s32.totalorder %s15, 3
    %p52 = por %p50, %p51
    %p54 = scmp.ne.s32.totalorder %s37, %s53
    %p55 = scmp.eq.s32.totalorder %s15, 0
    %p56 = por %p54, %p55
    %s58 = sadd.s32 %s57, 1
    %p61 = scmp.eq.s32.totalorder %s9, 3
    %p62 = scmp.ne.s32.totalorder %s57, %s59
    %p63 = scmp.eq.s32.totalorder %s9, 0
    %p64 = por %p62, %p63
    %p65 = scmp.ne.s32.totalorder %s57, %s59
    %p66 = scmp.eq.s32.totalorder %s14, 3
    %p67 = por %p65, %p66
    %p68 = scmp.ne.s32.totalorder %s59, %s60
    %p69 = scmp.eq.s32.totalorder %s14, 0
    %p70 = por %p68, %p69
    %p71 = scmp.ne.s32.totalorder %s59, %s60
    %p72 = scmp.eq.s32.totalorder %s15, 3
    %p73 = por %p71, %p72
    %p75 = scmp.ne.s32.totalorder %s60, %s74
    %p76 = scmp.eq.s32.totalorder %s15, 0
    %p77 = por %p75, %p76
    %s79 = sadd.s32 %s78, 1
    %p82 = scmp.eq.s32.totalorder %s9, 3
    %p83 = scmp.ne.s32.totalorder %s78, %s80
    %p84 = scmp.eq.s32.totalorder %s9, 0
    %p85 = por %p83, %p84
    %p86 = scmp.ne.s32.totalorder %s78, %s80
    %p87 = scmp.eq.s32.totalorder %s14, 3
    %p88 = por %p86, %p87
    %p89 = scmp.ne.s32.totalorder %s80, %s81
    %p90 = scmp.eq.s32.totalorder %s14, 0
    %p91 = por %p89, %p90
    %p92 = scmp.ne.s32.totalorder %s80, %s81
    %p93 = scmp.eq.s32.totalorder %s15, 3
    %p94 = por %p92, %p93
    %p96 = scmp.ne.s32.totalorder %s81, %s95
    %p97 = scmp.eq.s32.totalorder %s15, 0
    %p98 = por %p96, %p97
    %s99 = ssub.s32 %s16, %s28
    %s100 = ssub.s32 %s17, %s24
    %s101 = sor.u32 %s99, %s100
    %p102 = scmp.eq.s32.totalorder %s101, 0
    %s104 = sadd.s32 %s103, 1
    %s105 = scalar_select %p102, %s103, %s104
    %p108 = pneg %p102
    %p109 = scmp.eq.s32.totalorder %s9, 3
    %p110 = por %p108, %p109
    %p111 = scmp.ne.s32.totalorder %s103, %s106
    %p112 = scmp.eq.s32.totalorder %s9, 0
    %p113 = por %p111, %p112
    %p114 = scmp.ne.s32.totalorder %s103, %s106
    %p115 = scmp.eq.s32.totalorder %s14, 3
    %p116 = por %p114, %p115
    %p117 = scmp.ne.s32.totalorder %s106, %s107
    %p118 = scmp.eq.s32.totalorder %s14, 0
    %p119 = por %p117, %p118
    %p120 = scmp.ne.s32.totalorder %s106, %s107
    %p121 = scmp.eq.s32.totalorder %s15, 3
    %p122 = por %p120, %p121
    %p124 = scmp.ne.s32.totalorder %s107, %s123
    %p125 = scmp.eq.s32.totalorder %s15, 0
    %p126 = por %p124, %p125
    %p127 = scmp.le.s32.totalorder 1, %s9
    %p128 = scmp.lt.s32.totalorder %s9, 5
    %p129 = pnand %p127, %p128
    %p130 = pneg %p129
    // Predicated region
    $region9: #{double_conv.5} parent=5 // pred_check
      _
    $region10: #{double_conv.5} parent=5 // pred_check_branch
      %132 = sbr.rel (%p129) target = $region12
    $region11: #{double_conv.5} parent=5 // pred_region
      %s133 = ssub.s32 %s9, 1
      // Predicated region
      $region13: #{double_conv.5} parent=11 // pred_check
        %p134 = pneg %p70
      $region14: #{double_conv.5} parent=11 // pred_check_branch
        %136 = sbr.rel (%p134) target = $region16
      $region15: #{double_conv.5} parent=11 // pred_region
        _
      $region16: #{double_conv.5} parent=11 // pred_fallthru
        _
      // Predicated region
      $region17: #{double_conv.5} parent=11 // pred_check
        %p137 = pneg %p91
      $region18: #{double_conv.5} parent=11 // pred_check_branch
        %139 = sbr.rel (%p137) target = $region20
      $region19: #{double_conv.5} parent=11 // pred_region
        _
      $region20: #{double_conv.5} parent=11 // pred_fallthru
        _
    $region12: #{double_conv.5} parent=5 // pred_fallthru
      _
    %p140 = scmp.lt.s32.totalorder %s9, 4
    // Predicated region
    $region21: #{double_conv.5} parent=5 // pred_check
      %p141 = pneg %p140
    $region22: #{double_conv.5} parent=5 // pred_check_branch
      %143 = sbr.rel (%p141) target = $region24
    $region23: #{double_conv.5} parent=5 // pred_region
      // Predicated region
      $region25: #{double_conv.5} parent=23 // pred_check
        %p144 = pneg %p43
      $region26: #{double_conv.5} parent=23 // pred_check_branch
        %146 = sbr.rel (%p144) target = $region28
      $region27: #{double_conv.5} parent=23 // pred_region
        %s147 = smul.u32 8, %s17
        %p148 = scmp.lt.s32.totalorder %s16, 1
        %s149 = scalar_select %p148, %s16, 1
        %p150 = scmp.lt.s32.totalorder %s147, 15
        %s151 = scalar_select %p150, %s147, 15
        %s152 = smul.addr %s151, 2
        %s153 = smul.addr %s149, 32
        %s154 = sadd.s32 %s152, %s153
        %s155 = smul.addr %s154, 8
        %s156 = scalar_lea.vmem %s0, %s155
        %s157 = smul.u32 8, %s17
      $region28: #{double_conv.5} parent=23 // pred_fallthru
        _
    $region24: #{double_conv.5} parent=5 // pred_fallthru
      _
    %p158 = scmp.le.s32.totalorder 1, %s9
    %p159 = scmp.lt.s32.totalorder %s9, 5
    %p160 = pnand %p158, %p159
    %p161 = pneg %p160
    // Predicated region
    $region29: #{double_conv.5} parent=5 // pred_check
      _
    $region30: #{double_conv.5} parent=5 // pred_check_branch
      %163 = sbr.rel (%p160) target = $region32
    $region31: #{double_conv.5} parent=5 // pred_region
      %s164 = ssub.s32 %s9, 1
      %s165 = smul.u32 8, %s19
      %p166 = scmp.lt.s32.totalorder %s18, 1
      %s167 = scalar_select %p166, %s18, 1
      %p168 = scmp.lt.s32.totalorder %s165, 15
      %s169 = scalar_select %p168, %s165, 15
      %s170 = smul.addr %s169, 2
      %s171 = smul.addr %s167, 32
      %s172 = sadd.s32 %s170, %s171
      %s173 = smul.addr %s172, 8
      %s174 = scalar_lea.vmem %s0, %s173
      %p175 = pneg %p49
      %p176 = pneg %p46
      %p177 = pneg %p70
      %p178 = pneg %p67
      %p179 = pneg %p91
      %p180 = pneg %p88
      %p181 = pneg %p119
      %p182 = pneg %p116
      %s183 = smul.u32 8, %s19
      %p184 = scmp.lt.s32.totalorder %s18, 1
      %s185 = scalar_select %p184, %s18, 1
      %p186 = scmp.lt.s32.totalorder %s183, 15
      %s187 = scalar_select %p186, %s183, 15
      %s188 = smul.addr %s187, 2
      %s189 = smul.addr %s185, 32
      %s190 = sadd.s32 %s188, %s189
      %s191 = smul.addr %s190, 8
      %s192 = scalar_lea.vmem %s3, %s191
      %s193 = smul.u32 8, %s19
      %p194 = scmp.lt.s32.totalorder %s18, 1
      %s195 = scalar_select %p194, %s18, 1
      %p196 = scmp.lt.s32.totalorder %s193, 15
      %s197 = scalar_select %p196, %s193, 15
      %s198 = smul.addr %s197, 2
      %s199 = smul.addr %s195, 32
      %s200 = sadd.s32 %s198, %s199
      %s201 = smul.addr %s200, 8
      %s202 = scalar_lea.vmem %s0, %s201
      %s203 = smul.u32 8, %s19
      %s204 = smul.u32 8, %s19
      %p205 = scmp.lt.s32.totalorder %s18, 1
      %s206 = scalar_select %p205, %s18, 1
      %p207 = scmp.lt.s32.totalorder %s204, 15
      %s208 = scalar_select %p207, %s204, 15
      %s209 = smul.addr %s208, 2
      %s210 = smul.addr %s206, 32
      %s211 = sadd.s32 %s209, %s210
      %s212 = smul.addr %s211, 8
      %s213 = scalar_lea.vmem %s3, %s212
      %s214 = smul.u32 8, %s19
      %v215 = vld [vmem:[%s202] sm:$0xff]
      %v216 = vld [vmem:[%s202 + $0x8] sm:$0xff]
      %v217 = vld [vmem:[%s202 + $0x10] sm:$0xff]
      %v218 = vld [vmem:[%s202 + $0x18] sm:$0xff]
      %v219 = vld [vmem:[%s202 + $0x20] sm:$0xff]
      %v220 = vld [vmem:[%s202 + $0x28] sm:$0xff]
      %v221 = vld [vmem:[%s202 + $0x30] sm:$0xff]
      %v222 = vld [vmem:[%s202 + $0x38] sm:$0xff]
      %v223 = vld [vmem:[%s202 + $0x40] sm:$0xff]
      %v224 = vld [vmem:[%s202 + $0x48] sm:$0xff]
      %v225 = vld [vmem:[%s202 + $0x50] sm:$0xff]
      %v226 = vld [vmem:[%s202 + $0x58] sm:$0xff]
      %v227 = vld [vmem:[%s202 + $0x60] sm:$0xff]
      %v228 = vld [vmem:[%s202 + $0x68] sm:$0xff]
      %v229 = vld [vmem:[%s202 + $0x70] sm:$0xff]
      %v230 = vld [vmem:[%s202 + $0x78] sm:$0xff]
      %v231 = vld [vmem:[%s1] sm:$0x1]
      %v233 = vlaneseq
      %v234 = vshrl.u32 %v233, 7
      %v235 = vsub.s32 0, %v234
      %v236 = vrot.slane %v231, %v235
      %v238 = vmul.f32 %v215, %v236
      %v239 = vmul.f32 %v216, %v236
      %v240 = vmul.f32 %v217, %v236
      %v241 = vmul.f32 %v218, %v236
      %v242 = vmul.f32 %v219, %v236
      %v243 = vmul.f32 %v220, %v236
      %v244 = vmul.f32 %v221, %v236
      %v245 = vmul.f32 %v222, %v236
      %v246 = vmul.f32 %v223, %v236
      %v247 = vmul.f32 %v224, %v236
      %v248 = vmul.f32 %v225, %v236
      %v249 = vmul.f32 %v226, %v236
      %v250 = vmul.f32 %v227, %v236
      %v251 = vmul.f32 %v228, %v236
      %v252 = vmul.f32 %v229, %v236
      %v253 = vmul.f32 %v230, %v236
      %v254 = vld [vmem:[%s2] sm:$0x1]
      %v256 = vlaneseq
      %v257 = vshrl.u32 %v256, 7
      %v258 = vsub.s32 0, %v257
      %v259 = vrot.slane %v254, %v258
      %v261 = vadd.f32 %v238, %v259
      %v262 = vadd.f32 %v239, %v259
      %v263 = vadd.f32 %v240, %v259
      %v264 = vadd.f32 %v241, %v259
      %v265 = vadd.f32 %v242, %v259
      %v266 = vadd.f32 %v243, %v259
      %v267 = vadd.f32 %v244, %v259
      %v268 = vadd.f32 %v245, %v259
      %v269 = vadd.f32 %v246, %v259
      %v270 = vadd.f32 %v247, %v259
      %v271 = vadd.f32 %v248, %v259
      %v272 = vadd.f32 %v249, %v259
      %v273 = vadd.f32 %v250, %v259
      %v274 = vadd.f32 %v251, %v259
      %v275 = vadd.f32 %v252, %v259
      %v276 = vadd.f32 %v253, %v259
      %v277 = vmax.f32 %v261, 0.0
      %v278 = vmax.f32 %v262, 0.0
      %v279 = vmax.f32 %v263, 0.0
      %v280 = vmax.f32 %v264, 0.0
      %v281 = vmax.f32 %v265, 0.0
      %v282 = vmax.f32 %v266, 0.0
      %v283 = vmax.f32 %v267, 0.0
      %v284 = vmax.f32 %v268, 0.0
      %v285 = vmax.f32 %v269, 0.0
      %v286 = vmax.f32 %v270, 0.0
      %v287 = vmax.f32 %v271, 0.0
      %v288 = vmax.f32 %v272, 0.0
      %v289 = vmax.f32 %v273, 0.0
      %v290 = vmax.f32 %v274, 0.0
      %v291 = vmax.f32 %v275, 0.0
      %v292 = vmax.f32 %v276, 0.0
      %293 = vst [vmem:[%s213] sm:$0xff] %v277
      %294 = vst [vmem:[%s213 + $0x8] sm:$0xff] %v278
      %295 = vst [vmem:[%s213 + $0x10] sm:$0xff] %v279
      %296 = vst [vmem:[%s213 + $0x18] sm:$0xff] %v280
      %297 = vst [vmem:[%s213 + $0x20] sm:$0xff] %v281
      %298 = vst [vmem:[%s213 + $0x28] sm:$0xff] %v282
      %299 = vst [vmem:[%s213 + $0x30] sm:$0xff] %v283
      %300 = vst [vmem:[%s213 + $0x38] sm:$0xff] %v284
      %301 = vst [vmem:[%s213 + $0x40] sm:$0xff] %v285
      %302 = vst [vmem:[%s213 + $0x48] sm:$0xff] %v286
      %303 = vst [vmem:[%s213 + $0x50] sm:$0xff] %v287
      %304 = vst [vmem:[%s213 + $0x58] sm:$0xff] %v288
      %305 = vst [vmem:[%s213 + $0x60] sm:$0xff] %v289
      %306 = vst [vmem:[%s213 + $0x68] sm:$0xff] %v290
      %307 = vst [vmem:[%s213 + $0x70] sm:$0xff] %v291
      %308 = vst [vmem:[%s213 + $0x78] sm:$0xff] %v292
      %s309 = smul.u32 8, %s19
      %p310 = scmp.lt.s32.totalorder %s18, 1
      %s311 = scalar_select %p310, %s18, 1
      %p312 = scmp.lt.s32.totalorder %s309, 15
      %s313 = scalar_select %p312, %s309, 15
      %s314 = smul.addr %s313, 2
      %s315 = smul.addr %s311, 32
      %s316 = sadd.s32 %s314, %s315
      %s317 = smul.addr %s316, 8
      %s318 = scalar_lea.vmem %s3, %s317
      // Predicated region
      $region33: #{double_conv.5} parent=31 // pred_check
        %p319 = pneg %p116
      $region34: #{double_conv.5} parent=31 // pred_check_branch
        %321 = sbr.rel (%p319) target = $region36
      $region35: #{double_conv.5} parent=31 // pred_region
        %s322 = smul.u32 8, %s19
      $region36: #{double_conv.5} parent=31 // pred_fallthru
        _
    $region32: #{double_conv.5} parent=5 // pred_fallthru
      _
    %p323 = scmp.le.s32.totalorder 2, %s9
    // Predicated region
    $region37: #{double_conv.5} parent=5 // pred_check
      %p324 = pneg %p323
    $region38: #{double_conv.5} parent=5 // pred_check_branch
      %326 = sbr.rel (%p324) target = $region40
    $region39: #{double_conv.5} parent=5 // pred_region
      %s327 = ssub.s32 %s9, 2
      // Predicated region
      $region41: #{double_conv.5} parent=39 // pred_check
        %p328 = pneg %p122
      $region42: #{double_conv.5} parent=39 // pred_check_branch
        %330 = sbr.rel (%p328) target = $region44
      $region43: #{double_conv.5} parent=39 // pred_region
        %s331 = smul.u32 8, %s21
        %p332 = scmp.lt.s32.totalorder %s20, 1
        %s333 = scalar_select %p332, %s20, 1
        %p334 = scmp.lt.s32.totalorder %s331, 15
        %s335 = scalar_select %p334, %s331, 15
        %s336 = smul.addr %s335, 2
        %s337 = smul.addr %s333, 32
        %s338 = sadd.s32 %s336, %s337
        %s339 = smul.addr %s338, 8
        %s340 = scalar_lea.vmem %s3, %s339
      $region44: #{double_conv.5} parent=39 // pred_fallthru
        _
    $region40: #{double_conv.5} parent=5 // pred_fallthru
      _
  $region6: #{double_conv.5} parent=0 // loop_footer
    %s13 = sadd.s32 1, %s9
  $region7: #{double_conv.5} parent=0 // loop_footer_branch
    %8 = sbr.rel target = $region3
  $region8: #{double_conv.5} parent=0 // loop_exit
    _

// kernel: double_conv.3
$region0: #{double_conv.3}
  #allocation0 [shape = 'u32[]', space=smem, size = 0x4, offset = 0x4, fixed_abs, tag = 'smem constant byte address 0x4 - core index']
  #allocation1 [shape = 'u32[144,128]{1,0:T(1,128)}', space=vmem, size = 0x12000, scoped, tag = 'internal scratch']
  %s0 = inlined_call_operand.vmem [shape: f32[2,18,18,128], index: 0, kind: input, shape index: {}]
  %s1 = inlined_call_operand.vmem [shape: f32[1152,128], index: 1, kind: input, shape index: {}]
  %s2 = inlined_call_operand.vmem [shape: f32[1,128], index: 2, kind: input, shape index: {}]
  %s3 = inlined_call_operand.vmem [shape: f32[1,128], index: 3, kind: input, shape index: {}]
  %s4 = inlined_call_operand.vmem [shape: f32[2,16,16,128], index: 4, kind: output, shape index: {0}]
  %s5 = inlined_call_operand.vmem [shape: f32[2,2,2,128], index: 5, kind: output, shape index: {1}]
  %6 = xla_tuple %s4, %s5
  %s7 = sld [smem:[#allocation0]]
  $region57: #{double_conv.3} parent=0
    _
  %s9 = ssub.s32 1, %s7
  %s10 = scalar_select 0, %s9, %s7
  loop: start=0, step=1, limit=6
  $region2: #{double_conv.3} parent=0 // loop_pre_header
    _
  $region3: #{double_conv.3} parent=0 // loop_header
    %s12 = sphi 0, %s16
    %p13 = scmp.ge.s32.totalorder %s12, 6
    %s19 = sphi 0, %s31
    %s20 = sphi 0, %s27
    %s21 = sphi 0, %s19
    %s22 = sphi 0, %s20
    %s23 = sphi 0, %s21
    %s24 = sphi 0, %s22
    %s34 = sphi 0, %s36
    %s37 = sphi 0, %s34
    %s38 = sphi 0, %s37
    %s54 = sphi 0, %s38
    %s58 = sphi 0, %s58
    %s60 = sphi 0, %s58
    %s61 = sphi 0, %s60
    %s75 = sphi 0, %s61
    %s79 = sphi 0, %s79
    %s81 = sphi 0, %s79
    %s82 = sphi 0, %s81
    %s96 = sphi 0, %s82
    %s100 = sphi 0, %s100
    %s102 = sphi 0, %s100
    %s103 = sphi 0, %s102
    %s117 = sphi 0, %s103
    %s125 = sphi 0, %s127
    %s128 = sphi 0, %s125
    %s129 = sphi 0, %s128
    %s145 = sphi 0, %s129
    %s153 = sphi 0, %s155
    %s156 = sphi 0, %s153
    %s157 = sphi 0, %s156
    %s173 = sphi 0, %s157
  $region4: #{double_conv.3} parent=0 // loop_header_branch
    %15 = sbr.rel (%p13) target = $region8
  $region5: #{double_conv.3} parent=0 // loop_body
    %s17 = ssub.s32 %s12, 1
    %s18 = ssub.s32 %s12, 2
    %s25 = sadd.s32 1, %s20
    %p26 = scmp.ge.s32.totalorder %s25, 2
    %s27 = scalar_select %p26, 0, %s25
    %s28 = sadd.s32 1, %s19
    %s29 = scalar_select %p26, %s28, %s19
    %p30 = scmp.ge.s32.totalorder %s29, 2
    %s31 = scalar_select %p30, 0, %s29
    %s32 = ssub.s32 %s19, %s31
    %p33 = scmp.eq.s32.totalorder %s32, 0
    %s35 = sadd.s32 %s34, 1
    %s36 = scalar_select %p33, %s34, %s35
    %p39 = pneg %p33
    %p40 = scmp.eq.s32.totalorder %s12, 3
    %p41 = por %p39, %p40
    %p42 = scmp.ne.s32.totalorder %s34, %s37
    %p43 = scmp.eq.s32.totalorder %s12, 0
    %p44 = por %p42, %p43
    %p45 = scmp.ne.s32.totalorder %s34, %s37
    %p46 = scmp.eq.s32.totalorder %s17, 3
    %p47 = por %p45, %p46
    %p48 = scmp.ne.s32.totalorder %s37, %s38
    %p49 = scmp.eq.s32.totalorder %s17, 0
    %p50 = por %p48, %p49
    %p51 = scmp.ne.s32.totalorder %s37, %s38
    %p52 = scmp.eq.s32.totalorder %s18, 3
    %p53 = por %p51, %p52
    %p55 = scmp.ne.s32.totalorder %s38, %s54
    %p56 = scmp.eq.s32.totalorder %s18, 0
    %p57 = por %p55, %p56
    %s59 = sadd.s32 %s58, 1
    %p62 = scmp.eq.s32.totalorder %s12, 3
    %p63 = scmp.ne.s32.totalorder %s58, %s60
    %p64 = scmp.eq.s32.totalorder %s12, 0
    %p65 = por %p63, %p64
    %p66 = scmp.ne.s32.totalorder %s58, %s60
    %p67 = scmp.eq.s32.totalorder %s17, 3
    %p68 = por %p66, %p67
    %p69 = scmp.ne.s32.totalorder %s60, %s61
    %p70 = scmp.eq.s32.totalorder %s17, 0
    %p71 = por %p69, %p70
    %p72 = scmp.ne.s32.totalorder %s60, %s61
    %p73 = scmp.eq.s32.totalorder %s18, 3
    %p74 = por %p72, %p73
    %p76 = scmp.ne.s32.totalorder %s61, %s75
    %p77 = scmp.eq.s32.totalorder %s18, 0
    %p78 = por %p76, %p77
    %s80 = sadd.s32 %s79, 1
    %p83 = scmp.eq.s32.totalorder %s12, 3
    %p84 = scmp.ne.s32.totalorder %s79, %s81
    %p85 = scmp.eq.s32.totalorder %s12, 0
    %p86 = por %p84, %p85
    %p87 = scmp.ne.s32.totalorder %s79, %s81
    %p88 = scmp.eq.s32.totalorder %s17, 3
    %p89 = por %p87, %p88
    %p90 = scmp.ne.s32.totalorder %s81, %s82
    %p91 = scmp.eq.s32.totalorder %s17, 0
    %p92 = por %p90, %p91
    %p93 = scmp.ne.s32.totalorder %s81, %s82
    %p94 = scmp.eq.s32.totalorder %s18, 3
    %p95 = por %p93, %p94
    %p97 = scmp.ne.s32.totalorder %s82, %s96
    %p98 = scmp.eq.s32.totalorder %s18, 0
    %p99 = por %p97, %p98
    %s101 = sadd.s32 %s100, 1
    %p104 = scmp.eq.s32.totalorder %s12, 3
    %p105 = scmp.ne.s32.totalorder %s100, %s102
    %p106 = scmp.eq.s32.totalorder %s12, 0
    %p107 = por %p105, %p106
    %p108 = scmp.ne.s32.totalorder %s100, %s102
    %p109 = scmp.eq.s32.totalorder %s17, 3
    %p110 = por %p108, %p109
    %p111 = scmp.ne.s32.totalorder %s102, %s103
    %p112 = scmp.eq.s32.totalorder %s17, 0
    %p113 = por %p111, %p112
    %p114 = scmp.ne.s32.totalorder %s102, %s103
    %p115 = scmp.eq.s32.totalorder %s18, 3
    %p116 = por %p114, %p115
    %p118 = scmp.ne.s32.totalorder %s103, %s117
    %p119 = scmp.eq.s32.totalorder %s18, 0
    %p120 = por %p118, %p119
    %s121 = ssub.s32 %s19, %s31
    %s122 = ssub.s32 %s20, %s27
    %s123 = sor.u32 %s121, %s122
    %p124 = scmp.eq.s32.totalorder %s123, 0
    %s126 = sadd.s32 %s125, 1
    %s127 = scalar_select %p124, %s125, %s126
    %p130 = pneg %p124
    %p131 = scmp.eq.s32.totalorder %s12, 3
    %p132 = por %p130, %p131
    %p133 = scmp.ne.s32.totalorder %s125, %s128
    %p134 = scmp.eq.s32.totalorder %s12, 0
    %p135 = por %p133, %p134
    %p136 = scmp.ne.s32.totalorder %s125, %s128
    %p137 = scmp.eq.s32.totalorder %s17, 3
    %p138 = por %p136, %p137
    %p139 = scmp.ne.s32.totalorder %s128, %s129
    %p140 = scmp.eq.s32.totalorder %s17, 0
    %p141 = por %p139, %p140
    %p142 = scmp.ne.s32.totalorder %s128, %s129
    %p143 = scmp.eq.s32.totalorder %s18, 3
    %p144 = por %p142, %p143
    %p146 = scmp.ne.s32.totalorder %s129, %s145
    %p147 = scmp.eq.s32.totalorder %s18, 0
    %p148 = por %p146, %p147
    %s149 = ssub.s32 %s19, %s31
    %s150 = ssub.s32 %s20, %s27
    %s151 = sor.u32 %s149, %s150
    %p152 = scmp.eq.s32.totalorder %s151, 0
    %s154 = sadd.s32 %s153, 1
    %s155 = scalar_select %p152, %s153, %s154
    %p158 = pneg %p152
    %p159 = scmp.eq.s32.totalorder %s12, 3
    %p160 = por %p158, %p159
    %p161 = scmp.ne.s32.totalorder %s153, %s156
    %p162 = scmp.eq.s32.totalorder %s12, 0
    %p163 = por %p161, %p162
    %p164 = scmp.ne.s32.totalorder %s153, %s156
    %p165 = scmp.eq.s32.totalorder %s17, 3
    %p166 = por %p164, %p165
    %p167 = scmp.ne.s32.totalorder %s156, %s157
    %p168 = scmp.eq.s32.totalorder %s17, 0
    %p169 = por %p167, %p168
    %p170 = scmp.ne.s32.totalorder %s156, %s157
    %p171 = scmp.eq.s32.totalorder %s18, 3
    %p172 = por %p170, %p171
    %p174 = scmp.ne.s32.totalorder %s157, %s173
    %p175 = scmp.eq.s32.totalorder %s18, 0
    %p176 = por %p174, %p175
    %p177 = scmp.le.s32.totalorder 1, %s12
    %p178 = scmp.lt.s32.totalorder %s12, 5
    %p179 = pnand %p177, %p178
    %p180 = pneg %p179
    // Predicated region
    $region9: #{double_conv.3} parent=5 // pred_check
      _
    $region10: #{double_conv.3} parent=5 // pred_check_branch
      %182 = sbr.rel (%p179) target = $region12
    $region11: #{double_conv.3} parent=5 // pred_region
      %s183 = ssub.s32 %s12, 1
      // Predicated region
      $region13: #{double_conv.3} parent=11 // pred_check
        %p184 = pneg %p71
      $region14: #{double_conv.3} parent=11 // pred_check_branch
        %186 = sbr.rel (%p184) target = $region16
      $region15: #{double_conv.3} parent=11 // pred_region
        _
      $region16: #{double_conv.3} parent=11 // pred_fallthru
        _
      // Predicated region
      $region17: #{double_conv.3} parent=11 // pred_check
        %p187 = pneg %p92
      $region18: #{double_conv.3} parent=11 // pred_check_branch
        %189 = sbr.rel (%p187) target = $region20
      $region19: #{double_conv.3} parent=11 // pred_region
        _
      $region20: #{double_conv.3} parent=11 // pred_fallthru
        _
      // Predicated region
      $region21: #{double_conv.3} parent=11 // pred_check
        %p190 = pneg %p113
      $region22: #{double_conv.3} parent=11 // pred_check_branch
        %192 = sbr.rel (%p190) target = $region24
      $region23: #{double_conv.3} parent=11 // pred_region
        _
      $region24: #{double_conv.3} parent=11 // pred_fallthru
        _
    $region12: #{double_conv.3} parent=5 // pred_fallthru
      _
    %p193 = scmp.lt.s32.totalorder %s12, 4
    // Predicated region
    $region25: #{double_conv.3} parent=5 // pred_check
      %p194 = pneg %p193
    $region26: #{double_conv.3} parent=5 // pred_check_branch
      %196 = sbr.rel (%p194) target = $region28
    $region27: #{double_conv.3} parent=5 // pred_region
      // Predicated region
      $region29: #{double_conv.3} parent=27 // pred_check
        %p197 = pneg %p44
      $region30: #{double_conv.3} parent=27 // pred_check_branch
        %199 = sbr.rel (%p197) target = $region32
      $region31: #{double_conv.3} parent=27 // pred_region
        %p200 = scmp.lt.s32.totalorder %s19, 1
        %s201 = scalar_select %p200, %s19, 1
        %s202 = smul.addr %s201, 54
        %s203 = smul.addr %s202, 8
        %s204 = scalar_lea.vmem %s0, %s203
      $region32: #{double_conv.3} parent=27 // pred_fallthru
        _
    $region28: #{double_conv.3} parent=5 // pred_fallthru
      _
    %p205 = scmp.le.s32.totalorder 1, %s12
    %p206 = scmp.lt.s32.totalorder %s12, 5
    %p207 = pnand %p205, %p206
    %p208 = pneg %p207
    // Predicated region
    $region33: #{double_conv.3} parent=5 // pred_check
      _
    $region34: #{double_conv.3} parent=5 // pred_check_branch
      %210 = sbr.rel (%p207) target = $region36
    $region35: #{double_conv.3} parent=5 // pred_region
      %s211 = ssub.s32 %s12, 1
      %p212 = scmp.lt.s32.totalorder %s21, 1
      %s213 = scalar_select %p212, %s21, 1
      %s214 = smul.addr %s213, 54
      %s215 = smul.addr %s214, 8
      %s216 = scalar_lea.vmem %s0, %s215
      %p217 = pneg %p50
      %p218 = pneg %p47
      %p219 = pneg %p71
      %p220 = pneg %p68
      %p221 = pneg %p92
      %p222 = pneg %p89
      %p223 = pneg %p113
      %p224 = pneg %p110
      %p225 = pneg %p141
      %p226 = pneg %p138
      %s227 = smul.u32 8, %s22
      %p228 = scmp.lt.s32.totalorder %s21, 1
      %s229 = scalar_select %p228, %s21, 1
      %p230 = scmp.lt.s32.totalorder %s227, 15
      %s231 = scalar_select %p230, %s227, 15
      %s232 = smul.addr %s231, 2
      %s233 = smul.addr %s229, 32
      %s234 = sadd.s32 %s232, %s233
      %s235 = smul.addr %s234, 8
      %s236 = scalar_lea.vmem %s4, %s235
      %p237 = pneg %p169
      %p238 = pneg %p166
      %p239 = scmp.lt.s32.totalorder %s21, 1
      %s240 = scalar_select %p239, %s21, 1
      %p241 = scmp.lt.s32.totalorder %s22, 1
      %s242 = scalar_select %p241, %s22, 1
      %s243 = smul.addr %s240, 2
      %s244 = sadd.s32 %s242, %s243
      %s245 = smul.addr %s244, 2
      %s246 = scalar_lea.vmem %s5, %s245
      %p247 = scmp.lt.s32.totalorder %s21, 1
      %s248 = scalar_select %p247, %s21, 1
      %s249 = smul.addr %s248, 54
      %s250 = smul.addr %s249, 8
      %s251 = scalar_lea.vmem %s0, %s250
      %s252 = smul.u32 8, %s22
      %p253 = scmp.lt.s32.totalorder %s21, 1
      %s254 = scalar_select %p253, %s21, 1
      %p255 = scmp.lt.s32.totalorder %s252, 15
      %s256 = scalar_select %p255, %s252, 15
      %s257 = smul.addr %s256, 2
      %s258 = smul.addr %s254, 32
      %s259 = sadd.s32 %s257, %s258
      %s260 = smul.addr %s259, 8
      %s261 = scalar_lea.vmem %s4, %s260
      %s262 = smul.u32 8, %s22
      %p263 = scmp.lt.s32.totalorder %s21, 1
      %s264 = scalar_select %p263, %s21, 1
      %p265 = scmp.lt.s32.totalorder %s22, 1
      %s266 = scalar_select %p265, %s22, 1
      %s267 = smul.addr %s264, 2
      %s268 = sadd.s32 %s266, %s267
      %s269 = smul.addr %s268, 2
      %s270 = scalar_lea.vmem %s5, %s269
      %s271 = smul.u32 %s22, 8
      %s272 = smul.u32 %s271, 24
      %s273 = scalar_lea.vmem %s251, %s272
      %v274 = vld [vmem:[%s273] sm:$0xff]
      %v275 = vld [vmem:[%s273 + $0x8] sm:$0xff]
      %v276 = vld [vmem:[%s273 + $0x10] sm:$0x3]
      %v277 = vld [vmem:[%s273 + $0x18] sm:$0xff]
      %v278 = vld [vmem:[%s273 + $0x20] sm:$0xff]
      %v279 = vld [vmem:[%s273 + $0x28] sm:$0x3]
      %v280 = vld [vmem:[%s273 + $0x30] sm:$0xff]
      %v281 = vld [vmem:[%s273 + $0x38] sm:$0xff]
      %v282 = vld [vmem:[%s273 + $0x40] sm:$0x3]
      %v283 = vld [vmem:[%s273 + $0x48] sm:$0xff]
      %v284 = vld [vmem:[%s273 + $0x50] sm:$0xff]
      %v285 = vld [vmem:[%s273 + $0x58] sm:$0x3]
      %v286 = vld [vmem:[%s273 + $0x60] sm:$0xff]
      %v287 = vld [vmem:[%s273 + $0x68] sm:$0xff]
      %v288 = vld [vmem:[%s273 + $0x70] sm:$0x3]
      %v289 = vld [vmem:[%s273 + $0x78] sm:$0xff]
      %v290 = vld [vmem:[%s273 + $0x80] sm:$0xff]
      %v291 = vld [vmem:[%s273 + $0x88] sm:$0x3]
      %v292 = vld [vmem:[%s273 + $0x90] sm:$0xff]
      %v293 = vld [vmem:[%s273 + $0x98] sm:$0xff]
      %v294 = vld [vmem:[%s273 + $0xa0] sm:$0x3]
      %v295 = vld [vmem:[%s273 + $0xa8] sm:$0xff]
      %v296 = vld [vmem:[%s273 + $0xb0] sm:$0xff]
      %v297 = vld [vmem:[%s273 + $0xb8] sm:$0x3]
      %v298 = vld [vmem:[%s273 + $0xc0] sm:$0xff]
      %v299 = vld [vmem:[%s273 + $0xc8] sm:$0xff]
      %v300 = vld [vmem:[%s273 + $0xd0] sm:$0x3]
      %v301 = vld [vmem:[%s273 + $0xd8] sm:$0xff]
      %v302 = vld [vmem:[%s273 + $0xe0] sm:$0xff]
      %v303 = vld [vmem:[%s273 + $0xe8] sm:$0x3]
      %vm328 = vcmask 1046528
      %v329 = vrot.slane %v274, 1
      %v330 = vrot.slane %v275, 1
      %v331 = vsel %vm328, %v329, %v330
      %v332 = vrot.slane %v276, 1
      %v333 = vsel %vm328, %v330, %v332
      %v334 = vrot.slane %v277, 1
      %v335 = vrot.slane %v278, 1
      %v336 = vsel %vm328, %v334, %v335
      %v337 = vrot.slane %v279, 1
      %v338 = vsel %vm328, %v335, %v337
      %v339 = vrot.slane %v280, 1
      %v340 = vrot.slane %v281, 1
      %v341 = vsel %vm328, %v339, %v340
      %v342 = vrot.slane %v282, 1
      %v343 = vsel %vm328, %v340, %v342
      %v344 = vrot.slane %v283, 1
      %v345 = vrot.slane %v284, 1
      %v346 = vsel %vm328, %v344, %v345
      %v347 = vrot.slane %v285, 1
      %v348 = vsel %vm328, %v345, %v347
      %v349 = vrot.slane %v286, 1
      %v350 = vrot.slane %v287, 1
      %v351 = vsel %vm328, %v349, %v350
      %v352 = vrot.slane %v288, 1
      %v353 = vsel %vm328, %v350, %v352
      %v354 = vrot.slane %v289, 1
      %v355 = vrot.slane %v290, 1
      %v356 = vsel %vm328, %v354, %v355
      %v357 = vrot.slane %v291, 1
      %v358 = vsel %vm328, %v355, %v357
      %v359 = vrot.slane %v292, 1
      %v360 = vrot.slane %v293, 1
      %v361 = vsel %vm328, %v359, %v360
      %v362 = vrot.slane %v294, 1
      %v363 = vsel %vm328, %v360, %v362
      %v364 = vrot.slane %v295, 1
      %v365 = vrot.slane %v296, 1
      %v366 = vsel %vm328, %v364, %v365
      %v367 = vrot.slane %v297, 1
      %v368 = vsel %vm328, %v365, %v367
      %vm385 = vcmask 1045504
      %v386 = vrot.slane %v274, 2
      %v387 = vrot.slane %v275, 2
      %v388 = vsel %vm385, %v386, %v387
      %v389 = vrot.slane %v276, 2
      %v390 = vsel %vm385, %v387, %v389
      %v391 = vrot.slane %v277, 2
      %v392 = vrot.slane %v278, 2
      %v393 = vsel %vm385, %v391, %v392
      %v394 = vrot.slane %v279, 2
      %v395 = vsel %vm385, %v392, %v394
      %v396 = vrot.slane %v280, 2
      %v397 = vrot.slane %v281, 2
      %v398 = vsel %vm385, %v396, %v397
      %v399 = vrot.slane %v282, 2
      %v400 = vsel %vm385, %v397, %v399
      %v401 = vrot.slane %v283, 2
      %v402 = vrot.slane %v284, 2
      %v403 = vsel %vm385, %v401, %v402
      %v404 = vrot.slane %v285, 2
      %v405 = vsel %vm385, %v402, %v404
      %v406 = vrot.slane %v286, 2
      %v407 = vrot.slane %v287, 2
      %v408 = vsel %vm385, %v406, %v407
      %v409 = vrot.slane %v288, 2
      %v410 = vsel %vm385, %v407, %v409
      %v411 = vrot.slane %v289, 2
      %v412 = vrot.slane %v290, 2
      %v413 = vsel %vm385, %v411, %v412
      %v414 = vrot.slane %v291, 2
      %v415 = vsel %vm385, %v412, %v414
      %v416 = vrot.slane %v292, 2
      %v417 = vrot.slane %v293, 2
      %v418 = vsel %vm385, %v416, %v417
      %v419 = vrot.slane %v294, 2
      %v420 = vsel %vm385, %v417, %v419
      %v421 = vrot.slane %v295, 2
      %v422 = vrot.slane %v296, 2
      %v423 = vsel %vm385, %v421, %v422
      %v424 = vrot.slane %v297, 2
      %v425 = vsel %vm385, %v422, %v424
      %v445 = vrot.slane %v298, 1
      %v446 = vrot.slane %v299, 1
      %v447 = vsel %vm328, %v445, %v446
      %v448 = vrot.slane %v300, 1
      %v449 = vsel %vm328, %v446, %v448
      %v452 = vrot.slane %v298, 2
      %v453 = vrot.slane %v299, 2
      %v454 = vsel %vm385, %v452, %v453
      %v455 = vrot.slane %v300, 2
      %v456 = vsel %vm385, %v453, %v455
      %v462 = vrot.slane %v301, 1
      %v463 = vrot.slane %v302, 1
      %v464 = vsel %vm328, %v462, %v463
      %v465 = vrot.slane %v303, 1
      %v466 = vsel %vm328, %v463, %v465
      %v469 = vrot.slane %v301, 2
      %v470 = vrot.slane %v302, 2
      %v471 = vsel %vm385, %v469, %v470
      %v472 = vrot.slane %v303, 2
      %v473 = vsel %vm385, %v470, %v472
      %v476 = vld [vmem:[%s1] sm:$0xff]
      %v477 = vld [vmem:[%s1 + $0x8] sm:$0xff]
      %v478 = vld [vmem:[%s1 + $0x10] sm:$0xff]
      %v479 = vld [vmem:[%s1 + $0x18] sm:$0xff]
      %v480 = vld [vmem:[%s1 + $0x20] sm:$0xff]
      %v481 = vld [vmem:[%s1 + $0x28] sm:$0xff]
      %v482 = vld [vmem:[%s1 + $0x30] sm:$0xff]
      %v483 = vld [vmem:[%s1 + $0x38] sm:$0xff]
      %v484 = vld [vmem:[%s1 + $0x40] sm:$0xff]
      %v485 = vld [vmem:[%s1 + $0x48] sm:$0xff]
      %v486 = vld [vmem:[%s1 + $0x50] sm:$0xff]
      %v487 = vld [vmem:[%s1 + $0x58] sm:$0xff]
      %v488 = vld [vmem:[%s1 + $0x60] sm:$0xff]
      %v489 = vld [vmem:[%s1 + $0x68] sm:$0xff]
      %v490 = vld [vmem:[%s1 + $0x70] sm:$0xff]
      %v491 = vld [vmem:[%s1 + $0x78] sm:$0xff]
      %v492 = vld [vmem:[%s1 + $0x80] sm:$0xff]
      %v493 = vld [vmem:[%s1 + $0x88] sm:$0xff]
      %v494 = vld [vmem:[%s1 + $0x90] sm:$0xff]
      %v495 = vld [vmem:[%s1 + $0x98] sm:$0xff]
      %v496 = vld [vmem:[%s1 + $0xa0] sm:$0xff]
      %v497 = vld [vmem:[%s1 + $0xa8] sm:$0xff]
      %v498 = vld [vmem:[%s1 + $0xb0] sm:$0xff]
      %v499 = vld [vmem:[%s1 + $0xb8] sm:$0xff]
      %v500 = vld [vmem:[%s1 + $0xc0] sm:$0xff]
      %v501 = vld [vmem:[%s1 + $0xc8] sm:$0xff]
      %v502 = vld [vmem:[%s1 + $0xd0] sm:$0xff]
      %v503 = vld [vmem:[%s1 + $0xd8] sm:$0xff]
      %v504 = vld [vmem:[%s1 + $0xe0] sm:$0xff]
      %v505 = vld [vmem:[%s1 + $0xe8] sm:$0xff]
      %v506 = vld [vmem:[%s1 + $0xf0] sm:$0xff]
      %v507 = vld [vmem:[%s1 + $0xf8] sm:$0xff]
      %v508 = vld [vmem:[%s1 + $0x100] sm:$0xff]
      %v509 = vld [vmem:[%s1 + $0x108] sm:$0xff]
      %v510 = vld [vmem:[%s1 + $0x110] sm:$0xff]
      %v511 = vld [vmem:[%s1 + $0x118] sm:$0xff]
      %v512 = vld [vmem:[%s1 + $0x120] sm:$0xff]
      %v513 = vld [vmem:[%s1 + $0x128] sm:$0xff]
      %v514 = vld [vmem:[%s1 + $0x130] sm:$0xff]
      %v515 = vld [vmem:[%s1 + $0x138] sm:$0xff]
      %v516 = vld [vmem:[%s1 + $0x140] sm:$0xff]
      %v517 = vld [vmem:[%s1 + $0x148] sm:$0xff]
      %v518 = vld [vmem:[%s1 + $0x150] sm:$0xff]
      %v519 = vld [vmem:[%s1 + $0x158] sm:$0xff]
      %v520 = vld [vmem:[%s1 + $0x160] sm:$0xff]
      %v521 = vld [vmem:[%s1 + $0x168] sm:$0xff]
      %v522 = vld [vmem:[%s1 + $0x170] sm:$0xff]
      %v523 = vld [vmem:[%s1 + $0x178] sm:$0xff]
      %v524 = vld [vmem:[%s1 + $0x180] sm:$0xff]
      %v525 = vld [vmem:[%s1 + $0x188] sm:$0xff]
      %v526 = vld [vmem:[%s1 + $0x190] sm:$0xff]
      %v527 = vld [vmem:[%s1 + $0x198] sm:$0xff]
      %v528 = vld [vmem:[%s1 + $0x1a0] sm:$0xff]
      %v529 = vld [vmem:[%s1 + $0x1a8] sm:$0xff]
      %v530 = vld [vmem:[%s1 + $0x1b0] sm:$0xff]
      %v531 = vld [vmem:[%s1 + $0x1b8] sm:$0xff]
      %v532 = vld [vmem:[%s1 + $0x1c0] sm:$0xff]
      %v533 = vld [vmem:[%s1 + $0x1c8] sm:$0xff]
      %v534 = vld [vmem:[%s1 + $0x1d0] sm:$0xff]
      %v535 = vld [vmem:[%s1 + $0x1d8] sm:$0xff]
      %v536 = vld [vmem:[%s1 + $0x1e0] sm:$0xff]
      %v537 = vld [vmem:[%s1 + $0x1e8] sm:$0xff]
      %v538 = vld [vmem:[%s1 + $0x1f0] sm:$0xff]
      %v539 = vld [vmem:[%s1 + $0x1f8] sm:$0xff]
      %v540 = vld [vmem:[%s1 + $0x200] sm:$0xff]
      %v541 = vld [vmem:[%s1 + $0x208] sm:$0xff]
      %v542 = vld [vmem:[%s1 + $0x210] sm:$0xff]
      %v543 = vld [vmem:[%s1 + $0x218] sm:$0xff]
      %v544 = vld [vmem:[%s1 + $0x220] sm:$0xff]
      %v545 = vld [vmem:[%s1 + $0x228] sm:$0xff]
      %v546 = vld [vmem:[%s1 + $0x230] sm:$0xff]
      %v547 = vld [vmem:[%s1 + $0x238] sm:$0xff]
      %v548 = vld [vmem:[%s1 + $0x240] sm:$0xff]
      %v549 = vld [vmem:[%s1 + $0x248] sm:$0xff]
      %v550 = vld [vmem:[%s1 + $0x250] sm:$0xff]
      %v551 = vld [vmem:[%s1 + $0x258] sm:$0xff]
      %v552 = vld [vmem:[%s1 + $0x260] sm:$0xff]
      %v553 = vld [vmem:[%s1 + $0x268] sm:$0xff]
      %v554 = vld [vmem:[%s1 + $0x270] sm:$0xff]
      %v555 = vld [vmem:[%s1 + $0x278] sm:$0xff]
      %v556 = vld [vmem:[%s1 + $0x280] sm:$0xff]
      %v557 = vld [vmem:[%s1 + $0x288] sm:$0xff]
      %v558 = vld [vmem:[%s1 + $0x290] sm:$0xff]
      %v559 = vld [vmem:[%s1 + $0x298] sm:$0xff]
      %v560 = vld [vmem:[%s1 + $0x2a0] sm:$0xff]
      %v561 = vld [vmem:[%s1 + $0x2a8] sm:$0xff]
      %v562 = vld [vmem:[%s1 + $0x2b0] sm:$0xff]
      %v563 = vld [vmem:[%s1 + $0x2b8] sm:$0xff]
      %v564 = vld [vmem:[%s1 + $0x2c0] sm:$0xff]
      %v565 = vld [vmem:[%s1 + $0x2c8] sm:$0xff]
      %v566 = vld [vmem:[%s1 + $0x2d0] sm:$0xff]
      %v567 = vld [vmem:[%s1 + $0x2d8] sm:$0xff]
      %v568 = vld [vmem:[%s1 + $0x2e0] sm:$0xff]
      %v569 = vld [vmem:[%s1 + $0x2e8] sm:$0xff]
      %v570 = vld [vmem:[%s1 + $0x2f0] sm:$0xff]
      %v571 = vld [vmem:[%s1 + $0x2f8] sm:$0xff]
      %v572 = vld [vmem:[%s1 + $0x300] sm:$0xff]
      %v573 = vld [vmem:[%s1 + $0x308] sm:$0xff]
      %v574 = vld [vmem:[%s1 + $0x310] sm:$0xff]
      %v575 = vld [vmem:[%s1 + $0x318] sm:$0xff]
      %v576 = vld [vmem:[%s1 + $0x320] sm:$0xff]
      %v577 = vld [vmem:[%s1 + $0x328] sm:$0xff]
      %v578 = vld [vmem:[%s1 + $0x330] sm:$0xff]
      %v579 = vld [vmem:[%s1 + $0x338] sm:$0xff]
      %v580 = vld [vmem:[%s1 + $0x340] sm:$0xff]
      %v581 = vld [vmem:[%s1 + $0x348] sm:$0xff]
      %v582 = vld [vmem:[%s1 + $0x350] sm:$0xff]
      %v583 = vld [vmem:[%s1 + $0x358] sm:$0xff]
      %v584 = vld [vmem:[%s1 + $0x360] sm:$0xff]
      %v585 = vld [vmem:[%s1 + $0x368] sm:$0xff]
      %v586 = vld [vmem:[%s1 + $0x370] sm:$0xff]
      %v587 = vld [vmem:[%s1 + $0x378] sm:$0xff]
      %v588 = vld [vmem:[%s1 + $0x380] sm:$0xff]
      %v589 = vld [vmem:[%s1 + $0x388] sm:$0xff]
      %v590 = vld [vmem:[%s1 + $0x390] sm:$0xff]
      %v591 = vld [vmem:[%s1 + $0x398] sm:$0xff]
      %v592 = vld [vmem:[%s1 + $0x3a0] sm:$0xff]
      %v593 = vld [vmem:[%s1 + $0x3a8] sm:$0xff]
      %v594 = vld [vmem:[%s1 + $0x3b0] sm:$0xff]
      %v595 = vld [vmem:[%s1 + $0x3b8] sm:$0xff]
      %v596 = vld [vmem:[%s1 + $0x3c0] sm:$0xff]
      %v597 = vld [vmem:[%s1 + $0x3c8] sm:$0xff]
      %v598 = vld [vmem:[%s1 + $0x3d0] sm:$0xff]
      %v599 = vld [vmem:[%s1 + $0x3d8] sm:$0xff]
      %v600 = vld [vmem:[%s1 + $0x3e0] sm:$0xff]
      %v601 = vld [vmem:[%s1 + $0x3e8] sm:$0xff]
      %v602 = vld [vmem:[%s1 + $0x3f0] sm:$0xff]
      %v603 = vld [vmem:[%s1 + $0x3f8] sm:$0xff]
      %v604 = vld [vmem:[%s1 + $0x400] sm:$0xff]
      %v605 = vld [vmem:[%s1 + $0x408] sm:$0xff]
      %v606 = vld [vmem:[%s1 + $0x410] sm:$0xff]
      %v607 = vld [vmem:[%s1 + $0x418] sm:$0xff]
      %v608 = vld [vmem:[%s1 + $0x420] sm:$0xff]
      %v609 = vld [vmem:[%s1 + $0x428] sm:$0xff]
      %v610 = vld [vmem:[%s1 + $0x430] sm:$0xff]
      %v611 = vld [vmem:[%s1 + $0x438] sm:$0xff]
      %v612 = vld [vmem:[%s1 + $0x440] sm:$0xff]
      %v613 = vld [vmem:[%s1 + $0x448] sm:$0xff]
      %v614 = vld [vmem:[%s1 + $0x450] sm:$0xff]
      %v615 = vld [vmem:[%s1 + $0x458] sm:$0xff]
      %v616 = vld [vmem:[%s1 + $0x460] sm:$0xff]
      %v617 = vld [vmem:[%s1 + $0x468] sm:$0xff]
      %v618 = vld [vmem:[%s1 + $0x470] sm:$0xff]
      %v619 = vld [vmem:[%s1 + $0x478] sm:$0xff]
      %620 = vmatprep.subr.mxu0 0.0
      %621 = vmatpush1.msra.mxu0 %v491
      %622 = vmatprep.subr.mxu0 0.0
      %623 = vmatpush1.msra.mxu0 %v490
      %624 = vmatprep.subr.mxu0 0.0
      %625 = vmatpush1.msra.mxu0 %v489
      %626 = vmatprep.subr.mxu0 0.0
      %627 = vmatpush1.msra.mxu0 %v488
      %628 = vmatprep.subr.mxu0 0.0
      %629 = vmatpush1.msra.mxu0 %v487
      %630 = vmatprep.subr.mxu0 0.0
      %631 = vmatpush1.msra.mxu0 %v486
      %632 = vmatprep.subr.mxu0 0.0
      %633 = vmatpush1.msra.mxu0 %v485
      %634 = vmatprep.subr.mxu0 0.0
      %635 = vmatpush1.msra.mxu0 %v484
      %636 = vmatprep.subr.mxu0 0.0
      %637 = vmatpush1.msra.mxu0 %v483
      %638 = vmatprep.subr.mxu0 0.0
      %639 = vmatpush1.msra.mxu0 %v482
      %640 = vmatprep.subr.mxu0 0.0
      %641 = vmatpush1.msra.mxu0 %v481
      %642 = vmatprep.subr.mxu0 0.0
      %643 = vmatpush1.msra.mxu0 %v480
      %644 = vmatprep.subr.mxu0 0.0
      %645 = vmatpush1.msra.mxu0 %v479
      %646 = vmatprep.subr.mxu0 0.0
      %647 = vmatpush1.msra.mxu0 %v478
      %648 = vmatprep.subr.mxu0 0.0
      %649 = vmatpush1.msra.mxu0 %v477
      %650 = vmatprep.subr.mxu0 0.0
      %651 = vmatpush1.msra.mxu0 %v476
      %652 = vmatprep.subr.mxu0 0.0
      %653 = vmatpush2.msra.mxu0 %v507
      %654 = vmatprep.subr.mxu0 0.0
      %655 = vmatpush2.msra.mxu0 %v506
      %656 = vmatprep.subr.mxu0 0.0
      %657 = vmatpush2.msra.mxu0 %v505
      %658 = vmatprep.subr.mxu0 0.0
      %659 = vmatpush2.msra.mxu0 %v504
      %660 = vmatprep.subr.mxu0 0.0
      %661 = vmatpush2.msra.mxu0 %v503
      %662 = vmatprep.subr.mxu0 0.0
      %663 = vmatpush2.msra.mxu0 %v502
      %664 = vmatprep.subr.mxu0 0.0
      %665 = vmatpush2.msra.mxu0 %v501
      %666 = vmatprep.subr.mxu0 0.0
      %667 = vmatpush2.msra.mxu0 %v500
      %668 = vmatprep.subr.mxu0 0.0
      %669 = vmatpush2.msra.mxu0 %v499
      %670 = vmatprep.subr.mxu0 0.0
      %671 = vmatpush2.msra.mxu0 %v498
      %672 = vmatprep.subr.mxu0 0.0
      %673 = vmatpush2.msra.mxu0 %v497
      %674 = vmatprep.subr.mxu0 0.0
      %675 = vmatpush2.msra.mxu0 %v496
      %676 = vmatprep.subr.mxu0 0.0
      %677 = vmatpush2.msra.mxu0 %v495
      %678 = vmatprep.subr.mxu0 0.0
      %679 = vmatpush2.msra.mxu0 %v494
      %680 = vmatprep.subr.mxu0 0.0
      %681 = vmatpush2.msra.mxu0 %v493
      %682 = vmatprep.subr.mxu0 0.0
      %683 = vmatpush2.msra.mxu0 %v492
      %684 = vmatprep.mubr.f32.mxu0 %v331
      %685 = vmatmul.mubr.f32.gmra.mxu0 %v274
      %v686 = vpop.f32.mrf.mxu0
      %v687 = vadd.f32 0.0, %v686
      %v688 = vpop.f32.mrf.mxu0
      %689 = vmatprep.mubr.f32.mxu0 %v333
      %690 = vmatmul.mubr.f32.gmra.mxu0 %v275
      %v691 = vpop.f32.mrf.mxu0
      %v692 = vadd.f32 0.0, %v691
      %v693 = vpop.f32.mrf.mxu0
      %694 = vmatprep.mubr.f32.mxu0 %v336
      %695 = vmatmul.mubr.f32.gmra.mxu0 %v277
      %v696 = vpop.f32.mrf.mxu0
      %v697 = vadd.f32 0.0, %v696
      %v698 = vpop.f32.mrf.mxu0
      %699 = vmatprep.mubr.f32.mxu0 %v338
      %700 = vmatmul.mubr.f32.gmra.mxu0 %v278
      %v701 = vpop.f32.mrf.mxu0
      %v702 = vadd.f32 0.0, %v701
      %v703 = vpop.f32.mrf.mxu0
      %704 = vmatprep.mubr.f32.mxu0 %v341
      %705 = vmatmul.mubr.f32.gmra.mxu0 %v280
      %v706 = vpop.f32.mrf.mxu0
      %v707 = vadd.f32 0.0, %v706
      %v708 = vpop.f32.mrf.mxu0
      %709 = vmatprep.mubr.f32.mxu0 %v343
      %710 = vmatmul.mubr.f32.gmra.mxu0 %v281
      %v711 = vpop.f32.mrf.mxu0
      %v712 = vadd.f32 0.0, %v711
      %v713 = vpop.f32.mrf.mxu0
      %714 = vmatprep.mubr.f32.mxu0 %v346
      %715 = vmatmul.mubr.f32.gmra.mxu0 %v283
      %v716 = vpop.f32.mrf.mxu0
      %v717 = vadd.f32 0.0, %v716
      %v718 = vpop.f32.mrf.mxu0
      %719 = vmatprep.mubr.f32.mxu0 %v348
      %720 = vmatmul.mubr.f32.gmra.mxu0 %v284
      %v721 = vpop.f32.mrf.mxu0
      %v722 = vadd.f32 0.0, %v721
      %v723 = vpop.f32.mrf.mxu0
      %724 = vmatprep.mubr.f32.mxu0 %v351
      %725 = vmatmul.mubr.f32.gmra.mxu0 %v286
      %v726 = vpop.f32.mrf.mxu0
      %v727 = vadd.f32 0.0, %v726
      %v728 = vpop.f32.mrf.mxu0
      %729 = vmatprep.mubr.f32.mxu0 %v353
      %730 = vmatmul.mubr.f32.gmra.mxu0 %v287
      %v731 = vpop.f32.mrf.mxu0
      %v732 = vadd.f32 0.0, %v731
      %v733 = vpop.f32.mrf.mxu0
      %734 = vmatprep.mubr.f32.mxu0 %v356
      %735 = vmatmul.mubr.f32.gmra.mxu0 %v289
      %v736 = vpop.f32.mrf.mxu0
      %v737 = vadd.f32 0.0, %v736
      %v738 = vpop.f32.mrf.mxu0
      %739 = vmatprep.mubr.f32.mxu0 %v358
      %740 = vmatmul.mubr.f32.gmra.mxu0 %v290
      %v741 = vpop.f32.mrf.mxu0
      %v742 = vadd.f32 0.0, %v741
      %v743 = vpop.f32.mrf.mxu0
      %744 = vmatprep.mubr.f32.mxu0 %v361
      %745 = vmatmul.mubr.f32.gmra.mxu0 %v292
      %v746 = vpop.f32.mrf.mxu0
      %v747 = vadd.f32 0.0, %v746
      %v748 = vpop.f32.mrf.mxu0
      %749 = vmatprep.mubr.f32.mxu0 %v363
      %750 = vmatmul.mubr.f32.gmra.mxu0 %v293
      %v751 = vpop.f32.mrf.mxu0
      %v752 = vadd.f32 0.0, %v751
      %v753 = vpop.f32.mrf.mxu0
      %754 = vmatprep.mubr.f32.mxu0 %v366
      %755 = vmatmul.mubr.f32.gmra.mxu0 %v295
      %v756 = vpop.f32.mrf.mxu0
      %v757 = vadd.f32 0.0, %v756
      %v758 = vpop.f32.mrf.mxu0
      %759 = vmatprep.mubr.f32.mxu0 %v368
      %760 = vmatmul.mubr.f32.gmra.mxu0 %v296
      %v761 = vpop.f32.mrf.mxu0
      %v762 = vadd.f32 0.0, %v761
      %v763 = vpop.f32.mrf.mxu0
      %764 = vdwg.mxu0
      %765 = vmatprep.subr.mxu0 0.0
      %766 = vmatpush1.msra.mxu0 %v523
      %767 = vmatprep.subr.mxu0 0.0
      %768 = vmatpush1.msra.mxu0 %v522
      %769 = vmatprep.subr.mxu0 0.0
      %770 = vmatpush1.msra.mxu0 %v521
      %771 = vmatprep.subr.mxu0 0.0
      %772 = vmatpush1.msra.mxu0 %v520
      %773 = vmatprep.subr.mxu0 0.0
      %774 = vmatpush1.msra.mxu0 %v519
      %775 = vmatprep.subr.mxu0 0.0
      %776 = vmatpush1.msra.mxu0 %v518
      %777 = vmatprep.subr.mxu0 0.0
      %778 = vmatpush1.msra.mxu0 %v517
      %779 = vmatprep.subr.mxu0 0.0
      %780 = vmatpush1.msra.mxu0 %v516
      %781 = vmatprep.subr.mxu0 0.0
      %782 = vmatpush1.msra.mxu0 %v515
      %783 = vmatprep.subr.mxu0 0.0
      %784 = vmatpush1.msra.mxu0 %v514
      %785 = vmatprep.subr.mxu0 0.0
      %786 = vmatpush1.msra.mxu0 %v513
      %787 = vmatprep.subr.mxu0 0.0
      %788 = vmatpush1.msra.mxu0 %v512
      %789 = vmatprep.subr.mxu0 0.0
      %790 = vmatpush1.msra.mxu0 %v511
      %791 = vmatprep.subr.mxu0 0.0
      %792 = vmatpush1.msra.mxu0 %v510
      %793 = vmatprep.subr.mxu0 0.0
      %794 = vmatpush1.msra.mxu0 %v509
      %795 = vmatprep.subr.mxu0 0.0
      %796 = vmatpush1.msra.mxu0 %v508
      %797 = vmatprep.subr.mxu0 0.0
      %798 = vmatpush2.msra.mxu0 %v539
      %799 = vmatprep.subr.mxu0 0.0
      %800 = vmatpush2.msra.mxu0 %v538
      %801 = vmatprep.subr.mxu0 0.0
      %802 = vmatpush2.msra.mxu0 %v537
      %803 = vmatprep.subr.mxu0 0.0
      %804 = vmatpush2.msra.mxu0 %v536
      %805 = vmatprep.subr.mxu0 0.0
      %806 = vmatpush2.msra.mxu0 %v535
      %807 = vmatprep.subr.mxu0 0.0
      %808 = vmatpush2.msra.mxu0 %v534
      %809 = vmatprep.subr.mxu0 0.0
      %810 = vmatpush2.msra.mxu0 %v533
      %811 = vmatprep.subr.mxu0 0.0
      %812 = vmatpush2.msra.mxu0 %v532
      %813 = vmatprep.subr.mxu0 0.0
      %814 = vmatpush2.msra.mxu0 %v531
      %815 = vmatprep.subr.mxu0 0.0
      %816 = vmatpush2.msra.mxu0 %v530
      %817 = vmatprep.subr.mxu0 0.0
      %818 = vmatpush2.msra.mxu0 %v529
      %819 = vmatprep.subr.mxu0 0.0
      %820 = vmatpush2.msra.mxu0 %v528
      %821 = vmatprep.subr.mxu0 0.0
      %822 = vmatpush2.msra.mxu0 %v527
      %823 = vmatprep.subr.mxu0 0.0
      %824 = vmatpush2.msra.mxu0 %v526
      %825 = vmatprep.subr.mxu0 0.0
      %826 = vmatpush2.msra.mxu0 %v525
      %827 = vmatprep.subr.mxu0 0.0
      %828 = vmatpush2.msra.mxu0 %v524
      %829 = vmatprep.mubr.f32.mxu0 %v277
      %830 = vmatmul.mubr.f32.gmra.mxu0 %v388
      %v831 = vpop.f32.mrf.mxu0
      %v832 = vadd.f32 %v687, %v831
      %v833 = vpop.f32.mrf.mxu0
      %834 = vmatprep.mubr.f32.mxu0 %v278
      %835 = vmatmul.mubr.f32.gmra.mxu0 %v390
      %v836 = vpop.f32.mrf.mxu0
      %v837 = vadd.f32 %v692, %v836
      %v838 = vpop.f32.mrf.mxu0
      %839 = vmatprep.mubr.f32.mxu0 %v280
      %840 = vmatmul.mubr.f32.gmra.mxu0 %v393
      %v841 = vpop.f32.mrf.mxu0
      %v842 = vadd.f32 %v697, %v841
      %v843 = vpop.f32.mrf.mxu0
      %844 = vmatprep.mubr.f32.mxu0 %v281
      %845 = vmatmul.mubr.f32.gmra.mxu0 %v395
      %v846 = vpop.f32.mrf.mxu0
      %v847 = vadd.f32 %v702, %v846
      %v848 = vpop.f32.mrf.mxu0
      %849 = vmatprep.mubr.f32.mxu0 %v283
      %850 = vmatmul.mubr.f32.gmra.mxu0 %v398
      %v851 = vpop.f32.mrf.mxu0
      %v852 = vadd.f32 %v707, %v851
      %v853 = vpop.f32.mrf.mxu0
      %854 = vmatprep.mubr.f32.mxu0 %v284
      %855 = vmatmul.mubr.f32.gmra.mxu0 %v400
      %v856 = vpop.f32.mrf.mxu0
      %v857 = vadd.f32 %v712, %v856
      %v858 = vpop.f32.mrf.mxu0
      %859 = vmatprep.mubr.f32.mxu0 %v286
      %860 = vmatmul.mubr.f32.gmra.mxu0 %v403
      %v861 = vpop.f32.mrf.mxu0
      %v862 = vadd.f32 %v717, %v861
      %v863 = vpop.f32.mrf.mxu0
      %864 = vmatprep.mubr.f32.mxu0 %v287
      %865 = vmatmul.mubr.f32.gmra.mxu0 %v405
      %v866 = vpop.f32.mrf.mxu0
      %v867 = vadd.f32 %v722, %v866
      %v868 = vpop.f32.mrf.mxu0
      %869 = vmatprep.mubr.f32.mxu0 %v289
      %870 = vmatmul.mubr.f32.gmra.mxu0 %v408
      %v871 = vpop.f32.mrf.mxu0
      %v872 = vadd.f32 %v727, %v871
      %v873 = vpop.f32.mrf.mxu0
      %874 = vmatprep.mubr.f32.mxu0 %v290
      %875 = vmatmul.mubr.f32.gmra.mxu0 %v410
      %v876 = vpop.f32.mrf.mxu0
      %v877 = vadd.f32 %v732, %v876
      %v878 = vpop.f32.mrf.mxu0
      %879 = vmatprep.mubr.f32.mxu0 %v292
      %880 = vmatmul.mubr.f32.gmra.mxu0 %v413
      %v881 = vpop.f32.mrf.mxu0
      %v882 = vadd.f32 %v737, %v881
      %v883 = vpop.f32.mrf.mxu0
      %884 = vmatprep.mubr.f32.mxu0 %v293
      %885 = vmatmul.mubr.f32.gmra.mxu0 %v415
      %v886 = vpop.f32.mrf.mxu0
      %v887 = vadd.f32 %v742, %v886
      %v888 = vpop.f32.mrf.mxu0
      %889 = vmatprep.mubr.f32.mxu0 %v295
      %890 = vmatmul.mubr.f32.gmra.mxu0 %v418
      %v891 = vpop.f32.mrf.mxu0
      %v892 = vadd.f32 %v747, %v891
      %v893 = vpop.f32.mrf.mxu0
      %894 = vmatprep.mubr.f32.mxu0 %v296
      %895 = vmatmul.mubr.f32.gmra.mxu0 %v420
      %v896 = vpop.f32.mrf.mxu0
      %v897 = vadd.f32 %v752, %v896
      %v898 = vpop.f32.mrf.mxu0
      %899 = vmatprep.mubr.f32.mxu0 %v298
      %900 = vmatmul.mubr.f32.gmra.mxu0 %v423
      %v901 = vpop.f32.mrf.mxu0
      %v902 = vadd.f32 %v757, %v901
      %v903 = vpop.f32.mrf.mxu0
      %904 = vmatprep.mubr.f32.mxu0 %v299
      %905 = vmatmul.mubr.f32.gmra.mxu0 %v425
      %v906 = vpop.f32.mrf.mxu0
      %v907 = vadd.f32 %v762, %v906
      %v908 = vpop.f32.mrf.mxu0
      %909 = vdwg.mxu0
      %910 = vmatprep.subr.mxu0 0.0
      %911 = vmatpush1.msra.mxu0 %v555
      %912 = vmatprep.subr.mxu0 0.0
      %913 = vmatpush1.msra.mxu0 %v554
      %914 = vmatprep.subr.mxu0 0.0
      %915 = vmatpush1.msra.mxu0 %v553
      %916 = vmatprep.subr.mxu0 0.0
      %917 = vmatpush1.msra.mxu0 %v552
      %918 = vmatprep.subr.mxu0 0.0
      %919 = vmatpush1.msra.mxu0 %v551
      %920 = vmatprep.subr.mxu0 0.0
      %921 = vmatpush1.msra.mxu0 %v550
      %922 = vmatprep.subr.mxu0 0.0
      %923 = vmatpush1.msra.mxu0 %v549
      %924 = vmatprep.subr.mxu0 0.0
      %925 = vmatpush1.msra.mxu0 %v548
      %926 = vmatprep.subr.mxu0 0.0
      %927 = vmatpush1.msra.mxu0 %v547
      %928 = vmatprep.subr.mxu0 0.0
      %929 = vmatpush1.msra.mxu0 %v546
      %930 = vmatprep.subr.mxu0 0.0
      %931 = vmatpush1.msra.mxu0 %v545
      %932 = vmatprep.subr.mxu0 0.0
      %933 = vmatpush1.msra.mxu0 %v544
      %934 = vmatprep.subr.mxu0 0.0
      %935 = vmatpush1.msra.mxu0 %v543
      %936 = vmatprep.subr.mxu0 0.0
      %937 = vmatpush1.msra.mxu0 %v542
      %938 = vmatprep.subr.mxu0 0.0
      %939 = vmatpush1.msra.mxu0 %v541
      %940 = vmatprep.subr.mxu0 0.0
      %941 = vmatpush1.msra.mxu0 %v540
      %942 = vmatprep.subr.mxu0 0.0
      %943 = vmatpush2.msra.mxu0 %v571
      %944 = vmatprep.subr.mxu0 0.0
      %945 = vmatpush2.msra.mxu0 %v570
      %946 = vmatprep.subr.mxu0 0.0
      %947 = vmatpush2.msra.mxu0 %v569
      %948 = vmatprep.subr.mxu0 0.0
      %949 = vmatpush2.msra.mxu0 %v568
      %950 = vmatprep.subr.mxu0 0.0
      %951 = vmatpush2.msra.mxu0 %v567
      %952 = vmatprep.subr.mxu0 0.0
      %953 = vmatpush2.msra.mxu0 %v566
      %954 = vmatprep.subr.mxu0 0.0
      %955 = vmatpush2.msra.mxu0 %v565
      %956 = vmatprep.subr.mxu0 0.0
      %957 = vmatpush2.msra.mxu0 %v564
      %958 = vmatprep.subr.mxu0 0.0
      %959 = vmatpush2.msra.mxu0 %v563
      %960 = vmatprep.subr.mxu0 0.0
      %961 = vmatpush2.msra.mxu0 %v562
      %962 = vmatprep.subr.mxu0 0.0
      %963 = vmatpush2.msra.mxu0 %v561
      %964 = vmatprep.subr.mxu0 0.0
      %965 = vmatpush2.msra.mxu0 %v560
      %966 = vmatprep.subr.mxu0 0.0
      %967 = vmatpush2.msra.mxu0 %v559
      %968 = vmatprep.subr.mxu0 0.0
      %969 = vmatpush2.msra.mxu0 %v558
      %970 = vmatprep.subr.mxu0 0.0
      %971 = vmatpush2.msra.mxu0 %v557
      %972 = vmatprep.subr.mxu0 0.0
      %973 = vmatpush2.msra.mxu0 %v556
      %974 = vmatprep.mubr.f32.mxu0 %v393
      %975 = vmatmul.mubr.f32.gmra.mxu0 %v336
      %v976 = vpop.f32.mrf.mxu0
      %v977 = vadd.f32 %v832, %v976
      %v978 = vpop.f32.mrf.mxu0
      %979 = vmatprep.mubr.f32.mxu0 %v395
      %980 = vmatmul.mubr.f32.gmra.mxu0 %v338
      %v981 = vpop.f32.mrf.mxu0
      %v982 = vadd.f32 %v837, %v981
      %v983 = vpop.f32.mrf.mxu0
      %984 = vmatprep.mubr.f32.mxu0 %v398
      %985 = vmatmul.mubr.f32.gmra.mxu0 %v341
      %v986 = vpop.f32.mrf.mxu0
      %v987 = vadd.f32 %v842, %v986
      %v988 = vpop.f32.mrf.mxu0
      %989 = vmatprep.mubr.f32.mxu0 %v400
      %990 = vmatmul.mubr.f32.gmra.mxu0 %v343
      %v991 = vpop.f32.mrf.mxu0
      %v992 = vadd.f32 %v847, %v991
      %v993 = vpop.f32.mrf.mxu0
      %994 = vmatprep.mubr.f32.mxu0 %v403
      %995 = vmatmul.mubr.f32.gmra.mxu0 %v346
      %v996 = vpop.f32.mrf.mxu0
      %v997 = vadd.f32 %v852, %v996
      %v998 = vpop.f32.mrf.mxu0
      %999 = vmatprep.mubr.f32.mxu0 %v405
      %1000 = vmatmul.mubr.f32.gmra.mxu0 %v348
      %v1001 = vpop.f32.mrf.mxu0
      %v1002 = vadd.f32 %v857, %v1001
      %v1003 = vpop.f32.mrf.mxu0
      %1004 = vmatprep.mubr.f32.mxu0 %v408
      %1005 = vmatmul.mubr.f32.gmra.mxu0 %v351
      %v1006 = vpop.f32.mrf.mxu0
      %v1007 = vadd.f32 %v862, %v1006
      %v1008 = vpop.f32.mrf.mxu0
      %1009 = vmatprep.mubr.f32.mxu0 %v410
      %1010 = vmatmul.mubr.f32.gmra.mxu0 %v353
      %v1011 = vpop.f32.mrf.mxu0
      %v1012 = vadd.f32 %v867, %v1011
      %v1013 = vpop.f32.mrf.mxu0
      %1014 = vmatprep.mubr.f32.mxu0 %v413
      %1015 = vmatmul.mubr.f32.gmra.mxu0 %v356
      %v1016 = vpop.f32.mrf.mxu0
      %v1017 = vadd.f32 %v872, %v1016
      %v1018 = vpop.f32.mrf.mxu0
      %1019 = vmatprep.mubr.f32.mxu0 %v415
      %1020 = vmatmul.mubr.f32.gmra.mxu0 %v358
      %v1021 = vpop.f32.mrf.mxu0
      %v1022 = vadd.f32 %v877, %v1021
      %v1023 = vpop.f32.mrf.mxu0
      %1024 = vmatprep.mubr.f32.mxu0 %v418
      %1025 = vmatmul.mubr.f32.gmra.mxu0 %v361
      %v1026 = vpop.f32.mrf.mxu0
      %v1027 = vadd.f32 %v882, %v1026
      %v1028 = vpop.f32.mrf.mxu0
      %1029 = vmatprep.mubr.f32.mxu0 %v420
      %1030 = vmatmul.mubr.f32.gmra.mxu0 %v363
      %v1031 = vpop.f32.mrf.mxu0
      %v1032 = vadd.f32 %v887, %v1031
      %v1033 = vpop.f32.mrf.mxu0
      %1034 = vmatprep.mubr.f32.mxu0 %v423
      %1035 = vmatmul.mubr.f32.gmra.mxu0 %v366
      %v1036 = vpop.f32.mrf.mxu0
      %v1037 = vadd.f32 %v892, %v1036
      %v1038 = vpop.f32.mrf.mxu0
      %1039 = vmatprep.mubr.f32.mxu0 %v425
      %1040 = vmatmul.mubr.f32.gmra.mxu0 %v368
      %v1041 = vpop.f32.mrf.mxu0
      %v1042 = vadd.f32 %v897, %v1041
      %v1043 = vpop.f32.mrf.mxu0
      %1044 = vmatprep.mubr.f32.mxu0 %v454
      %1045 = vmatmul.mubr.f32.gmra.mxu0 %v447
      %v1046 = vpop.f32.mrf.mxu0
      %v1047 = vadd.f32 %v902, %v1046
      %v1048 = vpop.f32.mrf.mxu0
      %1049 = vmatprep.mubr.f32.mxu0 %v456
      %1050 = vmatmul.mubr.f32.gmra.mxu0 %v449
      %v1051 = vpop.f32.mrf.mxu0
      %v1052 = vadd.f32 %v907, %v1051
      %v1053 = vpop.f32.mrf.mxu0
      %1054 = vdwg.mxu0
      %1055 = vmatprep.subr.mxu0 0.0
      %1056 = vmatpush1.msra.mxu0 %v587
      %1057 = vmatprep.subr.mxu0 0.0
      %1058 = vmatpush1.msra.mxu0 %v586
      %1059 = vmatprep.subr.mxu0 0.0
      %1060 = vmatpush1.msra.mxu0 %v585
      %1061 = vmatprep.subr.mxu0 0.0
      %1062 = vmatpush1.msra.mxu0 %v584
      %1063 = vmatprep.subr.mxu0 0.0
      %1064 = vmatpush1.msra.mxu0 %v583
      %1065 = vmatprep.subr.mxu0 0.0
      %1066 = vmatpush1.msra.mxu0 %v582
      %1067 = vmatprep.subr.mxu0 0.0
      %1068 = vmatpush1.msra.mxu0 %v581
      %1069 = vmatprep.subr.mxu0 0.0
      %1070 = vmatpush1.msra.mxu0 %v580
      %1071 = vmatprep.subr.mxu0 0.0
      %1072 = vmatpush1.msra.mxu0 %v579
      %1073 = vmatprep.subr.mxu0 0.0
      %1074 = vmatpush1.msra.mxu0 %v578
      %1075 = vmatprep.subr.mxu0 0.0
      %1076 = vmatpush1.msra.mxu0 %v577
      %1077 = vmatprep.subr.mxu0 0.0
      %1078 = vmatpush1.msra.mxu0 %v576
      %1079 = vmatprep.subr.mxu0 0.0
      %1080 = vmatpush1.msra.mxu0 %v575
      %1081 = vmatprep.subr.mxu0 0.0
      %1082 = vmatpush1.msra.mxu0 %v574
      %1083 = vmatprep.subr.mxu0 0.0
      %1084 = vmatpush1.msra.mxu0 %v573
      %1085 = vmatprep.subr.mxu0 0.0
      %1086 = vmatpush1.msra.mxu0 %v572
      %1087 = vmatprep.subr.mxu0 0.0
      %1088 = vmatpush2.msra.mxu0 %v603
      %1089 = vmatprep.subr.mxu0 0.0
      %1090 = vmatpush2.msra.mxu0 %v602
      %1091 = vmatprep.subr.mxu0 0.0
      %1092 = vmatpush2.msra.mxu0 %v601
      %1093 = vmatprep.subr.mxu0 0.0
      %1094 = vmatpush2.msra.mxu0 %v600
      %1095 = vmatprep.subr.mxu0 0.0
      %1096 = vmatpush2.msra.mxu0 %v599
      %1097 = vmatprep.subr.mxu0 0.0
      %1098 = vmatpush2.msra.mxu0 %v598
      %1099 = vmatprep.subr.mxu0 0.0
      %1100 = vmatpush2.msra.mxu0 %v597
      %1101 = vmatprep.subr.mxu0 0.0
      %1102 = vmatpush2.msra.mxu0 %v596
      %1103 = vmatprep.subr.mxu0 0.0
      %1104 = vmatpush2.msra.mxu0 %v595
      %1105 = vmatprep.subr.mxu0 0.0
      %1106 = vmatpush2.msra.mxu0 %v594
      %1107 = vmatprep.subr.mxu0 0.0
      %1108 = vmatpush2.msra.mxu0 %v593
      %1109 = vmatprep.subr.mxu0 0.0
      %1110 = vmatpush2.msra.mxu0 %v592
      %1111 = vmatprep.subr.mxu0 0.0
      %1112 = vmatpush2.msra.mxu0 %v591
      %1113 = vmatprep.subr.mxu0 0.0
      %1114 = vmatpush2.msra.mxu0 %v590
      %1115 = vmatprep.subr.mxu0 0.0
      %1116 = vmatpush2.msra.mxu0 %v589
      %1117 = vmatprep.subr.mxu0 0.0
      %1118 = vmatpush2.msra.mxu0 %v588
      %1119 = vmatprep.mubr.f32.mxu0 %v341
      %1120 = vmatmul.mubr.f32.gmra.mxu0 %v280
      %v1121 = vpop.f32.mrf.mxu0
      %v1122 = vadd.f32 %v977, %v1121
      %v1123 = vpop.f32.mrf.mxu0
      %1124 = vmatprep.mubr.f32.mxu0 %v343
      %1125 = vmatmul.mubr.f32.gmra.mxu0 %v281
      %v1126 = vpop.f32.mrf.mxu0
      %v1127 = vadd.f32 %v982, %v1126
      %v1128 = vpop.f32.mrf.mxu0
      %1129 = vmatprep.mubr.f32.mxu0 %v346
      %1130 = vmatmul.mubr.f32.gmra.mxu0 %v283
      %v1131 = vpop.f32.mrf.mxu0
      %v1132 = vadd.f32 %v987, %v1131
      %v1133 = vpop.f32.mrf.mxu0
      %1134 = vmatprep.mubr.f32.mxu0 %v348
      %1135 = vmatmul.mubr.f32.gmra.mxu0 %v284
      %v1136 = vpop.f32.mrf.mxu0
      %v1137 = vadd.f32 %v992, %v1136
      %v1138 = vpop.f32.mrf.mxu0
      %1139 = vmatprep.mubr.f32.mxu0 %v351
      %1140 = vmatmul.mubr.f32.gmra.mxu0 %v286
      %v1141 = vpop.f32.mrf.mxu0
      %v1142 = vadd.f32 %v997, %v1141
      %v1143 = vpop.f32.mrf.mxu0
      %1144 = vmatprep.mubr.f32.mxu0 %v353
      %1145 = vmatmul.mubr.f32.gmra.mxu0 %v287
      %v1146 = vpop.f32.mrf.mxu0
      %v1147 = vadd.f32 %v1002, %v1146
      %v1148 = vpop.f32.mrf.mxu0
      %1149 = vmatprep.mubr.f32.mxu0 %v356
      %1150 = vmatmul.mubr.f32.gmra.mxu0 %v289
      %v1151 = vpop.f32.mrf.mxu0
      %v1152 = vadd.f32 %v1007, %v1151
      %v1153 = vpop.f32.mrf.mxu0
      %1154 = vmatprep.mubr.f32.mxu0 %v358
      %1155 = vmatmul.mubr.f32.gmra.mxu0 %v290
      %v1156 = vpop.f32.mrf.mxu0
      %v1157 = vadd.f32 %v1012, %v1156
      %v1158 = vpop.f32.mrf.mxu0
      %1159 = vmatprep.mubr.f32.mxu0 %v361
      %1160 = vmatmul.mubr.f32.gmra.mxu0 %v292
      %v1161 = vpop.f32.mrf.mxu0
      %v1162 = vadd.f32 %v1017, %v1161
      %v1163 = vpop.f32.mrf.mxu0
      %1164 = vmatprep.mubr.f32.mxu0 %v363
      %1165 = vmatmul.mubr.f32.gmra.mxu0 %v293
      %v1166 = vpop.f32.mrf.mxu0
      %v1167 = vadd.f32 %v1022, %v1166
      %v1168 = vpop.f32.mrf.mxu0
      %1169 = vmatprep.mubr.f32.mxu0 %v366
      %1170 = vmatmul.mubr.f32.gmra.mxu0 %v295
      %v1171 = vpop.f32.mrf.mxu0
      %v1172 = vadd.f32 %v1027, %v1171
      %v1173 = vpop.f32.mrf.mxu0
      %1174 = vmatprep.mubr.f32.mxu0 %v368
      %1175 = vmatmul.mubr.f32.gmra.mxu0 %v296
      %v1176 = vpop.f32.mrf.mxu0
      %v1177 = vadd.f32 %v1032, %v1176
      %v1178 = vpop.f32.mrf.mxu0
      %1179 = vmatprep.mubr.f32.mxu0 %v447
      %1180 = vmatmul.mubr.f32.gmra.mxu0 %v298
      %v1181 = vpop.f32.mrf.mxu0
      %v1182 = vadd.f32 %v1037, %v1181
      %v1183 = vpop.f32.mrf.mxu0
      %1184 = vmatprep.mubr.f32.mxu0 %v449
      %1185 = vmatmul.mubr.f32.gmra.mxu0 %v299
      %v1186 = vpop.f32.mrf.mxu0
      %v1187 = vadd.f32 %v1042, %v1186
      %v1188 = vpop.f32.mrf.mxu0
      %1189 = vmatprep.mubr.f32.mxu0 %v464
      %1190 = vmatmul.mubr.f32.gmra.mxu0 %v301
      %v1191 = vpop.f32.mrf.mxu0
      %v1192 = vadd.f32 %v1047, %v1191
      %v1193 = vpop.f32.mrf.mxu0
      %1194 = vmatprep.mubr.f32.mxu0 %v466
      %1195 = vmatmul.mubr.f32.gmra.mxu0 %v302
      %v1196 = vpop.f32.mrf.mxu0
      %v1197 = vadd.f32 %v1052, %v1196
      %v1198 = vpop.f32.mrf.mxu0
      %1199 = vdwg.mxu0
      %1200 = vmatprep.subr.mxu0 0.0
      %1201 = vmatpush1.msra.mxu0 %v619
      %1202 = vmatprep.subr.mxu0 0.0
      %1203 = vmatpush1.msra.mxu0 %v618
      %1204 = vmatprep.subr.mxu0 0.0
      %1205 = vmatpush1.msra.mxu0 %v617
      %1206 = vmatprep.subr.mxu0 0.0
      %1207 = vmatpush1.msra.mxu0 %v616
      %1208 = vmatprep.subr.mxu0 0.0
      %1209 = vmatpush1.msra.mxu0 %v615
      %1210 = vmatprep.subr.mxu0 0.0
      %1211 = vmatpush1.msra.mxu0 %v614
      %1212 = vmatprep.subr.mxu0 0.0
      %1213 = vmatpush1.msra.mxu0 %v613
      %1214 = vmatprep.subr.mxu0 0.0
      %1215 = vmatpush1.msra.mxu0 %v612
      %1216 = vmatprep.subr.mxu0 0.0
      %1217 = vmatpush1.msra.mxu0 %v611
      %1218 = vmatprep.subr.mxu0 0.0
      %1219 = vmatpush1.msra.mxu0 %v610
      %1220 = vmatprep.subr.mxu0 0.0
      %1221 = vmatpush1.msra.mxu0 %v609
      %1222 = vmatprep.subr.mxu0 0.0
      %1223 = vmatpush1.msra.mxu0 %v608
      %1224 = vmatprep.subr.mxu0 0.0
      %1225 = vmatpush1.msra.mxu0 %v607
      %1226 = vmatprep.subr.mxu0 0.0
      %1227 = vmatpush1.msra.mxu0 %v606
      %1228 = vmatprep.subr.mxu0 0.0
      %1229 = vmatpush1.msra.mxu0 %v605
      %1230 = vmatprep.subr.mxu0 0.0
      %1231 = vmatpush1.msra.mxu0 %v604
      %1232 = vmatprep.subr.mxu0 0.0
      %1233 = vmatpush2.msra.mxu0 0.0
      %1234 = vmatprep.subr.mxu0 0.0
      %1235 = vmatpush2.msra.mxu0 0.0
      %1236 = vmatprep.subr.mxu0 0.0
      %1237 = vmatpush2.msra.mxu0 0.0
      %1238 = vmatprep.subr.mxu0 0.0
      %1239 = vmatpush2.msra.mxu0 0.0
      %1240 = vmatprep.subr.mxu0 0.0
      %1241 = vmatpush2.msra.mxu0 0.0
      %1242 = vmatprep.subr.mxu0 0.0
      %1243 = vmatpush2.msra.mxu0 0.0
      %1244 = vmatprep.subr.mxu0 0.0
      %1245 = vmatpush2.msra.mxu0 0.0
      %1246 = vmatprep.subr.mxu0 0.0
      %1247 = vmatpush2.msra.mxu0 0.0
      %1248 = vmatprep.subr.mxu0 0.0
      %1249 = vmatpush2.msra.mxu0 0.0
      %1250 = vmatprep.subr.mxu0 0.0
      %1251 = vmatpush2.msra.mxu0 0.0
      %1252 = vmatprep.subr.mxu0 0.0
      %1253 = vmatpush2.msra.mxu0 0.0
      %1254 = vmatprep.subr.mxu0 0.0
      %1255 = vmatpush2.msra.mxu0 0.0
      %1256 = vmatprep.subr.mxu0 0.0
      %1257 = vmatpush2.msra.mxu0 0.0
      %1258 = vmatprep.subr.mxu0 0.0
      %1259 = vmatpush2.msra.mxu0 0.0
      %1260 = vmatprep.subr.mxu0 0.0
      %1261 = vmatpush2.msra.mxu0 0.0
      %1262 = vmatprep.subr.mxu0 0.0
      %1263 = vmatpush2.msra.mxu0 0.0
      %1264 = vmatprep.mubr.f32.mxu0 0.0
      %1265 = vmatmul.mubr.f32.gmra.mxu0 %v398
      %v1266 = vpop.f32.mrf.mxu0
      %v1267 = vadd.f32 %v1122, %v1266
      %v1268 = vpop.f32.mrf.mxu0
      %1269 = vmatprep.mubr.f32.mxu0 0.0
      %1270 = vmatmul.mubr.f32.gmra.mxu0 %v400
      %v1271 = vpop.f32.mrf.mxu0
      %v1272 = vadd.f32 %v1127, %v1271
      %v1273 = vpop.f32.mrf.mxu0
      %1274 = vmatprep.mubr.f32.mxu0 0.0
      %1275 = vmatmul.mubr.f32.gmra.mxu0 %v403
      %v1276 = vpop.f32.mrf.mxu0
      %v1277 = vadd.f32 %v1132, %v1276
      %v1278 = vpop.f32.mrf.mxu0
      %1279 = vmatprep.mubr.f32.mxu0 0.0
      %1280 = vmatmul.mubr.f32.gmra.mxu0 %v405
      %v1281 = vpop.f32.mrf.mxu0
      %v1282 = vadd.f32 %v1137, %v1281
      %v1283 = vpop.f32.mrf.mxu0
      %1284 = vmatprep.mubr.f32.mxu0 0.0
      %1285 = vmatmul.mubr.f32.gmra.mxu0 %v408
      %v1286 = vpop.f32.mrf.mxu0
      %v1287 = vadd.f32 %v1142, %v1286
      %v1288 = vpop.f32.mrf.mxu0
      %1289 = vmatprep.mubr.f32.mxu0 0.0
      %1290 = vmatmul.mubr.f32.gmra.mxu0 %v410
      %v1291 = vpop.f32.mrf.mxu0
      %v1292 = vadd.f32 %v1147, %v1291
      %v1293 = vpop.f32.mrf.mxu0
      %1294 = vmatprep.mubr.f32.mxu0 0.0
      %1295 = vmatmul.mubr.f32.gmra.mxu0 %v413
      %v1296 = vpop.f32.mrf.mxu0
      %v1297 = vadd.f32 %v1152, %v1296
      %v1298 = vpop.f32.mrf.mxu0
      %1299 = vmatprep.mubr.f32.mxu0 0.0
      %1300 = vmatmul.mubr.f32.gmra.mxu0 %v415
      %v1301 = vpop.f32.mrf.mxu0
      %v1302 = vadd.f32 %v1157, %v1301
      %v1303 = vpop.f32.mrf.mxu0
      %1304 = vmatprep.mubr.f32.mxu0 0.0
      %1305 = vmatmul.mubr.f32.gmra.mxu0 %v418
      %v1306 = vpop.f32.mrf.mxu0
      %v1307 = vadd.f32 %v1162, %v1306
      %v1308 = vpop.f32.mrf.mxu0
      %1309 = vmatprep.mubr.f32.mxu0 0.0
      %1310 = vmatmul.mubr.f32.gmra.mxu0 %v420
      %v1311 = vpop.f32.mrf.mxu0
      %v1312 = vadd.f32 %v1167, %v1311
      %v1313 = vpop.f32.mrf.mxu0
      %1314 = vmatprep.mubr.f32.mxu0 0.0
      %1315 = vmatmul.mubr.f32.gmra.mxu0 %v423
      %v1316 = vpop.f32.mrf.mxu0
      %v1317 = vadd.f32 %v1172, %v1316
      %v1318 = vpop.f32.mrf.mxu0
      %1319 = vmatprep.mubr.f32.mxu0 0.0
      %1320 = vmatmul.mubr.f32.gmra.mxu0 %v425
      %v1321 = vpop.f32.mrf.mxu0
      %v1322 = vadd.f32 %v1177, %v1321
      %v1323 = vpop.f32.mrf.mxu0
      %1324 = vmatprep.mubr.f32.mxu0 0.0
      %1325 = vmatmul.mubr.f32.gmra.mxu0 %v454
      %v1326 = vpop.f32.mrf.mxu0
      %v1327 = vadd.f32 %v1182, %v1326
      %v1328 = vpop.f32.mrf.mxu0
      %1329 = vmatprep.mubr.f32.mxu0 0.0
      %1330 = vmatmul.mubr.f32.gmra.mxu0 %v456
      %v1331 = vpop.f32.mrf.mxu0
      %v1332 = vadd.f32 %v1187, %v1331
      %v1333 = vpop.f32.mrf.mxu0
      %1334 = vmatprep.mubr.f32.mxu0 0.0
      %1335 = vmatmul.mubr.f32.gmra.mxu0 %v471
      %v1336 = vpop.f32.mrf.mxu0
      %v1337 = vadd.f32 %v1192, %v1336
      %v1338 = vpop.f32.mrf.mxu0
      %1339 = vmatprep.mubr.f32.mxu0 0.0
      %1340 = vmatmul.mubr.f32.gmra.mxu0 %v473
      %v1341 = vpop.f32.mrf.mxu0
      %v1342 = vadd.f32 %v1197, %v1341
      %v1343 = vpop.f32.mrf.mxu0
      %1344 = vdwg.mxu0
      %1345 = vst [vmem:[%s261] sm:$0xff] %v1267
      %1346 = vst [vmem:[%s261 + $0x8] sm:$0xff] %v1272
      %1347 = vst [vmem:[%s261 + $0x10] sm:$0xff] %v1277
      %1348 = vst [vmem:[%s261 + $0x18] sm:$0xff] %v1282
      %1349 = vst [vmem:[%s261 + $0x20] sm:$0xff] %v1287
      %1350 = vst [vmem:[%s261 + $0x28] sm:$0xff] %v1292
      %1351 = vst [vmem:[%s261 + $0x30] sm:$0xff] %v1297
      %1352 = vst [vmem:[%s261 + $0x38] sm:$0xff] %v1302
      %1353 = vst [vmem:[%s261 + $0x40] sm:$0xff] %v1307
      %1354 = vst [vmem:[%s261 + $0x48] sm:$0xff] %v1312
      %1355 = vst [vmem:[%s261 + $0x50] sm:$0xff] %v1317
      %1356 = vst [vmem:[%s261 + $0x58] sm:$0xff] %v1322
      %1357 = vst [vmem:[%s261 + $0x60] sm:$0xff] %v1327
      %1358 = vst [vmem:[%s261 + $0x68] sm:$0xff] %v1332
      %1359 = vst [vmem:[%s261 + $0x70] sm:$0xff] %v1337
      %1360 = vst [vmem:[%s261 + $0x78] sm:$0xff] %v1342
      %v1361 = vadd.f32 %v1267, %v1272
      %v1362 = vadd.f32 %v1361, %v1277
      %v1363 = vadd.f32 %v1362, %v1282
      %v1364 = vadd.f32 %v1363, %v1287
      %v1365 = vadd.f32 %v1364, %v1292
      %v1366 = vadd.f32 %v1365, %v1297
      %v1367 = vadd.f32 %v1366, %v1302
      %v1368 = vadd.f32 %v1367, %v1307
      %v1369 = vadd.f32 %v1368, %v1312
      %v1370 = vadd.f32 %v1369, %v1317
      %v1371 = vadd.f32 %v1370, %v1322
      %v1372 = vadd.f32 %v1371, %v1327
      %v1373 = vadd.f32 %v1372, %v1332
      %v1374 = vadd.f32 %v1373, %v1337
      %v1375 = vadd.f32 %v1374, %v1342
      %v1376 = vrot.slane %v1375, 4
      %v1377 = vadd.f32 %v1375, %v1376
      %v1378 = vrot.slane %v1377, 2
      %v1379 = vadd.f32 %v1377, %v1378
      %v1380 = vrot.slane %v1379, 1
      %v1381 = vadd.f32 %v1379, %v1380
      %v1382 = vmul.f32 %v1267, %v1267
      %v1383 = vmul.f32 %v1272, %v1272
      %v1384 = vmul.f32 %v1277, %v1277
      %v1385 = vmul.f32 %v1282, %v1282
      %v1386 = vmul.f32 %v1287, %v1287
      %v1387 = vmul.f32 %v1292, %v1292
      %v1388 = vmul.f32 %v1297, %v1297
      %v1389 = vmul.f32 %v1302, %v1302
      %v1390 = vmul.f32 %v1307, %v1307
      %v1391 = vmul.f32 %v1312, %v1312
      %v1392 = vmul.f32 %v1317, %v1317
      %v1393 = vmul.f32 %v1322, %v1322
      %v1394 = vmul.f32 %v1327, %v1327
      %v1395 = vmul.f32 %v1332, %v1332
      %v1396 = vmul.f32 %v1337, %v1337
      %v1397 = vmul.f32 %v1342, %v1342
      %v1398 = vadd.f32 %v1382, %v1383
      %v1399 = vadd.f32 %v1398, %v1384
      %v1400 = vadd.f32 %v1399, %v1385
      %v1401 = vadd.f32 %v1400, %v1386
      %v1402 = vadd.f32 %v1401, %v1387
      %v1403 = vadd.f32 %v1402, %v1388
      %v1404 = vadd.f32 %v1403, %v1389
      %v1405 = vadd.f32 %v1404, %v1390
      %v1406 = vadd.f32 %v1405, %v1391
      %v1407 = vadd.f32 %v1406, %v1392
      %v1408 = vadd.f32 %v1407, %v1393
      %v1409 = vadd.f32 %v1408, %v1394
      %v1410 = vadd.f32 %v1409, %v1395
      %v1411 = vadd.f32 %v1410, %v1396
      %v1412 = vadd.f32 %v1411, %v1397
      %v1413 = vrot.slane %v1412, 4
      %v1414 = vadd.f32 %v1412, %v1413
      %v1415 = vrot.slane %v1414, 2
      %v1416 = vadd.f32 %v1414, %v1415
      %v1417 = vrot.slane %v1416, 1
      %v1418 = vadd.f32 %v1416, %v1417
      %vm1419 = vcmask 1040384
      %v1420 = vsel %vm1419, %v1381, %v1418
      %1421 = vst [vmem:[%s270] sm:$0x3] %v1420
      %s1422 = smul.u32 8, %s22
      %p1423 = scmp.lt.s32.totalorder %s21, 1
      %s1424 = scalar_select %p1423, %s21, 1
      %p1425 = scmp.lt.s32.totalorder %s1422, 15
      %s1426 = scalar_select %p1425, %s1422, 15
      %s1427 = smul.addr %s1426, 2
      %s1428 = smul.addr %s1424, 32
      %s1429 = sadd.s32 %s1427, %s1428
      %s1430 = smul.addr %s1429, 8
      %s1431 = scalar_lea.vmem %s4, %s1430
      %p1432 = scmp.lt.s32.totalorder %s21, 1
      %s1433 = scalar_select %p1432, %s21, 1
      %p1434 = scmp.lt.s32.totalorder %s22, 1
      %s1435 = scalar_select %p1434, %s22, 1
      %s1436 = smul.addr %s1433, 2
      %s1437 = sadd.s32 %s1435, %s1436
      %s1438 = smul.addr %s1437, 2
      %s1439 = scalar_lea.vmem %s5, %s1438
      // Predicated region
      $region37: #{double_conv.3} parent=35 // pred_check
        %p1440 = pneg %p138
      $region38: #{double_conv.3} parent=35 // pred_check_branch
        %1442 = sbr.rel (%p1440) target = $region40
      $region39: #{double_conv.3} parent=35 // pred_region
        %s1443 = smul.u32 8, %s22
      $region40: #{double_conv.3} parent=35 // pred_fallthru
        _
      // Predicated region
      $region41: #{double_conv.3} parent=35 // pred_check
        %p1444 = pneg %p166
      $region42: #{double_conv.3} parent=35 // pred_check_branch
        %1446 = sbr.rel (%p1444) target = $region44
      $region43: #{double_conv.3} parent=35 // pred_region
        _
      $region44: #{double_conv.3} parent=35 // pred_fallthru
        _
    $region36: #{double_conv.3} parent=5 // pred_fallthru
      _
    %p1447 = scmp.le.s32.totalorder 2, %s12
    // Predicated region
    $region45: #{double_conv.3} parent=5 // pred_check
      %p1448 = pneg %p1447
    $region46: #{double_conv.3} parent=5 // pred_check_branch
      %1450 = sbr.rel (%p1448) target = $region48
    $region47: #{double_conv.3} parent=5 // pred_region
      %s1451 = ssub.s32 %s12, 2
      // Predicated region
      $region49: #{double_conv.3} parent=47 // pred_check
        %p1452 = pneg %p144
      $region50: #{double_conv.3} parent=47 // pred_check_branch
        %1454 = sbr.rel (%p1452) target = $region52
      $region51: #{double_conv.3} parent=47 // pred_region
        %s1455 = smul.u32 8, %s24
        %p1456 = scmp.lt.s32.totalorder %s23, 1
        %s1457 = scalar_select %p1456, %s23, 1
        %p1458 = scmp.lt.s32.totalorder %s1455, 15
        %s1459 = scalar_select %p1458, %s1455, 15
        %s1460 = smul.addr %s1459, 2
        %s1461 = smul.addr %s1457, 32
        %s1462 = sadd.s32 %s1460, %s1461
        %s1463 = smul.addr %s1462, 8
        %s1464 = scalar_lea.vmem %s4, %s1463
      $region52: #{double_conv.3} parent=47 // pred_fallthru
        _
      // Predicated region
      $region53: #{double_conv.3} parent=47 // pred_check
        %p1465 = pneg %p172
      $region54: #{double_conv.3} parent=47 // pred_check_branch
        %1467 = sbr.rel (%p1465) target = $region56
      $region55: #{double_conv.3} parent=47 // pred_region
        %p1468 = scmp.lt.s32.totalorder %s23, 1
        %s1469 = scalar_select %p1468, %s23, 1
        %p1470 = scmp.lt.s32.totalorder %s24, 1
        %s1471 = scalar_select %p1470, %s24, 1
        %s1472 = smul.addr %s1469, 2
        %s1473 = sadd.s32 %s1471, %s1472
        %s1474 = smul.addr %s1473, 2
        %s1475 = scalar_lea.vmem %s5, %s1474
      $region56: #{double_conv.3} parent=47 // pred_fallthru
        _
    $region48: #{double_conv.3} parent=5 // pred_fallthru
      _
  $region6: #{double_conv.3} parent=0 // loop_footer
    %s16 = sadd.s32 1, %s12
  $region7: #{double_conv.3} parent=0 // loop_footer_branch
    %11 = sbr.rel target = $region3
  $region8: #{double_conv.3} parent=0 // loop_exit
    _

// kernel: double_conv.4
$region0: #{double_conv.4}
  #allocation0 [shape = 'u32[]', space=smem, size = 0x4, offset = 0x4, fixed_abs, tag = 'smem constant byte address 0x4 - core index']
  #allocation1 [shape = 'u32[144,128]{1,0:T(1,128)}', space=vmem, size = 0x12000, scoped, tag = 'internal scratch']
  %s0 = inlined_call_operand.vmem [shape: f32[2,18,18,128], index: 0, kind: input, shape index: {}]
  %s1 = inlined_call_operand.vmem [shape: f32[1152,128], index: 1, kind: input, shape index: {}]
  %s2 = inlined_call_operand.vmem [shape: f32[1,128], index: 2, kind: input, shape index: {}]
  %s3 = inlined_call_operand.vmem [shape: f32[1,128], index: 3, kind: input, shape index: {}]
  %s4 = inlined_call_operand.vmem [shape: f32[2,16,16,128], index: 4, kind: output, shape index: {0}]
  %s5 = inlined_call_operand.vmem [shape: f32[2,2,2,128], index: 5, kind: output, shape index: {1}]
  %6 = xla_tuple %s4, %s5
  %s7 = sld [smem:[#allocation0]]
  $region57: #{double_conv.4} parent=0
    _
  %s9 = ssub.s32 1, %s7
  %s10 = scalar_select 0, %s9, %s7
  loop: start=0, step=1, limit=6
  $region2: #{double_conv.4} parent=0 // loop_pre_header
    _
  $region3: #{double_conv.4} parent=0 // loop_header
    %s12 = sphi 0, %s16
    %p13 = scmp.ge.s32.totalorder %s12, 6
    %s19 = sphi 0, %s31
    %s20 = sphi 0, %s27
    %s21 = sphi 0, %s19
    %s22 = sphi 0, %s20
    %s23 = sphi 0, %s21
    %s24 = sphi 0, %s22
    %s34 = sphi 0, %s36
    %s37 = sphi 0, %s34
    %s38 = sphi 0, %s37
    %s54 = sphi 0, %s38
    %s58 = sphi 0, %s58
    %s60 = sphi 0, %s58
    %s61 = sphi 0, %s60
    %s75 = sphi 0, %s61
    %s79 = sphi 0, %s79
    %s81 = sphi 0, %s79
    %s82 = sphi 0, %s81
    %s96 = sphi 0, %s82
    %s100 = sphi 0, %s100
    %s102 = sphi 0, %s100
    %s103 = sphi 0, %s102
    %s117 = sphi 0, %s103
    %s125 = sphi 0, %s127
    %s128 = sphi 0, %s125
    %s129 = sphi 0, %s128
    %s145 = sphi 0, %s129
    %s153 = sphi 0, %s155
    %s156 = sphi 0, %s153
    %s157 = sphi 0, %s156
    %s173 = sphi 0, %s157
  $region4: #{double_conv.4} parent=0 // loop_header_branch
    %15 = sbr.rel (%p13) target = $region8
  $region5: #{double_conv.4} parent=0 // loop_body
    %s17 = ssub.s32 %s12, 1
    %s18 = ssub.s32 %s12, 2
    %s25 = sadd.s32 1, %s20
    %p26 = scmp.ge.s32.totalorder %s25, 2
    %s27 = scalar_select %p26, 0, %s25
    %s28 = sadd.s32 1, %s19
    %s29 = scalar_select %p26, %s28, %s19
    %p30 = scmp.ge.s32.totalorder %s29, 2
    %s31 = scalar_select %p30, 0, %s29
    %s32 = ssub.s32 %s19, %s31
    %p33 = scmp.eq.s32.totalorder %s32, 0
    %s35 = sadd.s32 %s34, 1
    %s36 = scalar_select %p33, %s34, %s35
    %p39 = pneg %p33
    %p40 = scmp.eq.s32.totalorder %s12, 3
    %p41 = por %p39, %p40
    %p42 = scmp.ne.s32.totalorder %s34, %s37
    %p43 = scmp.eq.s32.totalorder %s12, 0
    %p44 = por %p42, %p43
    %p45 = scmp.ne.s32.totalorder %s34, %s37
    %p46 = scmp.eq.s32.totalorder %s17, 3
    %p47 = por %p45, %p46
    %p48 = scmp.ne.s32.totalorder %s37, %s38
    %p49 = scmp.eq.s32.totalorder %s17, 0
    %p50 = por %p48, %p49
    %p51 = scmp.ne.s32.totalorder %s37, %s38
    %p52 = scmp.eq.s32.totalorder %s18, 3
    %p53 = por %p51, %p52
    %p55 = scmp.ne.s32.totalorder %s38, %s54
    %p56 = scmp.eq.s32.totalorder %s18, 0
    %p57 = por %p55, %p56
    %s59 = sadd.s32 %s58, 1
    %p62 = scmp.eq.s32.totalorder %s12, 3
    %p63 = scmp.ne.s32.totalorder %s58, %s60
    %p64 = scmp.eq.s32.totalorder %s12, 0
    %p65 = por %p63, %p64
    %p66 = scmp.ne.s32.totalorder %s58, %s60
    %p67 = scmp.eq.s32.totalorder %s17, 3
    %p68 = por %p66, %p67
    %p69 = scmp.ne.s32.totalorder %s60, %s61
    %p70 = scmp.eq.s32.totalorder %s17, 0
    %p71 = por %p69, %p70
    %p72 = scmp.ne.s32.totalorder %s60, %s61
    %p73 = scmp.eq.s32.totalorder %s18, 3
    %p74 = por %p72, %p73
    %p76 = scmp.ne.s32.totalorder %s61, %s75
    %p77 = scmp.eq.s32.totalorder %s18, 0
    %p78 = por %p76, %p77
    %s80 = sadd.s32 %s79, 1
    %p83 = scmp.eq.s32.totalorder %s12, 3
    %p84 = scmp.ne.s32.totalorder %s79, %s81
    %p85 = scmp.eq.s32.totalorder %s12, 0
    %p86 = por %p84, %p85
    %p87 = scmp.ne.s32.totalorder %s79, %s81
    %p88 = scmp.eq.s32.totalorder %s17, 3
    %p89 = por %p87, %p88
    %p90 = scmp.ne.s32.totalorder %s81, %s82
    %p91 = scmp.eq.s32.totalorder %s17, 0
    %p92 = por %p90, %p91
    %p93 = scmp.ne.s32.totalorder %s81, %s82
    %p94 = scmp.eq.s32.totalorder %s18, 3
    %p95 = por %p93, %p94
    %p97 = scmp.ne.s32.totalorder %s82, %s96
    %p98 = scmp.eq.s32.totalorder %s18, 0
    %p99 = por %p97, %p98
    %s101 = sadd.s32 %s100, 1
    %p104 = scmp.eq.s32.totalorder %s12, 3
    %p105 = scmp.ne.s32.totalorder %s100, %s102
    %p106 = scmp.eq.s32.totalorder %s12, 0
    %p107 = por %p105, %p106
    %p108 = scmp.ne.s32.totalorder %s100, %s102
    %p109 = scmp.eq.s32.totalorder %s17, 3
    %p110 = por %p108, %p109
    %p111 = scmp.ne.s32.totalorder %s102, %s103
    %p112 = scmp.eq.s32.totalorder %s17, 0
    %p113 = por %p111, %p112
    %p114 = scmp.ne.s32.totalorder %s102, %s103
    %p115 = scmp.eq.s32.totalorder %s18, 3
    %p116 = por %p114, %p115
    %p118 = scmp.ne.s32.totalorder %s103, %s117
    %p119 = scmp.eq.s32.totalorder %s18, 0
    %p120 = por %p118, %p119
    %s121 = ssub.s32 %s19, %s31
    %s122 = ssub.s32 %s20, %s27
    %s123 = sor.u32 %s121, %s122
    %p124 = scmp.eq.s32.totalorder %s123, 0
    %s126 = sadd.s32 %s125, 1
    %s127 = scalar_select %p124, %s125, %s126
    %p130 = pneg %p124
    %p131 = scmp.eq.s32.totalorder %s12, 3
    %p132 = por %p130, %p131
    %p133 = scmp.ne.s32.totalorder %s125, %s128
    %p134 = scmp.eq.s32.totalorder %s12, 0
    %p135 = por %p133, %p134
    %p136 = scmp.ne.s32.totalorder %s125, %s128
    %p137 = scmp.eq.s32.totalorder %s17, 3
    %p138 = por %p136, %p137
    %p139 = scmp.ne.s32.totalorder %s128, %s129
    %p140 = scmp.eq.s32.totalorder %s17, 0
    %p141 = por %p139, %p140
    %p142 = scmp.ne.s32.totalorder %s128, %s129
    %p143 = scmp.eq.s32.totalorder %s18, 3
    %p144 = por %p142, %p143
    %p146 = scmp.ne.s32.totalorder %s129, %s145
    %p147 = scmp.eq.s32.totalorder %s18, 0
    %p148 = por %p146, %p147
    %s149 = ssub.s32 %s19, %s31
    %s150 = ssub.s32 %s20, %s27
    %s151 = sor.u32 %s149, %s150
    %p152 = scmp.eq.s32.totalorder %s151, 0
    %s154 = sadd.s32 %s153, 1
    %s155 = scalar_select %p152, %s153, %s154
    %p158 = pneg %p152
    %p159 = scmp.eq.s32.totalorder %s12, 3
    %p160 = por %p158, %p159
    %p161 = scmp.ne.s32.totalorder %s153, %s156
    %p162 = scmp.eq.s32.totalorder %s12, 0
    %p163 = por %p161, %p162
    %p164 = scmp.ne.s32.totalorder %s153, %s156
    %p165 = scmp.eq.s32.totalorder %s17, 3
    %p166 = por %p164, %p165
    %p167 = scmp.ne.s32.totalorder %s156, %s157
    %p168 = scmp.eq.s32.totalorder %s17, 0
    %p169 = por %p167, %p168
    %p170 = scmp.ne.s32.totalorder %s156, %s157
    %p171 = scmp.eq.s32.totalorder %s18, 3
    %p172 = por %p170, %p171
    %p174 = scmp.ne.s32.totalorder %s157, %s173
    %p175 = scmp.eq.s32.totalorder %s18, 0
    %p176 = por %p174, %p175
    %p177 = scmp.le.s32.totalorder 1, %s12
    %p178 = scmp.lt.s32.totalorder %s12, 5
    %p179 = pnand %p177, %p178
    %p180 = pneg %p179
    // Predicated region
    $region9: #{double_conv.4} parent=5 // pred_check
      _
    $region10: #{double_conv.4} parent=5 // pred_check_branch
      %182 = sbr.rel (%p179) target = $region12
    $region11: #{double_conv.4} parent=5 // pred_region
      %s183 = ssub.s32 %s12, 1
      // Predicated region
      $region13: #{double_conv.4} parent=11 // pred_check
        %p184 = pneg %p71
      $region14: #{double_conv.4} parent=11 // pred_check_branch
        %186 = sbr.rel (%p184) target = $region16
      $region15: #{double_conv.4} parent=11 // pred_region
        _
      $region16: #{double_conv.4} parent=11 // pred_fallthru
        _
      // Predicated region
      $region17: #{double_conv.4} parent=11 // pred_check
        %p187 = pneg %p92
      $region18: #{double_conv.4} parent=11 // pred_check_branch
        %189 = sbr.rel (%p187) target = $region20
      $region19: #{double_conv.4} parent=11 // pred_region
        _
      $region20: #{double_conv.4} parent=11 // pred_fallthru
        _
      // Predicated region
      $region21: #{double_conv.4} parent=11 // pred_check
        %p190 = pneg %p113
      $region22: #{double_conv.4} parent=11 // pred_check_branch
        %192 = sbr.rel (%p190) target = $region24
      $region23: #{double_conv.4} parent=11 // pred_region
        _
      $region24: #{double_conv.4} parent=11 // pred_fallthru
        _
    $region12: #{double_conv.4} parent=5 // pred_fallthru
      _
    %p193 = scmp.lt.s32.totalorder %s12, 4
    // Predicated region
    $region25: #{double_conv.4} parent=5 // pred_check
      %p194 = pneg %p193
    $region26: #{double_conv.4} parent=5 // pred_check_branch
      %196 = sbr.rel (%p194) target = $region28
    $region27: #{double_conv.4} parent=5 // pred_region
      // Predicated region
      $region29: #{double_conv.4} parent=27 // pred_check
        %p197 = pneg %p44
      $region30: #{double_conv.4} parent=27 // pred_check_branch
        %199 = sbr.rel (%p197) target = $region32
      $region31: #{double_conv.4} parent=27 // pred_region
        %p200 = scmp.lt.s32.totalorder %s19, 1
        %s201 = scalar_select %p200, %s19, 1
        %s202 = smul.addr %s201, 54
        %s203 = smul.addr %s202, 8
        %s204 = scalar_lea.vmem %s0, %s203
      $region32: #{double_conv.4} parent=27 // pred_fallthru
        _
    $region28: #{double_conv.4} parent=5 // pred_fallthru
      _
    %p205 = scmp.le.s32.totalorder 1, %s12
    %p206 = scmp.lt.s32.totalorder %s12, 5
    %p207 = pnand %p205, %p206
    %p208 = pneg %p207
    // Predicated region
    $region33: #{double_conv.4} parent=5 // pred_check
      _
    $region34: #{double_conv.4} parent=5 // pred_check_branch
      %210 = sbr.rel (%p207) target = $region36
    $region35: #{double_conv.4} parent=5 // pred_region
      %s211 = ssub.s32 %s12, 1
      %p212 = scmp.lt.s32.totalorder %s21, 1
      %s213 = scalar_select %p212, %s21, 1
      %s214 = smul.addr %s213, 54
      %s215 = smul.addr %s214, 8
      %s216 = scalar_lea.vmem %s0, %s215
      %p217 = pneg %p50
      %p218 = pneg %p47
      %p219 = pneg %p71
      %p220 = pneg %p68
      %p221 = pneg %p92
      %p222 = pneg %p89
      %p223 = pneg %p113
      %p224 = pneg %p110
      %p225 = pneg %p141
      %p226 = pneg %p138
      %s227 = smul.u32 8, %s22
      %p228 = scmp.lt.s32.totalorder %s21, 1
      %s229 = scalar_select %p228, %s21, 1
      %p230 = scmp.lt.s32.totalorder %s227, 15
      %s231 = scalar_select %p230, %s227, 15
      %s232 = smul.addr %s231, 2
      %s233 = smul.addr %s229, 32
      %s234 = sadd.s32 %s232, %s233
      %s235 = smul.addr %s234, 8
      %s236 = scalar_lea.vmem %s4, %s235
      %p237 = pneg %p169
      %p238 = pneg %p166
      %p239 = scmp.lt.s32.totalorder %s21, 1
      %s240 = scalar_select %p239, %s21, 1
      %p241 = scmp.lt.s32.totalorder %s22, 1
      %s242 = scalar_select %p241, %s22, 1
      %s243 = smul.addr %s240, 2
      %s244 = sadd.s32 %s242, %s243
      %s245 = smul.addr %s244, 2
      %s246 = scalar_lea.vmem %s5, %s245
      %p247 = scmp.lt.s32.totalorder %s21, 1
      %s248 = scalar_select %p247, %s21, 1
      %s249 = smul.addr %s248, 54
      %s250 = smul.addr %s249, 8
      %s251 = scalar_lea.vmem %s0, %s250
      %s252 = smul.u32 8, %s22
      %p253 = scmp.lt.s32.totalorder %s21, 1
      %s254 = scalar_select %p253, %s21, 1
      %p255 = scmp.lt.s32.totalorder %s252, 15
      %s256 = scalar_select %p255, %s252, 15
      %s257 = smul.addr %s256, 2
      %s258 = smul.addr %s254, 32
      %s259 = sadd.s32 %s257, %s258
      %s260 = smul.addr %s259, 8
      %s261 = scalar_lea.vmem %s4, %s260
      %s262 = smul.u32 8, %s22
      %p263 = scmp.lt.s32.totalorder %s21, 1
      %s264 = scalar_select %p263, %s21, 1
      %p265 = scmp.lt.s32.totalorder %s22, 1
      %s266 = scalar_select %p265, %s22, 1
      %s267 = smul.addr %s264, 2
      %s268 = sadd.s32 %s266, %s267
      %s269 = smul.addr %s268, 2
      %s270 = scalar_lea.vmem %s5, %s269
      %s271 = smul.u32 %s22, 8
      %s272 = smul.u32 %s271, 24
      %s273 = scalar_lea.vmem %s251, %s272
      %v274 = vld [vmem:[%s273] sm:$0xff]
      %v275 = vld [vmem:[%s273 + $0x8] sm:$0xff]
      %v276 = vld [vmem:[%s273 + $0x10] sm:$0x3]
      %v277 = vld [vmem:[%s273 + $0x18] sm:$0xff]
      %v278 = vld [vmem:[%s273 + $0x20] sm:$0xff]
      %v279 = vld [vmem:[%s273 + $0x28] sm:$0x3]
      %v280 = vld [vmem:[%s273 + $0x30] sm:$0xff]
      %v281 = vld [vmem:[%s273 + $0x38] sm:$0xff]
      %v282 = vld [vmem:[%s273 + $0x40] sm:$0x3]
      %v283 = vld [vmem:[%s273 + $0x48] sm:$0xff]
      %v284 = vld [vmem:[%s273 + $0x50] sm:$0xff]
      %v285 = vld [vmem:[%s273 + $0x58] sm:$0x3]
      %v286 = vld [vmem:[%s273 + $0x60] sm:$0xff]
      %v287 = vld [vmem:[%s273 + $0x68] sm:$0xff]
      %v288 = vld [vmem:[%s273 + $0x70] sm:$0x3]
      %v289 = vld [vmem:[%s273 + $0x78] sm:$0xff]
      %v290 = vld [vmem:[%s273 + $0x80] sm:$0xff]
      %v291 = vld [vmem:[%s273 + $0x88] sm:$0x3]
      %v292 = vld [vmem:[%s273 + $0x90] sm:$0xff]
      %v293 = vld [vmem:[%s273 + $0x98] sm:$0xff]
      %v294 = vld [vmem:[%s273 + $0xa0] sm:$0x3]
      %v295 = vld [vmem:[%s273 + $0xa8] sm:$0xff]
      %v296 = vld [vmem:[%s273 + $0xb0] sm:$0xff]
      %v297 = vld [vmem:[%s273 + $0xb8] sm:$0x3]
      %v298 = vld [vmem:[%s273 + $0xc0] sm:$0xff]
      %v299 = vld [vmem:[%s273 + $0xc8] sm:$0xff]
      %v300 = vld [vmem:[%s273 + $0xd0] sm:$0x3]
      %v301 = vld [vmem:[%s273 + $0xd8] sm:$0xff]
      %v302 = vld [vmem:[%s273 + $0xe0] sm:$0xff]
      %v303 = vld [vmem:[%s273 + $0xe8] sm:$0x3]
      %v304 = vld [vmem:[%s2] sm:$0x1]
      %v306 = vlaneseq
      %v307 = vshrl.u32 %v306, 7
      %v308 = vsub.s32 0, %v307
      %v309 = vrot.slane %v304, %v308
      %v311 = vmul.f32 %v274, %v309
      %v312 = vmul.f32 %v275, %v309
      %v313 = vmul.f32 %v276, %v309
      %v314 = vmul.f32 %v277, %v309
      %v315 = vmul.f32 %v278, %v309
      %v316 = vmul.f32 %v279, %v309
      %v317 = vmul.f32 %v280, %v309
      %v318 = vmul.f32 %v281, %v309
      %v319 = vmul.f32 %v282, %v309
      %v320 = vmul.f32 %v283, %v309
      %v321 = vmul.f32 %v284, %v309
      %v322 = vmul.f32 %v285, %v309
      %v323 = vmul.f32 %v286, %v309
      %v324 = vmul.f32 %v287, %v309
      %v325 = vmul.f32 %v288, %v309
      %v326 = vmul.f32 %v289, %v309
      %v327 = vmul.f32 %v290, %v309
      %v328 = vmul.f32 %v291, %v309
      %v329 = vmul.f32 %v292, %v309
      %v330 = vmul.f32 %v293, %v309
      %v331 = vmul.f32 %v294, %v309
      %v332 = vmul.f32 %v295, %v309
      %v333 = vmul.f32 %v296, %v309
      %v334 = vmul.f32 %v297, %v309
      %v335 = vmul.f32 %v298, %v309
      %v336 = vmul.f32 %v299, %v309
      %v337 = vmul.f32 %v300, %v309
      %v338 = vmul.f32 %v301, %v309
      %v339 = vmul.f32 %v302, %v309
      %v340 = vmul.f32 %v303, %v309
      %v341 = vld [vmem:[%s3] sm:$0x1]
      %v343 = vlaneseq
      %v344 = vshrl.u32 %v343, 7
      %v345 = vsub.s32 0, %v344
      %v346 = vrot.slane %v341, %v345
      %v348 = vadd.f32 %v311, %v346
      %v349 = vadd.f32 %v312, %v346
      %v350 = vadd.f32 %v313, %v346
      %v351 = vadd.f32 %v314, %v346
      %v352 = vadd.f32 %v315, %v346
      %v353 = vadd.f32 %v316, %v346
      %v354 = vadd.f32 %v317, %v346
      %v355 = vadd.f32 %v318, %v346
      %v356 = vadd.f32 %v319, %v346
      %v357 = vadd.f32 %v320, %v346
      %v358 = vadd.f32 %v321, %v346
      %v359 = vadd.f32 %v322, %v346
      %v360 = vadd.f32 %v323, %v346
      %v361 = vadd.f32 %v324, %v346
      %v362 = vadd.f32 %v325, %v346
      %v363 = vadd.f32 %v326, %v346
      %v364 = vadd.f32 %v327, %v346
      %v365 = vadd.f32 %v328, %v346
      %v366 = vadd.f32 %v329, %v346
      %v367 = vadd.f32 %v330, %v346
      %v368 = vadd.f32 %v331, %v346
      %v369 = vadd.f32 %v332, %v346
      %v370 = vadd.f32 %v333, %v346
      %v371 = vadd.f32 %v334, %v346
      %v372 = vadd.f32 %v335, %v346
      %v373 = vadd.f32 %v336, %v346
      %v374 = vadd.f32 %v337, %v346
      %v375 = vadd.f32 %v338, %v346
      %v376 = vadd.f32 %v339, %v346
      %v377 = vadd.f32 %v340, %v346
      %v378 = vmax.f32 %v348, 0.0
      %v379 = vmax.f32 %v349, 0.0
      %v380 = vmax.f32 %v350, 0.0
      %v381 = vmax.f32 %v351, 0.0
      %v382 = vmax.f32 %v352, 0.0
      %v383 = vmax.f32 %v353, 0.0
      %v384 = vmax.f32 %v354, 0.0
      %v385 = vmax.f32 %v355, 0.0
      %v386 = vmax.f32 %v356, 0.0
      %v387 = vmax.f32 %v357, 0.0
      %v388 = vmax.f32 %v358, 0.0
      %v389 = vmax.f32 %v359, 0.0
      %v390 = vmax.f32 %v360, 0.0
      %v391 = vmax.f32 %v361, 0.0
      %v392 = vmax.f32 %v362, 0.0
      %v393 = vmax.f32 %v363, 0.0
      %v394 = vmax.f32 %v364, 0.0
      %v395 = vmax.f32 %v365, 0.0
      %v396 = vmax.f32 %v366, 0.0
      %v397 = vmax.f32 %v367, 0.0
      %v398 = vmax.f32 %v368, 0.0
      %v399 = vmax.f32 %v369, 0.0
      %v400 = vmax.f32 %v370, 0.0
      %v401 = vmax.f32 %v371, 0.0
      %v402 = vmax.f32 %v372, 0.0
      %v403 = vmax.f32 %v373, 0.0
      %v404 = vmax.f32 %v374, 0.0
      %v405 = vmax.f32 %v375, 0.0
      %v406 = vmax.f32 %v376, 0.0
      %v407 = vmax.f32 %v377, 0.0
      %v408 = vstv %s271
      %v409 = vadd.s32 %v408, 1
      %v410 = vadd.s32 %v408, 2
      %v411 = vadd.s32 %v408, 3
      %v412 = vadd.s32 %v408, 4
      %v413 = vadd.s32 %v408, 5
      %v414 = vadd.s32 %v408, 6
      %v415 = vadd.s32 %v408, 7
      %v416 = vadd.s32 %v408, 8
      %v417 = vadd.s32 %v408, 9
      %v418 = vlaneseq
      %v419 = vshrl.u32 %v418, 7
      %v420 = vadd.s32 %v419, 8
      %v421 = vadd.s32 %v419, 16
      %vm422 = vcmp.eq.s32.totalorder %v408, 0
      %vm423 = vcmp.eq.s32.totalorder %v409, 0
      %vm424 = vcmp.eq.s32.totalorder %v410, 0
      %vm425 = vcmp.eq.s32.totalorder %v411, 0
      %vm426 = vcmp.eq.s32.totalorder %v412, 0
      %vm427 = vcmp.eq.s32.totalorder %v413, 0
      %vm428 = vcmp.eq.s32.totalorder %v414, 0
      %vm429 = vcmp.eq.s32.totalorder %v415, 0
      %vm430 = vcmp.eq.s32.totalorder %v416, 0
      %vm431 = vcmp.eq.s32.totalorder %v417, 0
      %vm432 = vcmp.eq.s32.totalorder %v408, 17
      %vm433 = vcmp.eq.s32.totalorder %v409, 17
      %vm434 = vcmp.eq.s32.totalorder %v410, 17
      %vm435 = vcmp.eq.s32.totalorder %v411, 17
      %vm436 = vcmp.eq.s32.totalorder %v412, 17
      %vm437 = vcmp.eq.s32.totalorder %v413, 17
      %vm438 = vcmp.eq.s32.totalorder %v414, 17
      %vm439 = vcmp.eq.s32.totalorder %v415, 17
      %vm440 = vcmp.eq.s32.totalorder %v416, 17
      %vm441 = vcmp.eq.s32.totalorder %v417, 17
      %vm442 = vmor %vm422, %vm432
      %vm443 = vmor %vm423, %vm433
      %vm444 = vmor %vm424, %vm434
      %vm445 = vmor %vm425, %vm435
      %vm446 = vmor %vm426, %vm436
      %vm447 = vmor %vm427, %vm437
      %vm448 = vmor %vm428, %vm438
      %vm449 = vmor %vm429, %vm439
      %vm450 = vmor %vm430, %vm440
      %vm451 = vmor %vm431, %vm441
      %vm452 = vcmp.eq.s32.totalorder %v419, 0
      %vm453 = vcmp.eq.s32.totalorder %v420, 0
      %vm454 = vcmp.eq.s32.totalorder %v421, 0
      %vm455 = vmor %vm442, %vm452
      %vm456 = vmor %vm442, %vm453
      %vm457 = vmor %vm442, %vm454
      %vm458 = vmor %vm443, %vm452
      %vm459 = vmor %vm443, %vm453
      %vm460 = vmor %vm443, %vm454
      %vm461 = vmor %vm444, %vm452
      %vm462 = vmor %vm444, %vm453
      %vm463 = vmor %vm444, %vm454
      %vm464 = vmor %vm445, %vm452
      %vm465 = vmor %vm445, %vm453
      %vm466 = vmor %vm445, %vm454
      %vm467 = vmor %vm446, %vm452
      %vm468 = vmor %vm446, %vm453
      %vm469 = vmor %vm446, %vm454
      %vm470 = vmor %vm447, %vm452
      %vm471 = vmor %vm447, %vm453
      %vm472 = vmor %vm447, %vm454
      %vm473 = vmor %vm448, %vm452
      %vm474 = vmor %vm448, %vm453
      %vm475 = vmor %vm448, %vm454
      %vm476 = vmor %vm449, %vm452
      %vm477 = vmor %vm449, %vm453
      %vm478 = vmor %vm449, %vm454
      %vm479 = vmor %vm450, %vm452
      %vm480 = vmor %vm450, %vm453
      %vm481 = vmor %vm450, %vm454
      %vm482 = vmor %vm451, %vm452
      %vm483 = vmor %vm451, %vm453
      %vm484 = vmor %vm451, %vm454
      %vm485 = vcmp.eq.s32.totalorder %v419, 17
      %vm486 = vcmp.eq.s32.totalorder %v420, 17
      %vm487 = vcmp.eq.s32.totalorder %v421, 17
      %vm488 = vmor %vm455, %vm485
      %vm489 = vmor %vm456, %vm486
      %vm490 = vmor %vm457, %vm487
      %vm491 = vmor %vm458, %vm485
      %vm492 = vmor %vm459, %vm486
      %vm493 = vmor %vm460, %vm487
      %vm494 = vmor %vm461, %vm485
      %vm495 = vmor %vm462, %vm486
      %vm496 = vmor %vm463, %vm487
      %vm497 = vmor %vm464, %vm485
      %vm498 = vmor %vm465, %vm486
      %vm499 = vmor %vm466, %vm487
      %vm500 = vmor %vm467, %vm485
      %vm501 = vmor %vm468, %vm486
      %vm502 = vmor %vm469, %vm487
      %vm503 = vmor %vm470, %vm485
      %vm504 = vmor %vm471, %vm486
      %vm505 = vmor %vm472, %vm487
      %vm506 = vmor %vm473, %vm485
      %vm507 = vmor %vm474, %vm486
      %vm508 = vmor %vm475, %vm487
      %vm509 = vmor %vm476, %vm485
      %vm510 = vmor %vm477, %vm486
      %vm511 = vmor %vm478, %vm487
      %vm512 = vmor %vm479, %vm485
      %vm513 = vmor %vm480, %vm486
      %vm514 = vmor %vm481, %vm487
      %vm515 = vmor %vm482, %vm485
      %vm516 = vmor %vm483, %vm486
      %vm517 = vmor %vm484, %vm487
      %v518 = vsel %vm488, 1, 0
      %v519 = vsel %vm489, 1, 0
      %v520 = vsel %vm490, 1, 0
      %v521 = vsel %vm491, 1, 0
      %v522 = vsel %vm492, 1, 0
      %v523 = vsel %vm493, 1, 0
      %v524 = vsel %vm494, 1, 0
      %v525 = vsel %vm495, 1, 0
      %v526 = vsel %vm496, 1, 0
      %v527 = vsel %vm497, 1, 0
      %v528 = vsel %vm498, 1, 0
      %v529 = vsel %vm499, 1, 0
      %v530 = vsel %vm500, 1, 0
      %v531 = vsel %vm501, 1, 0
      %v532 = vsel %vm502, 1, 0
      %v533 = vsel %vm503, 1, 0
      %v534 = vsel %vm504, 1, 0
      %v535 = vsel %vm505, 1, 0
      %v536 = vsel %vm506, 1, 0
      %v537 = vsel %vm507, 1, 0
      %v538 = vsel %vm508, 1, 0
      %v539 = vsel %vm509, 1, 0
      %v540 = vsel %vm510, 1, 0
      %v541 = vsel %vm511, 1, 0
      %v542 = vsel %vm512, 1, 0
      %v543 = vsel %vm513, 1, 0
      %v544 = vsel %vm514, 1, 0
      %v545 = vsel %vm515, 1, 0
      %v546 = vsel %vm516, 1, 0
      %v547 = vsel %vm517, 1, 0
      %vm548 = vcmp.eq.s32.totalorder %v518, 1
      %vm549 = vcmp.eq.s32.totalorder %v519, 1
      %vm550 = vcmp.eq.s32.totalorder %v520, 1
      %vm551 = vcmp.eq.s32.totalorder %v521, 1
      %vm552 = vcmp.eq.s32.totalorder %v522, 1
      %vm553 = vcmp.eq.s32.totalorder %v523, 1
      %vm554 = vcmp.eq.s32.totalorder %v524, 1
      %vm555 = vcmp.eq.s32.totalorder %v525, 1
      %vm556 = vcmp.eq.s32.totalorder %v526, 1
      %vm557 = vcmp.eq.s32.totalorder %v527, 1
      %vm558 = vcmp.eq.s32.totalorder %v528, 1
      %vm559 = vcmp.eq.s32.totalorder %v529, 1
      %vm560 = vcmp.eq.s32.totalorder %v530, 1
      %vm561 = vcmp.eq.s32.totalorder %v531, 1
      %vm562 = vcmp.eq.s32.totalorder %v532, 1
      %vm563 = vcmp.eq.s32.totalorder %v533, 1
      %vm564 = vcmp.eq.s32.totalorder %v534, 1
      %vm565 = vcmp.eq.s32.totalorder %v535, 1
      %vm566 = vcmp.eq.s32.totalorder %v536, 1
      %vm567 = vcmp.eq.s32.totalorder %v537, 1
      %vm568 = vcmp.eq.s32.totalorder %v538, 1
      %vm569 = vcmp.eq.s32.totalorder %v539, 1
      %vm570 = vcmp.eq.s32.totalorder %v540, 1
      %vm571 = vcmp.eq.s32.totalorder %v541, 1
      %vm572 = vcmp.eq.s32.totalorder %v542, 1
      %vm573 = vcmp.eq.s32.totalorder %v543, 1
      %vm574 = vcmp.eq.s32.totalorder %v544, 1
      %vm575 = vcmp.eq.s32.totalorder %v545, 1
      %vm576 = vcmp.eq.s32.totalorder %v546, 1
      %vm577 = vcmp.eq.s32.totalorder %v547, 1
      %v578 = vsel %vm548, 0.0, %v378
      %v579 = vsel %vm549, 0.0, %v379
      %v580 = vsel %vm550, 0.0, %v380
      %v581 = vsel %vm551, 0.0, %v381
      %v582 = vsel %vm552, 0.0, %v382
      %v583 = vsel %vm553, 0.0, %v383
      %v584 = vsel %vm554, 0.0, %v384
      %v585 = vsel %vm555, 0.0, %v385
      %v586 = vsel %vm556, 0.0, %v386
      %v587 = vsel %vm557, 0.0, %v387
      %v588 = vsel %vm558, 0.0, %v388
      %v589 = vsel %vm559, 0.0, %v389
      %v590 = vsel %vm560, 0.0, %v390
      %v591 = vsel %vm561, 0.0, %v391
      %v592 = vsel %vm562, 0.0, %v392
      %v593 = vsel %vm563, 0.0, %v393
      %v594 = vsel %vm564, 0.0, %v394
      %v595 = vsel %vm565, 0.0, %v395
      %v596 = vsel %vm566, 0.0, %v396
      %v597 = vsel %vm567, 0.0, %v397
      %v598 = vsel %vm568, 0.0, %v398
      %v599 = vsel %vm569, 0.0, %v399
      %v600 = vsel %vm570, 0.0, %v400
      %v601 = vsel %vm571, 0.0, %v401
      %v602 = vsel %vm572, 0.0, %v402
      %v603 = vsel %vm573, 0.0, %v403
      %v604 = vsel %vm574, 0.0, %v404
      %v605 = vsel %vm575, 0.0, %v405
      %v606 = vsel %vm576, 0.0, %v406
      %v607 = vsel %vm577, 0.0, %v407
      %vm632 = vcmask 1046528
      %v633 = vrot.slane %v578, 1
      %v634 = vrot.slane %v579, 1
      %v635 = vsel %vm632, %v633, %v634
      %v636 = vrot.slane %v580, 1
      %v637 = vsel %vm632, %v634, %v636
      %v638 = vrot.slane %v581, 1
      %v639 = vrot.slane %v582, 1
      %v640 = vsel %vm632, %v638, %v639
      %v641 = vrot.slane %v583, 1
      %v642 = vsel %vm632, %v639, %v641
      %v643 = vrot.slane %v584, 1
      %v644 = vrot.slane %v585, 1
      %v645 = vsel %vm632, %v643, %v644
      %v646 = vrot.slane %v586, 1
      %v647 = vsel %vm632, %v644, %v646
      %v648 = vrot.slane %v587, 1
      %v649 = vrot.slane %v588, 1
      %v650 = vsel %vm632, %v648, %v649
      %v651 = vrot.slane %v589, 1
      %v652 = vsel %vm632, %v649, %v651
      %v653 = vrot.slane %v590, 1
      %v654 = vrot.slane %v591, 1
      %v655 = vsel %vm632, %v653, %v654
      %v656 = vrot.slane %v592, 1
      %v657 = vsel %vm632, %v654, %v656
      %v658 = vrot.slane %v593, 1
      %v659 = vrot.slane %v594, 1
      %v660 = vsel %vm632, %v658, %v659
      %v661 = vrot.slane %v595, 1
      %v662 = vsel %vm632, %v659, %v661
      %v663 = vrot.slane %v596, 1
      %v664 = vrot.slane %v597, 1
      %v665 = vsel %vm632, %v663, %v664
      %v666 = vrot.slane %v598, 1
      %v667 = vsel %vm632, %v664, %v666
      %v668 = vrot.slane %v599, 1
      %v669 = vrot.slane %v600, 1
      %v670 = vsel %vm632, %v668, %v669
      %v671 = vrot.slane %v601, 1
      %v672 = vsel %vm632, %v669, %v671
      %vm689 = vcmask 1045504
      %v690 = vrot.slane %v578, 2
      %v691 = vrot.slane %v579, 2
      %v692 = vsel %vm689, %v690, %v691
      %v693 = vrot.slane %v580, 2
      %v694 = vsel %vm689, %v691, %v693
      %v695 = vrot.slane %v581, 2
      %v696 = vrot.slane %v582, 2
      %v697 = vsel %vm689, %v695, %v696
      %v698 = vrot.slane %v583, 2
      %v699 = vsel %vm689, %v696, %v698
      %v700 = vrot.slane %v584, 2
      %v701 = vrot.slane %v585, 2
      %v702 = vsel %vm689, %v700, %v701
      %v703 = vrot.slane %v586, 2
      %v704 = vsel %vm689, %v701, %v703
      %v705 = vrot.slane %v587, 2
      %v706 = vrot.slane %v588, 2
      %v707 = vsel %vm689, %v705, %v706
      %v708 = vrot.slane %v589, 2
      %v709 = vsel %vm689, %v706, %v708
      %v710 = vrot.slane %v590, 2
      %v711 = vrot.slane %v591, 2
      %v712 = vsel %vm689, %v710, %v711
      %v713 = vrot.slane %v592, 2
      %v714 = vsel %vm689, %v711, %v713
      %v715 = vrot.slane %v593, 2
      %v716 = vrot.slane %v594, 2
      %v717 = vsel %vm689, %v715, %v716
      %v718 = vrot.slane %v595, 2
      %v719 = vsel %vm689, %v716, %v718
      %v720 = vrot.slane %v596, 2
      %v721 = vrot.slane %v597, 2
      %v722 = vsel %vm689, %v720, %v721
      %v723 = vrot.slane %v598, 2
      %v724 = vsel %vm689, %v721, %v723
      %v725 = vrot.slane %v599, 2
      %v726 = vrot.slane %v600, 2
      %v727 = vsel %vm689, %v725, %v726
      %v728 = vrot.slane %v601, 2
      %v729 = vsel %vm689, %v726, %v728
      %v749 = vrot.slane %v602, 1
      %v750 = vrot.slane %v603, 1
      %v751 = vsel %vm632, %v749, %v750
      %v752 = vrot.slane %v604, 1
      %v753 = vsel %vm632, %v750, %v752
      %v756 = vrot.slane %v602, 2
      %v757 = vrot.slane %v603, 2
      %v758 = vsel %vm689, %v756, %v757
      %v759 = vrot.slane %v604, 2
      %v760 = vsel %vm689, %v757, %v759
      %v766 = vrot.slane %v605, 1
      %v767 = vrot.slane %v606, 1
      %v768 = vsel %vm632, %v766, %v767
      %v769 = vrot.slane %v607, 1
      %v770 = vsel %vm632, %v767, %v769
      %v773 = vrot.slane %v605, 2
      %v774 = vrot.slane %v606, 2
      %v775 = vsel %vm689, %v773, %v774
      %v776 = vrot.slane %v607, 2
      %v777 = vsel %vm689, %v774, %v776
      %v780 = vld [vmem:[%s1] sm:$0xff]
      %v781 = vld [vmem:[%s1 + $0x8] sm:$0xff]
      %v782 = vld [vmem:[%s1 + $0x10] sm:$0xff]
      %v783 = vld [vmem:[%s1 + $0x18] sm:$0xff]
      %v784 = vld [vmem:[%s1 + $0x20] sm:$0xff]
      %v785 = vld [vmem:[%s1 + $0x28] sm:$0xff]
      %v786 = vld [vmem:[%s1 + $0x30] sm:$0xff]
      %v787 = vld [vmem:[%s1 + $0x38] sm:$0xff]
      %v788 = vld [vmem:[%s1 + $0x40] sm:$0xff]
      %v789 = vld [vmem:[%s1 + $0x48] sm:$0xff]
      %v790 = vld [vmem:[%s1 + $0x50] sm:$0xff]
      %v791 = vld [vmem:[%s1 + $0x58] sm:$0xff]
      %v792 = vld [vmem:[%s1 + $0x60] sm:$0xff]
      %v793 = vld [vmem:[%s1 + $0x68] sm:$0xff]
      %v794 = vld [vmem:[%s1 + $0x70] sm:$0xff]
      %v795 = vld [vmem:[%s1 + $0x78] sm:$0xff]
      %v796 = vld [vmem:[%s1 + $0x80] sm:$0xff]
      %v797 = vld [vmem:[%s1 + $0x88] sm:$0xff]
      %v798 = vld [vmem:[%s1 + $0x90] sm:$0xff]
      %v799 = vld [vmem:[%s1 + $0x98] sm:$0xff]
      %v800 = vld [vmem:[%s1 + $0xa0] sm:$0xff]
      %v801 = vld [vmem:[%s1 + $0xa8] sm:$0xff]
      %v802 = vld [vmem:[%s1 + $0xb0] sm:$0xff]
      %v803 = vld [vmem:[%s1 + $0xb8] sm:$0xff]
      %v804 = vld [vmem:[%s1 + $0xc0] sm:$0xff]
      %v805 = vld [vmem:[%s1 + $0xc8] sm:$0xff]
      %v806 = vld [vmem:[%s1 + $0xd0] sm:$0xff]
      %v807 = vld [vmem:[%s1 + $0xd8] sm:$0xff]
      %v808 = vld [vmem:[%s1 + $0xe0] sm:$0xff]
      %v809 = vld [vmem:[%s1 + $0xe8] sm:$0xff]
      %v810 = vld [vmem:[%s1 + $0xf0] sm:$0xff]
      %v811 = vld [vmem:[%s1 + $0xf8] sm:$0xff]
      %v812 = vld [vmem:[%s1 + $0x100] sm:$0xff]
      %v813 = vld [vmem:[%s1 + $0x108] sm:$0xff]
      %v814 = vld [vmem:[%s1 + $0x110] sm:$0xff]
      %v815 = vld [vmem:[%s1 + $0x118] sm:$0xff]
      %v816 = vld [vmem:[%s1 + $0x120] sm:$0xff]
      %v817 = vld [vmem:[%s1 + $0x128] sm:$0xff]
      %v818 = vld [vmem:[%s1 + $0x130] sm:$0xff]
      %v819 = vld [vmem:[%s1 + $0x138] sm:$0xff]
      %v820 = vld [vmem:[%s1 + $0x140] sm:$0xff]
      %v821 = vld [vmem:[%s1 + $0x148] sm:$0xff]
      %v822 = vld [vmem:[%s1 + $0x150] sm:$0xff]
      %v823 = vld [vmem:[%s1 + $0x158] sm:$0xff]
      %v824 = vld [vmem:[%s1 + $0x160] sm:$0xff]
      %v825 = vld [vmem:[%s1 + $0x168] sm:$0xff]
      %v826 = vld [vmem:[%s1 + $0x170] sm:$0xff]
      %v827 = vld [vmem:[%s1 + $0x178] sm:$0xff]
      %v828 = vld [vmem:[%s1 + $0x180] sm:$0xff]
      %v829 = vld [vmem:[%s1 + $0x188] sm:$0xff]
      %v830 = vld [vmem:[%s1 + $0x190] sm:$0xff]
      %v831 = vld [vmem:[%s1 + $0x198] sm:$0xff]
      %v832 = vld [vmem:[%s1 + $0x1a0] sm:$0xff]
      %v833 = vld [vmem:[%s1 + $0x1a8] sm:$0xff]
      %v834 = vld [vmem:[%s1 + $0x1b0] sm:$0xff]
      %v835 = vld [vmem:[%s1 + $0x1b8] sm:$0xff]
      %v836 = vld [vmem:[%s1 + $0x1c0] sm:$0xff]
      %v837 = vld [vmem:[%s1 + $0x1c8] sm:$0xff]
      %v838 = vld [vmem:[%s1 + $0x1d0] sm:$0xff]
      %v839 = vld [vmem:[%s1 + $0x1d8] sm:$0xff]
      %v840 = vld [vmem:[%s1 + $0x1e0] sm:$0xff]
      %v841 = vld [vmem:[%s1 + $0x1e8] sm:$0xff]
      %v842 = vld [vmem:[%s1 + $0x1f0] sm:$0xff]
      %v843 = vld [vmem:[%s1 + $0x1f8] sm:$0xff]
      %v844 = vld [vmem:[%s1 + $0x200] sm:$0xff]
      %v845 = vld [vmem:[%s1 + $0x208] sm:$0xff]
      %v846 = vld [vmem:[%s1 + $0x210] sm:$0xff]
      %v847 = vld [vmem:[%s1 + $0x218] sm:$0xff]
      %v848 = vld [vmem:[%s1 + $0x220] sm:$0xff]
      %v849 = vld [vmem:[%s1 + $0x228] sm:$0xff]
      %v850 = vld [vmem:[%s1 + $0x230] sm:$0xff]
      %v851 = vld [vmem:[%s1 + $0x238] sm:$0xff]
      %v852 = vld [vmem:[%s1 + $0x240] sm:$0xff]
      %v853 = vld [vmem:[%s1 + $0x248] sm:$0xff]
      %v854 = vld [vmem:[%s1 + $0x250] sm:$0xff]
      %v855 = vld [vmem:[%s1 + $0x258] sm:$0xff]
      %v856 = vld [vmem:[%s1 + $0x260] sm:$0xff]
      %v857 = vld [vmem:[%s1 + $0x268] sm:$0xff]
      %v858 = vld [vmem:[%s1 + $0x270] sm:$0xff]
      %v859 = vld [vmem:[%s1 + $0x278] sm:$0xff]
      %v860 = vld [vmem:[%s1 + $0x280] sm:$0xff]
      %v861 = vld [vmem:[%s1 + $0x288] sm:$0xff]
      %v862 = vld [vmem:[%s1 + $0x290] sm:$0xff]
      %v863 = vld [vmem:[%s1 + $0x298] sm:$0xff]
      %v864 = vld [vmem:[%s1 + $0x2a0] sm:$0xff]
      %v865 = vld [vmem:[%s1 + $0x2a8] sm:$0xff]
      %v866 = vld [vmem:[%s1 + $0x2b0] sm:$0xff]
      %v867 = vld [vmem:[%s1 + $0x2b8] sm:$0xff]
      %v868 = vld [vmem:[%s1 + $0x2c0] sm:$0xff]
      %v869 = vld [vmem:[%s1 + $0x2c8] sm:$0xff]
      %v870 = vld [vmem:[%s1 + $0x2d0] sm:$0xff]
      %v871 = vld [vmem:[%s1 + $0x2d8] sm:$0xff]
      %v872 = vld [vmem:[%s1 + $0x2e0] sm:$0xff]
      %v873 = vld [vmem:[%s1 + $0x2e8] sm:$0xff]
      %v874 = vld [vmem:[%s1 + $0x2f0] sm:$0xff]
      %v875 = vld [vmem:[%s1 + $0x2f8] sm:$0xff]
      %v876 = vld [vmem:[%s1 + $0x300] sm:$0xff]
      %v877 = vld [vmem:[%s1 + $0x308] sm:$0xff]
      %v878 = vld [vmem:[%s1 + $0x310] sm:$0xff]
      %v879 = vld [vmem:[%s1 + $0x318] sm:$0xff]
      %v880 = vld [vmem:[%s1 + $0x320] sm:$0xff]
      %v881 = vld [vmem:[%s1 + $0x328] sm:$0xff]
      %v882 = vld [vmem:[%s1 + $0x330] sm:$0xff]
      %v883 = vld [vmem:[%s1 + $0x338] sm:$0xff]
      %v884 = vld [vmem:[%s1 + $0x340] sm:$0xff]
      %v885 = vld [vmem:[%s1 + $0x348] sm:$0xff]
      %v886 = vld [vmem:[%s1 + $0x350] sm:$0xff]
      %v887 = vld [vmem:[%s1 + $0x358] sm:$0xff]
      %v888 = vld [vmem:[%s1 + $0x360] sm:$0xff]
      %v889 = vld [vmem:[%s1 + $0x368] sm:$0xff]
      %v890 = vld [vmem:[%s1 + $0x370] sm:$0xff]
      %v891 = vld [vmem:[%s1 + $0x378] sm:$0xff]
      %v892 = vld [vmem:[%s1 + $0x380] sm:$0xff]
      %v893 = vld [vmem:[%s1 + $0x388] sm:$0xff]
      %v894 = vld [vmem:[%s1 + $0x390] sm:$0xff]
      %v895 = vld [vmem:[%s1 + $0x398] sm:$0xff]
      %v896 = vld [vmem:[%s1 + $0x3a0] sm:$0xff]
      %v897 = vld [vmem:[%s1 + $0x3a8] sm:$0xff]
      %v898 = vld [vmem:[%s1 + $0x3b0] sm:$0xff]
      %v899 = vld [vmem:[%s1 + $0x3b8] sm:$0xff]
      %v900 = vld [vmem:[%s1 + $0x3c0] sm:$0xff]
      %v901 = vld [vmem:[%s1 + $0x3c8] sm:$0xff]
      %v902 = vld [vmem:[%s1 + $0x3d0] sm:$0xff]
      %v903 = vld [vmem:[%s1 + $0x3d8] sm:$0xff]
      %v904 = vld [vmem:[%s1 + $0x3e0] sm:$0xff]
      %v905 = vld [vmem:[%s1 + $0x3e8] sm:$0xff]
      %v906 = vld [vmem:[%s1 + $0x3f0] sm:$0xff]
      %v907 = vld [vmem:[%s1 + $0x3f8] sm:$0xff]
      %v908 = vld [vmem:[%s1 + $0x400] sm:$0xff]
      %v909 = vld [vmem:[%s1 + $0x408] sm:$0xff]
      %v910 = vld [vmem:[%s1 + $0x410] sm:$0xff]
      %v911 = vld [vmem:[%s1 + $0x418] sm:$0xff]
      %v912 = vld [vmem:[%s1 + $0x420] sm:$0xff]
      %v913 = vld [vmem:[%s1 + $0x428] sm:$0xff]
      %v914 = vld [vmem:[%s1 + $0x430] sm:$0xff]
      %v915 = vld [vmem:[%s1 + $0x438] sm:$0xff]
      %v916 = vld [vmem:[%s1 + $0x440] sm:$0xff]
      %v917 = vld [vmem:[%s1 + $0x448] sm:$0xff]
      %v918 = vld [vmem:[%s1 + $0x450] sm:$0xff]
      %v919 = vld [vmem:[%s1 + $0x458] sm:$0xff]
      %v920 = vld [vmem:[%s1 + $0x460] sm:$0xff]
      %v921 = vld [vmem:[%s1 + $0x468] sm:$0xff]
      %v922 = vld [vmem:[%s1 + $0x470] sm:$0xff]
      %v923 = vld [vmem:[%s1 + $0x478] sm:$0xff]
      %924 = vmatprep.subr.mxu0 0.0
      %925 = vmatpush1.msra.mxu0 %v795
      %926 = vmatprep.subr.mxu0 0.0
      %927 = vmatpush1.msra.mxu0 %v794
      %928 = vmatprep.subr.mxu0 0.0
      %929 = vmatpush1.msra.mxu0 %v793
      %930 = vmatprep.subr.mxu0 0.0
      %931 = vmatpush1.msra.mxu0 %v792
      %932 = vmatprep.subr.mxu0 0.0
      %933 = vmatpush1.msra.mxu0 %v791
      %934 = vmatprep.subr.mxu0 0.0
      %935 = vmatpush1.msra.mxu0 %v790
      %936 = vmatprep.subr.mxu0 0.0
      %937 = vmatpush1.msra.mxu0 %v789
      %938 = vmatprep.subr.mxu0 0.0
      %939 = vmatpush1.msra.mxu0 %v788
      %940 = vmatprep.subr.mxu0 0.0
      %941 = vmatpush1.msra.mxu0 %v787
      %942 = vmatprep.subr.mxu0 0.0
      %943 = vmatpush1.msra.mxu0 %v786
      %944 = vmatprep.subr.mxu0 0.0
      %945 = vmatpush1.msra.mxu0 %v785
      %946 = vmatprep.subr.mxu0 0.0
      %947 = vmatpush1.msra.mxu0 %v784
      %948 = vmatprep.subr.mxu0 0.0
      %949 = vmatpush1.msra.mxu0 %v783
      %950 = vmatprep.subr.mxu0 0.0
      %951 = vmatpush1.msra.mxu0 %v782
      %952 = vmatprep.subr.mxu0 0.0
      %953 = vmatpush1.msra.mxu0 %v781
      %954 = vmatprep.subr.mxu0 0.0
      %955 = vmatpush1.msra.mxu0 %v780
      %956 = vmatprep.subr.mxu0 0.0
      %957 = vmatpush2.msra.mxu0 %v811
      %958 = vmatprep.subr.mxu0 0.0
      %959 = vmatpush2.msra.mxu0 %v810
      %960 = vmatprep.subr.mxu0 0.0
      %961 = vmatpush2.msra.mxu0 %v809
      %962 = vmatprep.subr.mxu0 0.0
      %963 = vmatpush2.msra.mxu0 %v808
      %964 = vmatprep.subr.mxu0 0.0
      %965 = vmatpush2.msra.mxu0 %v807
      %966 = vmatprep.subr.mxu0 0.0
      %967 = vmatpush2.msra.mxu0 %v806
      %968 = vmatprep.subr.mxu0 0.0
      %969 = vmatpush2.msra.mxu0 %v805
      %970 = vmatprep.subr.mxu0 0.0
      %971 = vmatpush2.msra.mxu0 %v804
      %972 = vmatprep.subr.mxu0 0.0
      %973 = vmatpush2.msra.mxu0 %v803
      %974 = vmatprep.subr.mxu0 0.0
      %975 = vmatpush2.msra.mxu0 %v802
      %976 = vmatprep.subr.mxu0 0.0
      %977 = vmatpush2.msra.mxu0 %v801
      %978 = vmatprep.subr.mxu0 0.0
      %979 = vmatpush2.msra.mxu0 %v800
      %980 = vmatprep.subr.mxu0 0.0
      %981 = vmatpush2.msra.mxu0 %v799
      %982 = vmatprep.subr.mxu0 0.0
      %983 = vmatpush2.msra.mxu0 %v798
      %984 = vmatprep.subr.mxu0 0.0
      %985 = vmatpush2.msra.mxu0 %v797
      %986 = vmatprep.subr.mxu0 0.0
      %987 = vmatpush2.msra.mxu0 %v796
      %988 = vmatprep.mubr.f32.mxu0 %v635
      %989 = vmatmul.mubr.f32.gmra.mxu0 %v578
      %v990 = vpop.f32.mrf.mxu0
      %v991 = vadd.f32 0.0, %v990
      %v992 = vpop.f32.mrf.mxu0
      %993 = vmatprep.mubr.f32.mxu0 %v637
      %994 = vmatmul.mubr.f32.gmra.mxu0 %v579
      %v995 = vpop.f32.mrf.mxu0
      %v996 = vadd.f32 0.0, %v995
      %v997 = vpop.f32.mrf.mxu0
      %998 = vmatprep.mubr.f32.mxu0 %v640
      %999 = vmatmul.mubr.f32.gmra.mxu0 %v581
      %v1000 = vpop.f32.mrf.mxu0
      %v1001 = vadd.f32 0.0, %v1000
      %v1002 = vpop.f32.mrf.mxu0
      %1003 = vmatprep.mubr.f32.mxu0 %v642
      %1004 = vmatmul.mubr.f32.gmra.mxu0 %v582
      %v1005 = vpop.f32.mrf.mxu0
      %v1006 = vadd.f32 0.0, %v1005
      %v1007 = vpop.f32.mrf.mxu0
      %1008 = vmatprep.mubr.f32.mxu0 %v645
      %1009 = vmatmul.mubr.f32.gmra.mxu0 %v584
      %v1010 = vpop.f32.mrf.mxu0
      %v1011 = vadd.f32 0.0, %v1010
      %v1012 = vpop.f32.mrf.mxu0
      %1013 = vmatprep.mubr.f32.mxu0 %v647
      %1014 = vmatmul.mubr.f32.gmra.mxu0 %v585
      %v1015 = vpop.f32.mrf.mxu0
      %v1016 = vadd.f32 0.0, %v1015
      %v1017 = vpop.f32.mrf.mxu0
      %1018 = vmatprep.mubr.f32.mxu0 %v650
      %1019 = vmatmul.mubr.f32.gmra.mxu0 %v587
      %v1020 = vpop.f32.mrf.mxu0
      %v1021 = vadd.f32 0.0, %v1020
      %v1022 = vpop.f32.mrf.mxu0
      %1023 = vmatprep.mubr.f32.mxu0 %v652
      %1024 = vmatmul.mubr.f32.gmra.mxu0 %v588
      %v1025 = vpop.f32.mrf.mxu0
      %v1026 = vadd.f32 0.0, %v1025
      %v1027 = vpop.f32.mrf.mxu0
      %1028 = vmatprep.mubr.f32.mxu0 %v655
      %1029 = vmatmul.mubr.f32.gmra.mxu0 %v590
      %v1030 = vpop.f32.mrf.mxu0
      %v1031 = vadd.f32 0.0, %v1030
      %v1032 = vpop.f32.mrf.mxu0
      %1033 = vmatprep.mubr.f32.mxu0 %v657
      %1034 = vmatmul.mubr.f32.gmra.mxu0 %v591
      %v1035 = vpop.f32.mrf.mxu0
      %v1036 = vadd.f32 0.0, %v1035
      %v1037 = vpop.f32.mrf.mxu0
      %1038 = vmatprep.mubr.f32.mxu0 %v660
      %1039 = vmatmul.mubr.f32.gmra.mxu0 %v593
      %v1040 = vpop.f32.mrf.mxu0
      %v1041 = vadd.f32 0.0, %v1040
      %v1042 = vpop.f32.mrf.mxu0
      %1043 = vmatprep.mubr.f32.mxu0 %v662
      %1044 = vmatmul.mubr.f32.gmra.mxu0 %v594
      %v1045 = vpop.f32.mrf.mxu0
      %v1046 = vadd.f32 0.0, %v1045
      %v1047 = vpop.f32.mrf.mxu0
      %1048 = vmatprep.mubr.f32.mxu0 %v665
      %1049 = vmatmul.mubr.f32.gmra.mxu0 %v596
      %v1050 = vpop.f32.mrf.mxu0
      %v1051 = vadd.f32 0.0, %v1050
      %v1052 = vpop.f32.mrf.mxu0
      %1053 = vmatprep.mubr.f32.mxu0 %v667
      %1054 = vmatmul.mubr.f32.gmra.mxu0 %v597
      %v1055 = vpop.f32.mrf.mxu0
      %v1056 = vadd.f32 0.0, %v1055
      %v1057 = vpop.f32.mrf.mxu0
      %1058 = vmatprep.mubr.f32.mxu0 %v670
      %1059 = vmatmul.mubr.f32.gmra.mxu0 %v599
      %v1060 = vpop.f32.mrf.mxu0
      %v1061 = vadd.f32 0.0, %v1060
      %v1062 = vpop.f32.mrf.mxu0
      %1063 = vmatprep.mubr.f32.mxu0 %v672
      %1064 = vmatmul.mubr.f32.gmra.mxu0 %v600
      %v1065 = vpop.f32.mrf.mxu0
      %v1066 = vadd.f32 0.0, %v1065
      %v1067 = vpop.f32.mrf.mxu0
      %1068 = vdwg.mxu0
      %1069 = vmatprep.subr.mxu0 0.0
      %1070 = vmatpush1.msra.mxu0 %v827
      %1071 = vmatprep.subr.mxu0 0.0
      %1072 = vmatpush1.msra.mxu0 %v826
      %1073 = vmatprep.subr.mxu0 0.0
      %1074 = vmatpush1.msra.mxu0 %v825
      %1075 = vmatprep.subr.mxu0 0.0
      %1076 = vmatpush1.msra.mxu0 %v824
      %1077 = vmatprep.subr.mxu0 0.0
      %1078 = vmatpush1.msra.mxu0 %v823
      %1079 = vmatprep.subr.mxu0 0.0
      %1080 = vmatpush1.msra.mxu0 %v822
      %1081 = vmatprep.subr.mxu0 0.0
      %1082 = vmatpush1.msra.mxu0 %v821
      %1083 = vmatprep.subr.mxu0 0.0
      %1084 = vmatpush1.msra.mxu0 %v820
      %1085 = vmatprep.subr.mxu0 0.0
      %1086 = vmatpush1.msra.mxu0 %v819
      %1087 = vmatprep.subr.mxu0 0.0
      %1088 = vmatpush1.msra.mxu0 %v818
      %1089 = vmatprep.subr.mxu0 0.0
      %1090 = vmatpush1.msra.mxu0 %v817
      %1091 = vmatprep.subr.mxu0 0.0
      %1092 = vmatpush1.msra.mxu0 %v816
      %1093 = vmatprep.subr.mxu0 0.0
      %1094 = vmatpush1.msra.mxu0 %v815
      %1095 = vmatprep.subr.mxu0 0.0
      %1096 = vmatpush1.msra.mxu0 %v814
      %1097 = vmatprep.subr.mxu0 0.0
      %1098 = vmatpush1.msra.mxu0 %v813
      %1099 = vmatprep.subr.mxu0 0.0
      %1100 = vmatpush1.msra.mxu0 %v812
      %1101 = vmatprep.subr.mxu0 0.0
      %1102 = vmatpush2.msra.mxu0 %v843
      %1103 = vmatprep.subr.mxu0 0.0
      %1104 = vmatpush2.msra.mxu0 %v842
      %1105 = vmatprep.subr.mxu0 0.0
      %1106 = vmatpush2.msra.mxu0 %v841
      %1107 = vmatprep.subr.mxu0 0.0
      %1108 = vmatpush2.msra.mxu0 %v840
      %1109 = vmatprep.subr.mxu0 0.0
      %1110 = vmatpush2.msra.mxu0 %v839
      %1111 = vmatprep.subr.mxu0 0.0
      %1112 = vmatpush2.msra.mxu0 %v838
      %1113 = vmatprep.subr.mxu0 0.0
      %1114 = vmatpush2.msra.mxu0 %v837
      %1115 = vmatprep.subr.mxu0 0.0
      %1116 = vmatpush2.msra.mxu0 %v836
      %1117 = vmatprep.subr.mxu0 0.0
      %1118 = vmatpush2.msra.mxu0 %v835
      %1119 = vmatprep.subr.mxu0 0.0
      %1120 = vmatpush2.msra.mxu0 %v834
      %1121 = vmatprep.subr.mxu0 0.0
      %1122 = vmatpush2.msra.mxu0 %v833
      %1123 = vmatprep.subr.mxu0 0.0
      %1124 = vmatpush2.msra.mxu0 %v832
      %1125 = vmatprep.subr.mxu0 0.0
      %1126 = vmatpush2.msra.mxu0 %v831
      %1127 = vmatprep.subr.mxu0 0.0
      %1128 = vmatpush2.msra.mxu0 %v830
      %1129 = vmatprep.subr.mxu0 0.0
      %1130 = vmatpush2.msra.mxu0 %v829
      %1131 = vmatprep.subr.mxu0 0.0
      %1132 = vmatpush2.msra.mxu0 %v828
      %1133 = vmatprep.mubr.f32.mxu0 %v581
      %1134 = vmatmul.mubr.f32.gmra.mxu0 %v692
      %v1135 = vpop.f32.mrf.mxu0
      %v1136 = vadd.f32 %v991, %v1135
      %v1137 = vpop.f32.mrf.mxu0
      %1138 = vmatprep.mubr.f32.mxu0 %v582
      %1139 = vmatmul.mubr.f32.gmra.mxu0 %v694
      %v1140 = vpop.f32.mrf.mxu0
      %v1141 = vadd.f32 %v996, %v1140
      %v1142 = vpop.f32.mrf.mxu0
      %1143 = vmatprep.mubr.f32.mxu0 %v584
      %1144 = vmatmul.mubr.f32.gmra.mxu0 %v697
      %v1145 = vpop.f32.mrf.mxu0
      %v1146 = vadd.f32 %v1001, %v1145
      %v1147 = vpop.f32.mrf.mxu0
      %1148 = vmatprep.mubr.f32.mxu0 %v585
      %1149 = vmatmul.mubr.f32.gmra.mxu0 %v699
      %v1150 = vpop.f32.mrf.mxu0
      %v1151 = vadd.f32 %v1006, %v1150
      %v1152 = vpop.f32.mrf.mxu0
      %1153 = vmatprep.mubr.f32.mxu0 %v587
      %1154 = vmatmul.mubr.f32.gmra.mxu0 %v702
      %v1155 = vpop.f32.mrf.mxu0
      %v1156 = vadd.f32 %v1011, %v1155
      %v1157 = vpop.f32.mrf.mxu0
      %1158 = vmatprep.mubr.f32.mxu0 %v588
      %1159 = vmatmul.mubr.f32.gmra.mxu0 %v704
      %v1160 = vpop.f32.mrf.mxu0
      %v1161 = vadd.f32 %v1016, %v1160
      %v1162 = vpop.f32.mrf.mxu0
      %1163 = vmatprep.mubr.f32.mxu0 %v590
      %1164 = vmatmul.mubr.f32.gmra.mxu0 %v707
      %v1165 = vpop.f32.mrf.mxu0
      %v1166 = vadd.f32 %v1021, %v1165
      %v1167 = vpop.f32.mrf.mxu0
      %1168 = vmatprep.mubr.f32.mxu0 %v591
      %1169 = vmatmul.mubr.f32.gmra.mxu0 %v709
      %v1170 = vpop.f32.mrf.mxu0
      %v1171 = vadd.f32 %v1026, %v1170
      %v1172 = vpop.f32.mrf.mxu0
      %1173 = vmatprep.mubr.f32.mxu0 %v593
      %1174 = vmatmul.mubr.f32.gmra.mxu0 %v712
      %v1175 = vpop.f32.mrf.mxu0
      %v1176 = vadd.f32 %v1031, %v1175
      %v1177 = vpop.f32.mrf.mxu0
      %1178 = vmatprep.mubr.f32.mxu0 %v594
      %1179 = vmatmul.mubr.f32.gmra.mxu0 %v714
      %v1180 = vpop.f32.mrf.mxu0
      %v1181 = vadd.f32 %v1036, %v1180
      %v1182 = vpop.f32.mrf.mxu0
      %1183 = vmatprep.mubr.f32.mxu0 %v596
      %1184 = vmatmul.mubr.f32.gmra.mxu0 %v717
      %v1185 = vpop.f32.mrf.mxu0
      %v1186 = vadd.f32 %v1041, %v1185
      %v1187 = vpop.f32.mrf.mxu0
      %1188 = vmatprep.mubr.f32.mxu0 %v597
      %1189 = vmatmul.mubr.f32.gmra.mxu0 %v719
      %v1190 = vpop.f32.mrf.mxu0
      %v1191 = vadd.f32 %v1046, %v1190
      %v1192 = vpop.f32.mrf.mxu0
      %1193 = vmatprep.mubr.f32.mxu0 %v599
      %1194 = vmatmul.mubr.f32.gmra.mxu0 %v722
      %v1195 = vpop.f32.mrf.mxu0
      %v1196 = vadd.f32 %v1051, %v1195
      %v1197 = vpop.f32.mrf.mxu0
      %1198 = vmatprep.mubr.f32.mxu0 %v600
      %1199 = vmatmul.mubr.f32.gmra.mxu0 %v724
      %v1200 = vpop.f32.mrf.mxu0
      %v1201 = vadd.f32 %v1056, %v1200
      %v1202 = vpop.f32.mrf.mxu0
      %1203 = vmatprep.mubr.f32.mxu0 %v602
      %1204 = vmatmul.mubr.f32.gmra.mxu0 %v727
      %v1205 = vpop.f32.mrf.mxu0
      %v1206 = vadd.f32 %v1061, %v1205
      %v1207 = vpop.f32.mrf.mxu0
      %1208 = vmatprep.mubr.f32.mxu0 %v603
      %1209 = vmatmul.mubr.f32.gmra.mxu0 %v729
      %v1210 = vpop.f32.mrf.mxu0
      %v1211 = vadd.f32 %v1066, %v1210
      %v1212 = vpop.f32.mrf.mxu0
      %1213 = vdwg.mxu0
      %1214 = vmatprep.subr.mxu0 0.0
      %1215 = vmatpush1.msra.mxu0 %v859
      %1216 = vmatprep.subr.mxu0 0.0
      %1217 = vmatpush1.msra.mxu0 %v858
      %1218 = vmatprep.subr.mxu0 0.0
      %1219 = vmatpush1.msra.mxu0 %v857
      %1220 = vmatprep.subr.mxu0 0.0
      %1221 = vmatpush1.msra.mxu0 %v856
      %1222 = vmatprep.subr.mxu0 0.0
      %1223 = vmatpush1.msra.mxu0 %v855
      %1224 = vmatprep.subr.mxu0 0.0
      %1225 = vmatpush1.msra.mxu0 %v854
      %1226 = vmatprep.subr.mxu0 0.0
      %1227 = vmatpush1.msra.mxu0 %v853
      %1228 = vmatprep.subr.mxu0 0.0
      %1229 = vmatpush1.msra.mxu0 %v852
      %1230 = vmatprep.subr.mxu0 0.0
      %1231 = vmatpush1.msra.mxu0 %v851
      %1232 = vmatprep.subr.mxu0 0.0
      %1233 = vmatpush1.msra.mxu0 %v850
      %1234 = vmatprep.subr.mxu0 0.0
      %1235 = vmatpush1.msra.mxu0 %v849
      %1236 = vmatprep.subr.mxu0 0.0
      %1237 = vmatpush1.msra.mxu0 %v848
      %1238 = vmatprep.subr.mxu0 0.0
      %1239 = vmatpush1.msra.mxu0 %v847
      %1240 = vmatprep.subr.mxu0 0.0
      %1241 = vmatpush1.msra.mxu0 %v846
      %1242 = vmatprep.subr.mxu0 0.0
      %1243 = vmatpush1.msra.mxu0 %v845
      %1244 = vmatprep.subr.mxu0 0.0
      %1245 = vmatpush1.msra.mxu0 %v844
      %1246 = vmatprep.subr.mxu0 0.0
      %1247 = vmatpush2.msra.mxu0 %v875
      %1248 = vmatprep.subr.mxu0 0.0
      %1249 = vmatpush2.msra.mxu0 %v874
      %1250 = vmatprep.subr.mxu0 0.0
      %1251 = vmatpush2.msra.mxu0 %v873
      %1252 = vmatprep.subr.mxu0 0.0
      %1253 = vmatpush2.msra.mxu0 %v872
      %1254 = vmatprep.subr.mxu0 0.0
      %1255 = vmatpush2.msra.mxu0 %v871
      %1256 = vmatprep.subr.mxu0 0.0
      %1257 = vmatpush2.msra.mxu0 %v870
      %1258 = vmatprep.subr.mxu0 0.0
      %1259 = vmatpush2.msra.mxu0 %v869
      %1260 = vmatprep.subr.mxu0 0.0
      %1261 = vmatpush2.msra.mxu0 %v868
      %1262 = vmatprep.subr.mxu0 0.0
      %1263 = vmatpush2.msra.mxu0 %v867
      %1264 = vmatprep.subr.mxu0 0.0
      %1265 = vmatpush2.msra.mxu0 %v866
      %1266 = vmatprep.subr.mxu0 0.0
      %1267 = vmatpush2.msra.mxu0 %v865
      %1268 = vmatprep.subr.mxu0 0.0
      %1269 = vmatpush2.msra.mxu0 %v864
      %1270 = vmatprep.subr.mxu0 0.0
      %1271 = vmatpush2.msra.mxu0 %v863
      %1272 = vmatprep.subr.mxu0 0.0
      %1273 = vmatpush2.msra.mxu0 %v862
      %1274 = vmatprep.subr.mxu0 0.0
      %1275 = vmatpush2.msra.mxu0 %v861
      %1276 = vmatprep.subr.mxu0 0.0
      %1277 = vmatpush2.msra.mxu0 %v860
      %1278 = vmatprep.mubr.f32.mxu0 %v697
      %1279 = vmatmul.mubr.f32.gmra.mxu0 %v640
      %v1280 = vpop.f32.mrf.mxu0
      %v1281 = vadd.f32 %v1136, %v1280
      %v1282 = vpop.f32.mrf.mxu0
      %1283 = vmatprep.mubr.f32.mxu0 %v699
      %1284 = vmatmul.mubr.f32.gmra.mxu0 %v642
      %v1285 = vpop.f32.mrf.mxu0
      %v1286 = vadd.f32 %v1141, %v1285
      %v1287 = vpop.f32.mrf.mxu0
      %1288 = vmatprep.mubr.f32.mxu0 %v702
      %1289 = vmatmul.mubr.f32.gmra.mxu0 %v645
      %v1290 = vpop.f32.mrf.mxu0
      %v1291 = vadd.f32 %v1146, %v1290
      %v1292 = vpop.f32.mrf.mxu0
      %1293 = vmatprep.mubr.f32.mxu0 %v704
      %1294 = vmatmul.mubr.f32.gmra.mxu0 %v647
      %v1295 = vpop.f32.mrf.mxu0
      %v1296 = vadd.f32 %v1151, %v1295
      %v1297 = vpop.f32.mrf.mxu0
      %1298 = vmatprep.mubr.f32.mxu0 %v707
      %1299 = vmatmul.mubr.f32.gmra.mxu0 %v650
      %v1300 = vpop.f32.mrf.mxu0
      %v1301 = vadd.f32 %v1156, %v1300
      %v1302 = vpop.f32.mrf.mxu0
      %1303 = vmatprep.mubr.f32.mxu0 %v709
      %1304 = vmatmul.mubr.f32.gmra.mxu0 %v652
      %v1305 = vpop.f32.mrf.mxu0
      %v1306 = vadd.f32 %v1161, %v1305
      %v1307 = vpop.f32.mrf.mxu0
      %1308 = vmatprep.mubr.f32.mxu0 %v712
      %1309 = vmatmul.mubr.f32.gmra.mxu0 %v655
      %v1310 = vpop.f32.mrf.mxu0
      %v1311 = vadd.f32 %v1166, %v1310
      %v1312 = vpop.f32.mrf.mxu0
      %1313 = vmatprep.mubr.f32.mxu0 %v714
      %1314 = vmatmul.mubr.f32.gmra.mxu0 %v657
      %v1315 = vpop.f32.mrf.mxu0
      %v1316 = vadd.f32 %v1171, %v1315
      %v1317 = vpop.f32.mrf.mxu0
      %1318 = vmatprep.mubr.f32.mxu0 %v717
      %1319 = vmatmul.mubr.f32.gmra.mxu0 %v660
      %v1320 = vpop.f32.mrf.mxu0
      %v1321 = vadd.f32 %v1176, %v1320
      %v1322 = vpop.f32.mrf.mxu0
      %1323 = vmatprep.mubr.f32.mxu0 %v719
      %1324 = vmatmul.mubr.f32.gmra.mxu0 %v662
      %v1325 = vpop.f32.mrf.mxu0
      %v1326 = vadd.f32 %v1181, %v1325
      %v1327 = vpop.f32.mrf.mxu0
      %1328 = vmatprep.mubr.f32.mxu0 %v722
      %1329 = vmatmul.mubr.f32.gmra.mxu0 %v665
      %v1330 = vpop.f32.mrf.mxu0
      %v1331 = vadd.f32 %v1186, %v1330
      %v1332 = vpop.f32.mrf.mxu0
      %1333 = vmatprep.mubr.f32.mxu0 %v724
      %1334 = vmatmul.mubr.f32.gmra.mxu0 %v667
      %v1335 = vpop.f32.mrf.mxu0
      %v1336 = vadd.f32 %v1191, %v1335
      %v1337 = vpop.f32.mrf.mxu0
      %1338 = vmatprep.mubr.f32.mxu0 %v727
      %1339 = vmatmul.mubr.f32.gmra.mxu0 %v670
      %v1340 = vpop.f32.mrf.mxu0
      %v1341 = vadd.f32 %v1196, %v1340
      %v1342 = vpop.f32.mrf.mxu0
      %1343 = vmatprep.mubr.f32.mxu0 %v729
      %1344 = vmatmul.mubr.f32.gmra.mxu0 %v672
      %v1345 = vpop.f32.mrf.mxu0
      %v1346 = vadd.f32 %v1201, %v1345
      %v1347 = vpop.f32.mrf.mxu0
      %1348 = vmatprep.mubr.f32.mxu0 %v758
      %1349 = vmatmul.mubr.f32.gmra.mxu0 %v751
      %v1350 = vpop.f32.mrf.mxu0
      %v1351 = vadd.f32 %v1206, %v1350
      %v1352 = vpop.f32.mrf.mxu0
      %1353 = vmatprep.mubr.f32.mxu0 %v760
      %1354 = vmatmul.mubr.f32.gmra.mxu0 %v753
      %v1355 = vpop.f32.mrf.mxu0
      %v1356 = vadd.f32 %v1211, %v1355
      %v1357 = vpop.f32.mrf.mxu0
      %1358 = vdwg.mxu0
      %1359 = vmatprep.subr.mxu0 0.0
      %1360 = vmatpush1.msra.mxu0 %v891
      %1361 = vmatprep.subr.mxu0 0.0
      %1362 = vmatpush1.msra.mxu0 %v890
      %1363 = vmatprep.subr.mxu0 0.0
      %1364 = vmatpush1.msra.mxu0 %v889
      %1365 = vmatprep.subr.mxu0 0.0
      %1366 = vmatpush1.msra.mxu0 %v888
      %1367 = vmatprep.subr.mxu0 0.0
      %1368 = vmatpush1.msra.mxu0 %v887
      %1369 = vmatprep.subr.mxu0 0.0
      %1370 = vmatpush1.msra.mxu0 %v886
      %1371 = vmatprep.subr.mxu0 0.0
      %1372 = vmatpush1.msra.mxu0 %v885
      %1373 = vmatprep.subr.mxu0 0.0
      %1374 = vmatpush1.msra.mxu0 %v884
      %1375 = vmatprep.subr.mxu0 0.0
      %1376 = vmatpush1.msra.mxu0 %v883
      %1377 = vmatprep.subr.mxu0 0.0
      %1378 = vmatpush1.msra.mxu0 %v882
      %1379 = vmatprep.subr.mxu0 0.0
      %1380 = vmatpush1.msra.mxu0 %v881
      %1381 = vmatprep.subr.mxu0 0.0
      %1382 = vmatpush1.msra.mxu0 %v880
      %1383 = vmatprep.subr.mxu0 0.0
      %1384 = vmatpush1.msra.mxu0 %v879
      %1385 = vmatprep.subr.mxu0 0.0
      %1386 = vmatpush1.msra.mxu0 %v878
      %1387 = vmatprep.subr.mxu0 0.0
      %1388 = vmatpush1.msra.mxu0 %v877
      %1389 = vmatprep.subr.mxu0 0.0
      %1390 = vmatpush1.msra.mxu0 %v876
      %1391 = vmatprep.subr.mxu0 0.0
      %1392 = vmatpush2.msra.mxu0 %v907
      %1393 = vmatprep.subr.mxu0 0.0
      %1394 = vmatpush2.msra.mxu0 %v906
      %1395 = vmatprep.subr.mxu0 0.0
      %1396 = vmatpush2.msra.mxu0 %v905
      %1397 = vmatprep.subr.mxu0 0.0
      %1398 = vmatpush2.msra.mxu0 %v904
      %1399 = vmatprep.subr.mxu0 0.0
      %1400 = vmatpush2.msra.mxu0 %v903
      %1401 = vmatprep.subr.mxu0 0.0
      %1402 = vmatpush2.msra.mxu0 %v902
      %1403 = vmatprep.subr.mxu0 0.0
      %1404 = vmatpush2.msra.mxu0 %v901
      %1405 = vmatprep.subr.mxu0 0.0
      %1406 = vmatpush2.msra.mxu0 %v900
      %1407 = vmatprep.subr.mxu0 0.0
      %1408 = vmatpush2.msra.mxu0 %v899
      %1409 = vmatprep.subr.mxu0 0.0
      %1410 = vmatpush2.msra.mxu0 %v898
      %1411 = vmatprep.subr.mxu0 0.0
      %1412 = vmatpush2.msra.mxu0 %v897
      %1413 = vmatprep.subr.mxu0 0.0
      %1414 = vmatpush2.msra.mxu0 %v896
      %1415 = vmatprep.subr.mxu0 0.0
      %1416 = vmatpush2.msra.mxu0 %v895
      %1417 = vmatprep.subr.mxu0 0.0
      %1418 = vmatpush2.msra.mxu0 %v894
      %1419 = vmatprep.subr.mxu0 0.0
      %1420 = vmatpush2.msra.mxu0 %v893
      %1421 = vmatprep.subr.mxu0 0.0
      %1422 = vmatpush2.msra.mxu0 %v892
      %1423 = vmatprep.mubr.f32.mxu0 %v645
      %1424 = vmatmul.mubr.f32.gmra.mxu0 %v584
      %v1425 = vpop.f32.mrf.mxu0
      %v1426 = vadd.f32 %v1281, %v1425
      %v1427 = vpop.f32.mrf.mxu0
      %1428 = vmatprep.mubr.f32.mxu0 %v647
      %1429 = vmatmul.mubr.f32.gmra.mxu0 %v585
      %v1430 = vpop.f32.mrf.mxu0
      %v1431 = vadd.f32 %v1286, %v1430
      %v1432 = vpop.f32.mrf.mxu0
      %1433 = vmatprep.mubr.f32.mxu0 %v650
      %1434 = vmatmul.mubr.f32.gmra.mxu0 %v587
      %v1435 = vpop.f32.mrf.mxu0
      %v1436 = vadd.f32 %v1291, %v1435
      %v1437 = vpop.f32.mrf.mxu0
      %1438 = vmatprep.mubr.f32.mxu0 %v652
      %1439 = vmatmul.mubr.f32.gmra.mxu0 %v588
      %v1440 = vpop.f32.mrf.mxu0
      %v1441 = vadd.f32 %v1296, %v1440
      %v1442 = vpop.f32.mrf.mxu0
      %1443 = vmatprep.mubr.f32.mxu0 %v655
      %1444 = vmatmul.mubr.f32.gmra.mxu0 %v590
      %v1445 = vpop.f32.mrf.mxu0
      %v1446 = vadd.f32 %v1301, %v1445
      %v1447 = vpop.f32.mrf.mxu0
      %1448 = vmatprep.mubr.f32.mxu0 %v657
      %1449 = vmatmul.mubr.f32.gmra.mxu0 %v591
      %v1450 = vpop.f32.mrf.mxu0
      %v1451 = vadd.f32 %v1306, %v1450
      %v1452 = vpop.f32.mrf.mxu0
      %1453 = vmatprep.mubr.f32.mxu0 %v660
      %1454 = vmatmul.mubr.f32.gmra.mxu0 %v593
      %v1455 = vpop.f32.mrf.mxu0
      %v1456 = vadd.f32 %v1311, %v1455
      %v1457 = vpop.f32.mrf.mxu0
      %1458 = vmatprep.mubr.f32.mxu0 %v662
      %1459 = vmatmul.mubr.f32.gmra.mxu0 %v594
      %v1460 = vpop.f32.mrf.mxu0
      %v1461 = vadd.f32 %v1316, %v1460
      %v1462 = vpop.f32.mrf.mxu0
      %1463 = vmatprep.mubr.f32.mxu0 %v665
      %1464 = vmatmul.mubr.f32.gmra.mxu0 %v596
      %v1465 = vpop.f32.mrf.mxu0
      %v1466 = vadd.f32 %v1321, %v1465
      %v1467 = vpop.f32.mrf.mxu0
      %1468 = vmatprep.mubr.f32.mxu0 %v667
      %1469 = vmatmul.mubr.f32.gmra.mxu0 %v597
      %v1470 = vpop.f32.mrf.mxu0
      %v1471 = vadd.f32 %v1326, %v1470
      %v1472 = vpop.f32.mrf.mxu0
      %1473 = vmatprep.mubr.f32.mxu0 %v670
      %1474 = vmatmul.mubr.f32.gmra.mxu0 %v599
      %v1475 = vpop.f32.mrf.mxu0
      %v1476 = vadd.f32 %v1331, %v1475
      %v1477 = vpop.f32.mrf.mxu0
      %1478 = vmatprep.mubr.f32.mxu0 %v672
      %1479 = vmatmul.mubr.f32.gmra.mxu0 %v600
      %v1480 = vpop.f32.mrf.mxu0
      %v1481 = vadd.f32 %v1336, %v1480
      %v1482 = vpop.f32.mrf.mxu0
      %1483 = vmatprep.mubr.f32.mxu0 %v751
      %1484 = vmatmul.mubr.f32.gmra.mxu0 %v602
      %v1485 = vpop.f32.mrf.mxu0
      %v1486 = vadd.f32 %v1341, %v1485
      %v1487 = vpop.f32.mrf.mxu0
      %1488 = vmatprep.mubr.f32.mxu0 %v753
      %1489 = vmatmul.mubr.f32.gmra.mxu0 %v603
      %v1490 = vpop.f32.mrf.mxu0
      %v1491 = vadd.f32 %v1346, %v1490
      %v1492 = vpop.f32.mrf.mxu0
      %1493 = vmatprep.mubr.f32.mxu0 %v768
      %1494 = vmatmul.mubr.f32.gmra.mxu0 %v605
      %v1495 = vpop.f32.mrf.mxu0
      %v1496 = vadd.f32 %v1351, %v1495
      %v1497 = vpop.f32.mrf.mxu0
      %1498 = vmatprep.mubr.f32.mxu0 %v770
      %1499 = vmatmul.mubr.f32.gmra.mxu0 %v606
      %v1500 = vpop.f32.mrf.mxu0
      %v1501 = vadd.f32 %v1356, %v1500
      %v1502 = vpop.f32.mrf.mxu0
      %1503 = vdwg.mxu0
      %1504 = vmatprep.subr.mxu0 0.0
      %1505 = vmatpush1.msra.mxu0 %v923
      %1506 = vmatprep.subr.mxu0 0.0
      %1507 = vmatpush1.msra.mxu0 %v922
      %1508 = vmatprep.subr.mxu0 0.0
      %1509 = vmatpush1.msra.mxu0 %v921
      %1510 = vmatprep.subr.mxu0 0.0
      %1511 = vmatpush1.msra.mxu0 %v920
      %1512 = vmatprep.subr.mxu0 0.0
      %1513 = vmatpush1.msra.mxu0 %v919
      %1514 = vmatprep.subr.mxu0 0.0
      %1515 = vmatpush1.msra.mxu0 %v918
      %1516 = vmatprep.subr.mxu0 0.0
      %1517 = vmatpush1.msra.mxu0 %v917
      %1518 = vmatprep.subr.mxu0 0.0
      %1519 = vmatpush1.msra.mxu0 %v916
      %1520 = vmatprep.subr.mxu0 0.0
      %1521 = vmatpush1.msra.mxu0 %v915
      %1522 = vmatprep.subr.mxu0 0.0
      %1523 = vmatpush1.msra.mxu0 %v914
      %1524 = vmatprep.subr.mxu0 0.0
      %1525 = vmatpush1.msra.mxu0 %v913
      %1526 = vmatprep.subr.mxu0 0.0
      %1527 = vmatpush1.msra.mxu0 %v912
      %1528 = vmatprep.subr.mxu0 0.0
      %1529 = vmatpush1.msra.mxu0 %v911
      %1530 = vmatprep.subr.mxu0 0.0
      %1531 = vmatpush1.msra.mxu0 %v910
      %1532 = vmatprep.subr.mxu0 0.0
      %1533 = vmatpush1.msra.mxu0 %v909
      %1534 = vmatprep.subr.mxu0 0.0
      %1535 = vmatpush1.msra.mxu0 %v908
      %1536 = vmatprep.subr.mxu0 0.0
      %1537 = vmatpush2.msra.mxu0 0.0
      %1538 = vmatprep.subr.mxu0 0.0
      %1539 = vmatpush2.msra.mxu0 0.0
      %1540 = vmatprep.subr.mxu0 0.0
      %1541 = vmatpush2.msra.mxu0 0.0
      %1542 = vmatprep.subr.mxu0 0.0
      %1543 = vmatpush2.msra.mxu0 0.0
      %1544 = vmatprep.subr.mxu0 0.0
      %1545 = vmatpush2.msra.mxu0 0.0
      %1546 = vmatprep.subr.mxu0 0.0
      %1547 = vmatpush2.msra.mxu0 0.0
      %1548 = vmatprep.subr.mxu0 0.0
      %1549 = vmatpush2.msra.mxu0 0.0
      %1550 = vmatprep.subr.mxu0 0.0
      %1551 = vmatpush2.msra.mxu0 0.0
      %1552 = vmatprep.subr.mxu0 0.0
      %1553 = vmatpush2.msra.mxu0 0.0
      %1554 = vmatprep.subr.mxu0 0.0
      %1555 = vmatpush2.msra.mxu0 0.0
      %1556 = vmatprep.subr.mxu0 0.0
      %1557 = vmatpush2.msra.mxu0 0.0
      %1558 = vmatprep.subr.mxu0 0.0
      %1559 = vmatpush2.msra.mxu0 0.0
      %1560 = vmatprep.subr.mxu0 0.0
      %1561 = vmatpush2.msra.mxu0 0.0
      %1562 = vmatprep.subr.mxu0 0.0
      %1563 = vmatpush2.msra.mxu0 0.0
      %1564 = vmatprep.subr.mxu0 0.0
      %1565 = vmatpush2.msra.mxu0 0.0
      %1566 = vmatprep.subr.mxu0 0.0
      %1567 = vmatpush2.msra.mxu0 0.0
      %1568 = vmatprep.mubr.f32.mxu0 0.0
      %1569 = vmatmul.mubr.f32.gmra.mxu0 %v702
      %v1570 = vpop.f32.mrf.mxu0
      %v1571 = vadd.f32 %v1426, %v1570
      %v1572 = vpop.f32.mrf.mxu0
      %1573 = vmatprep.mubr.f32.mxu0 0.0
      %1574 = vmatmul.mubr.f32.gmra.mxu0 %v704
      %v1575 = vpop.f32.mrf.mxu0
      %v1576 = vadd.f32 %v1431, %v1575
      %v1577 = vpop.f32.mrf.mxu0
      %1578 = vmatprep.mubr.f32.mxu0 0.0
      %1579 = vmatmul.mubr.f32.gmra.mxu0 %v707
      %v1580 = vpop.f32.mrf.mxu0
      %v1581 = vadd.f32 %v1436, %v1580
      %v1582 = vpop.f32.mrf.mxu0
      %1583 = vmatprep.mubr.f32.mxu0 0.0
      %1584 = vmatmul.mubr.f32.gmra.mxu0 %v709
      %v1585 = vpop.f32.mrf.mxu0
      %v1586 = vadd.f32 %v1441, %v1585
      %v1587 = vpop.f32.mrf.mxu0
      %1588 = vmatprep.mubr.f32.mxu0 0.0
      %1589 = vmatmul.mubr.f32.gmra.mxu0 %v712
      %v1590 = vpop.f32.mrf.mxu0
      %v1591 = vadd.f32 %v1446, %v1590
      %v1592 = vpop.f32.mrf.mxu0
      %1593 = vmatprep.mubr.f32.mxu0 0.0
      %1594 = vmatmul.mubr.f32.gmra.mxu0 %v714
      %v1595 = vpop.f32.mrf.mxu0
      %v1596 = vadd.f32 %v1451, %v1595
      %v1597 = vpop.f32.mrf.mxu0
      %1598 = vmatprep.mubr.f32.mxu0 0.0
      %1599 = vmatmul.mubr.f32.gmra.mxu0 %v717
      %v1600 = vpop.f32.mrf.mxu0
      %v1601 = vadd.f32 %v1456, %v1600
      %v1602 = vpop.f32.mrf.mxu0
      %1603 = vmatprep.mubr.f32.mxu0 0.0
      %1604 = vmatmul.mubr.f32.gmra.mxu0 %v719
      %v1605 = vpop.f32.mrf.mxu0
      %v1606 = vadd.f32 %v1461, %v1605
      %v1607 = vpop.f32.mrf.mxu0
      %1608 = vmatprep.mubr.f32.mxu0 0.0
      %1609 = vmatmul.mubr.f32.gmra.mxu0 %v722
      %v1610 = vpop.f32.mrf.mxu0
      %v1611 = vadd.f32 %v1466, %v1610
      %v1612 = vpop.f32.mrf.mxu0
      %1613 = vmatprep.mubr.f32.mxu0 0.0
      %1614 = vmatmul.mubr.f32.gmra.mxu0 %v724
      %v1615 = vpop.f32.mrf.mxu0
      %v1616 = vadd.f32 %v1471, %v1615
      %v1617 = vpop.f32.mrf.mxu0
      %1618 = vmatprep.mubr.f32.mxu0 0.0
      %1619 = vmatmul.mubr.f32.gmra.mxu0 %v727
      %v1620 = vpop.f32.mrf.mxu0
      %v1621 = vadd.f32 %v1476, %v1620
      %v1622 = vpop.f32.mrf.mxu0
      %1623 = vmatprep.mubr.f32.mxu0 0.0
      %1624 = vmatmul.mubr.f32.gmra.mxu0 %v729
      %v1625 = vpop.f32.mrf.mxu0
      %v1626 = vadd.f32 %v1481, %v1625
      %v1627 = vpop.f32.mrf.mxu0
      %1628 = vmatprep.mubr.f32.mxu0 0.0
      %1629 = vmatmul.mubr.f32.gmra.mxu0 %v758
      %v1630 = vpop.f32.mrf.mxu0
      %v1631 = vadd.f32 %v1486, %v1630
      %v1632 = vpop.f32.mrf.mxu0
      %1633 = vmatprep.mubr.f32.mxu0 0.0
      %1634 = vmatmul.mubr.f32.gmra.mxu0 %v760
      %v1635 = vpop.f32.mrf.mxu0
      %v1636 = vadd.f32 %v1491, %v1635
      %v1637 = vpop.f32.mrf.mxu0
      %1638 = vmatprep.mubr.f32.mxu0 0.0
      %1639 = vmatmul.mubr.f32.gmra.mxu0 %v775
      %v1640 = vpop.f32.mrf.mxu0
      %v1641 = vadd.f32 %v1496, %v1640
      %v1642 = vpop.f32.mrf.mxu0
      %1643 = vmatprep.mubr.f32.mxu0 0.0
      %1644 = vmatmul.mubr.f32.gmra.mxu0 %v777
      %v1645 = vpop.f32.mrf.mxu0
      %v1646 = vadd.f32 %v1501, %v1645
      %v1647 = vpop.f32.mrf.mxu0
      %1648 = vdwg.mxu0
      %1649 = vst [vmem:[%s261] sm:$0xff] %v1571
      %1650 = vst [vmem:[%s261 + $0x8] sm:$0xff] %v1576
      %1651 = vst [vmem:[%s261 + $0x10] sm:$0xff] %v1581
      %1652 = vst [vmem:[%s261 + $0x18] sm:$0xff] %v1586
      %1653 = vst [vmem:[%s261 + $0x20] sm:$0xff] %v1591
      %1654 = vst [vmem:[%s261 + $0x28] sm:$0xff] %v1596
      %1655 = vst [vmem:[%s261 + $0x30] sm:$0xff] %v1601
      %1656 = vst [vmem:[%s261 + $0x38] sm:$0xff] %v1606
      %1657 = vst [vmem:[%s261 + $0x40] sm:$0xff] %v1611
      %1658 = vst [vmem:[%s261 + $0x48] sm:$0xff] %v1616
      %1659 = vst [vmem:[%s261 + $0x50] sm:$0xff] %v1621
      %1660 = vst [vmem:[%s261 + $0x58] sm:$0xff] %v1626
      %1661 = vst [vmem:[%s261 + $0x60] sm:$0xff] %v1631
      %1662 = vst [vmem:[%s261 + $0x68] sm:$0xff] %v1636
      %1663 = vst [vmem:[%s261 + $0x70] sm:$0xff] %v1641
      %1664 = vst [vmem:[%s261 + $0x78] sm:$0xff] %v1646
      %v1665 = vadd.f32 %v1571, %v1576
      %v1666 = vadd.f32 %v1665, %v1581
      %v1667 = vadd.f32 %v1666, %v1586
      %v1668 = vadd.f32 %v1667, %v1591
      %v1669 = vadd.f32 %v1668, %v1596
      %v1670 = vadd.f32 %v1669, %v1601
      %v1671 = vadd.f32 %v1670, %v1606
      %v1672 = vadd.f32 %v1671, %v1611
      %v1673 = vadd.f32 %v1672, %v1616
      %v1674 = vadd.f32 %v1673, %v1621
      %v1675 = vadd.f32 %v1674, %v1626
      %v1676 = vadd.f32 %v1675, %v1631
      %v1677 = vadd.f32 %v1676, %v1636
      %v1678 = vadd.f32 %v1677, %v1641
      %v1679 = vadd.f32 %v1678, %v1646
      %v1680 = vrot.slane %v1679, 4
      %v1681 = vadd.f32 %v1679, %v1680
      %v1682 = vrot.slane %v1681, 2
      %v1683 = vadd.f32 %v1681, %v1682
      %v1684 = vrot.slane %v1683, 1
      %v1685 = vadd.f32 %v1683, %v1684
      %v1686 = vmul.f32 %v1571, %v1571
      %v1687 = vmul.f32 %v1576, %v1576
      %v1688 = vmul.f32 %v1581, %v1581
      %v1689 = vmul.f32 %v1586, %v1586
      %v1690 = vmul.f32 %v1591, %v1591
      %v1691 = vmul.f32 %v1596, %v1596
      %v1692 = vmul.f32 %v1601, %v1601
      %v1693 = vmul.f32 %v1606, %v1606
      %v1694 = vmul.f32 %v1611, %v1611
      %v1695 = vmul.f32 %v1616, %v1616
      %v1696 = vmul.f32 %v1621, %v1621
      %v1697 = vmul.f32 %v1626, %v1626
      %v1698 = vmul.f32 %v1631, %v1631
      %v1699 = vmul.f32 %v1636, %v1636
      %v1700 = vmul.f32 %v1641, %v1641
      %v1701 = vmul.f32 %v1646, %v1646
      %v1702 = vadd.f32 %v1686, %v1687
      %v1703 = vadd.f32 %v1702, %v1688
      %v1704 = vadd.f32 %v1703, %v1689
      %v1705 = vadd.f32 %v1704, %v1690
      %v1706 = vadd.f32 %v1705, %v1691
      %v1707 = vadd.f32 %v1706, %v1692
      %v1708 = vadd.f32 %v1707, %v1693
      %v1709 = vadd.f32 %v1708, %v1694
      %v1710 = vadd.f32 %v1709, %v1695
      %v1711 = vadd.f32 %v1710, %v1696
      %v1712 = vadd.f32 %v1711, %v1697
      %v1713 = vadd.f32 %v1712, %v1698
      %v1714 = vadd.f32 %v1713, %v1699
      %v1715 = vadd.f32 %v1714, %v1700
      %v1716 = vadd.f32 %v1715, %v1701
      %v1717 = vrot.slane %v1716, 4
      %v1718 = vadd.f32 %v1716, %v1717
      %v1719 = vrot.slane %v1718, 2
      %v1720 = vadd.f32 %v1718, %v1719
      %v1721 = vrot.slane %v1720, 1
      %v1722 = vadd.f32 %v1720, %v1721
      %vm1723 = vcmask 1040384
      %v1724 = vsel %vm1723, %v1685, %v1722
      %1725 = vst [vmem:[%s270] sm:$0x3] %v1724
      %s1726 = smul.u32 8, %s22
      %p1727 = scmp.lt.s32.totalorder %s21, 1
      %s1728 = scalar_select %p1727, %s21, 1
      %p1729 = scmp.lt.s32.totalorder %s1726, 15
      %s1730 = scalar_select %p1729, %s1726, 15
      %s1731 = smul.addr %s1730, 2
      %s1732 = smul.addr %s1728, 32
      %s1733 = sadd.s32 %s1731, %s1732
      %s1734 = smul.addr %s1733, 8
      %s1735 = scalar_lea.vmem %s4, %s1734
      %p1736 = scmp.lt.s32.totalorder %s21, 1
      %s1737 = scalar_select %p1736, %s21, 1
      %p1738 = scmp.lt.s32.totalorder %s22, 1
      %s1739 = scalar_select %p1738, %s22, 1
      %s1740 = smul.addr %s1737, 2
      %s1741 = sadd.s32 %s1739, %s1740
      %s1742 = smul.addr %s1741, 2
      %s1743 = scalar_lea.vmem %s5, %s1742
      // Predicated region
      $region37: #{double_conv.4} parent=35 // pred_check
        %p1744 = pneg %p138
      $region38: #{double_conv.4} parent=35 // pred_check_branch
        %1746 = sbr.rel (%p1744) target = $region40
      $region39: #{double_conv.4} parent=35 // pred_region
        %s1747 = smul.u32 8, %s22
      $region40: #{double_conv.4} parent=35 // pred_fallthru
        _
      // Predicated region
      $region41: #{double_conv.4} parent=35 // pred_check
        %p1748 = pneg %p166
      $region42: #{double_conv.4} parent=35 // pred_check_branch
        %1750 = sbr.rel (%p1748) target = $region44
      $region43: #{double_conv.4} parent=35 // pred_region
        _
      $region44: #{double_conv.4} parent=35 // pred_fallthru
        _
    $region36: #{double_conv.4} parent=5 // pred_fallthru
      _
    %p1751 = scmp.le.s32.totalorder 2, %s12
    // Predicated region
    $region45: #{double_conv.4} parent=5 // pred_check
      %p1752 = pneg %p1751
    $region46: #{double_conv.4} parent=5 // pred_check_branch
      %1754 = sbr.rel (%p1752) target = $region48
    $region47: #{double_conv.4} parent=5 // pred_region
      %s1755 = ssub.s32 %s12, 2
      // Predicated region
      $region49: #{double_conv.4} parent=47 // pred_check
        %p1756 = pneg %p144
      $region50: #{double_conv.4} parent=47 // pred_check_branch
        %1758 = sbr.rel (%p1756) target = $region52
      $region51: #{double_conv.4} parent=47 // pred_region
        %s1759 = smul.u32 8, %s24
        %p1760 = scmp.lt.s32.totalorder %s23, 1
        %s1761 = scalar_select %p1760, %s23, 1
        %p1762 = scmp.lt.s32.totalorder %s1759, 15
        %s1763 = scalar_select %p1762, %s1759, 15
        %s1764 = smul.addr %s1763, 2
        %s1765 = smul.addr %s1761, 32
        %s1766 = sadd.s32 %s1764, %s1765
        %s1767 = smul.addr %s1766, 8
        %s1768 = scalar_lea.vmem %s4, %s1767
      $region52: #{double_conv.4} parent=47 // pred_fallthru
        _
      // Predicated region
      $region53: #{double_conv.4} parent=47 // pred_check
        %p1769 = pneg %p172
      $region54: #{double_conv.4} parent=47 // pred_check_branch
        %1771 = sbr.rel (%p1769) target = $region56
      $region55: #{double_conv.4} parent=47 // pred_region
        %p1772 = scmp.lt.s32.totalorder %s23, 1
        %s1773 = scalar_select %p1772, %s23, 1
        %p1774 = scmp.lt.s32.totalorder %s24, 1
        %s1775 = scalar_select %p1774, %s24, 1
        %s1776 = smul.addr %s1773, 2
        %s1777 = sadd.s32 %s1775, %s1776
        %s1778 = smul.addr %s1777, 2
        %s1779 = scalar_lea.vmem %s5, %s1778
      $region56: #{double_conv.4} parent=47 // pred_fallthru
        _
    $region48: #{double_conv.4} parent=5 // pred_fallthru
      _
  $region6: #{double_conv.4} parent=0 // loop_footer
    %s16 = sadd.s32 1, %s12
  $region7: #{double_conv.4} parent=0 // loop_footer_branch
    %11 = sbr.rel target = $region3
  $region8: #{double_conv.4} parent=0 // loop_exit
    _

</llo_original>
